<compile_context>
chip_gen: v6e
topology: v6e:2x2x1
jax: 0.10.0
libtpu: 0.0.40
codegen_flags: <defaults>
</compile_context>

<pallas_src>
import functools

import jax
import jax.numpy as jnp
from jax.experimental import pallas as pl
from jax.experimental.pallas import tpu as pltpu


# Board / network geometry (hidden_dim = 128, the module default).
H_IN, W_IN = 6, 7          # Connect4 board
HO, WO = 7, 8              # spatial size after conv1 (k=4, pad=2); conv2/3 preserve it
C1 = 128                   # conv1 Cout, zero-padded 64 -> 128 for lane density
C2 = 128                   # conv2 Cout
C3 = 128                   # conv3 Cout (= hidden_dim)

# Batch tile.  Per-step VMEM (patch scratch + pad scratch + bf16 copies) is ~10 MiB
# at TB=16 — comfortably inside v7x's 32 MiB scoped default / 64 MiB physical VMEM,
# with room for double-buffered input/weight blocks.  Must be a multiple of 8.
_BATCH_TILE = 16


# ----------------------------------------------------------------------------
# Fused kernel
# ----------------------------------------------------------------------------
def connect4_fused_kernel(x_ref, w1_ref, st1_ref, w2_ref, st2_ref, w3_ref, st3_ref,
                          hw_ref, hb_ref, ow_ref, ob_ref,
                          out_ref, pad_ref, patch_ref, *, TB):
    """Whole-network forward for one batch tile of TB boards.

    x_ref    : (TB, 10, 11, 8) f32   input, pre-padded in the wrapper
                                     (spatial halo for k=4/pad=2, Cin 1 -> 8)
    w1_ref   : (128, 128)  bf16      im2col conv1 weight  (4*4*8, 128)
    w2_ref   : (1152, 128) bf16      im2col conv2 weight  (3*3*128, 128)
    w3_ref   : (1152, 128) bf16      im2col conv3 weight  (3*3*128, 128)
    st*_ref  : (2, 128)    f32       folded BatchNorm [scale; shift]
    hw_ref   : (128, 256)  bf16      [policy_fc1 | value_fc1]
    hb_ref   : (1, 256)    f32       [policy_b1  | value_b1]
    ow_ref   : (256, 128)  bf16      block-diag: policy_fc2 -> cols 0:7, value_fc2 -> col 7
    ob_ref   : (1, 128)    f32       matching biases (cols 8:128 zero)
    out_ref  : (TB, 128)   f32       cols 0:7 = policy logits, col 7 = value
    pad_ref  : (TB, 9, 10, 128) f32  VMEM scratch: zero-padded conv2/conv3 input
    patch_ref: (TB*56, 1152)    f32  VMEM scratch: im2col patch matrix (reused per conv)
    """
    M = TB * HO * WO
    bf16 = jnp.bfloat16
    f32 = jnp.float32

    def im2col_from(src_ref, k, cin):
        # Gather the k*k shifted windows of the (pre-padded) activation into the
        # im2col buffer: patch[:, t*cin:(t+1)*cin] = window_t, t = kh*k + kw.
        # Sub-window reads/stores use static offsets only.
        for kh in range(k):
            for kw in range(k):
                t = kh * k + kw
                win = src_ref[:, kh:kh + HO, kw:kw + WO, :]      # (TB, HO, WO, cin)
                patch_ref[:, t * cin:(t + 1) * cin] = win.reshape(M, cin)

    def conv_bn_relu(kcols, w_ref, st_ref):
        # One big-K MXU matmul per conv; BN scale/shift + ReLU in f32.
        p = patch_ref[:, :kcols].astype(bf16)
        acc = jnp.dot(p, w_ref[...], preferred_element_type=f32)  # (M, 128)
        return jnp.maximum(acc * st_ref[0:1, :] + st_ref[1:2, :], 0.0)

    def repad(h, c):
        # Zero-pad (pad=1) the activation inside VMEM for the next 3x3 conv.
        pad_ref[...] = jnp.zeros_like(pad_ref)
        pad_ref[:, 1:1 + HO, 1:1 + WO, :] = h.reshape(TB, HO, WO, c)

    # ---- conv1 (k=4, pad=2; halo applied in wrapper): 6x7x1 -> 7x8x128 ----
    im2col_from(x_ref, 4, 8)
    h1 = conv_bn_relu(4 * 4 * 8, w1_ref, st1_ref)                 # (M, 128)

    # ---- conv2 (k=3, pad=1) ----
    repad(h1, C1)
    im2col_from(pad_ref, 3, C1)
    h2 = conv_bn_relu(3 * 3 * C1, w2_ref, st2_ref)                # (M, 128)

    # ---- conv3 (k=3, pad=1) ----
    repad(h2, C2)
    im2col_from(pad_ref, 3, C2)
    h3 = conv_bn_relu(3 * 3 * C2, w3_ref, st3_ref)                # (M, 128)

    # ---- adaptive_avg_pool2d(1,1) + fused policy/value heads ----
    feat = jnp.mean(h3.reshape(TB, HO * WO, C3), axis=1)          # (TB, 128) f32
    hcat = jnp.dot(feat.astype(bf16), hw_ref[...],
                   preferred_element_type=f32) + hb_ref[...]      # (TB, 256)
    hcat = jnp.maximum(hcat, 0.0)
    out_ref[...] = jnp.dot(hcat.astype(bf16), ow_ref[...],
                           preferred_element_type=f32) + ob_ref[...]


# ----------------------------------------------------------------------------
# Wrapper
# ----------------------------------------------------------------------------
@jax.jit
def connect4_forward(x_nchw, kp):
    """x_nchw: (B, 1, 6, 7) float32.  Returns (policy_logits (B, 7), value (B,))."""
    x = jnp.transpose(x_nchw, (0, 2, 3, 1)).astype(jnp.float32)   # NCHW -> NHWC (B,6,7,1)
    B = x.shape[0]
    TB = min(_BATCH_TILE, B)
    nb = pl.cdiv(B, TB)
    Bp = nb * TB
    M = TB * HO * WO

    # Single tiny pad: batch round-up, conv1 spatial halo (pad=2), Cin 1 -> 8.
    xp = jnp.pad(x, ((0, Bp - B), (2, 2), (2, 2), (0, 7)))        # (Bp, 10, 11, 8)

    kern = functools.partial(connect4_fused_kernel, TB=TB)
    out = pl.pallas_call(
        kern,
        out_shape=jax.ShapeDtypeStruct((Bp, 128), jnp.float32),
        grid_spec=pltpu.PrefetchScalarGridSpec(
            num_scalar_prefetch=0,
            grid=(nb,),
            in_specs=[
                pl.BlockSpec((TB, 10, 11, 8), lambda b: (b, 0, 0, 0)),
                pl.BlockSpec((128, 128), lambda b: (0, 0)),       # w1 (im2col)
                pl.BlockSpec((2, 128), lambda b: (0, 0)),         # st1
                pl.BlockSpec((1152, 128), lambda b: (0, 0)),      # w2
                pl.BlockSpec((2, 128), lambda b: (0, 0)),         # st2
                pl.BlockSpec((1152, 128), lambda b: (0, 0)),      # w3
                pl.BlockSpec((2, 128), lambda b: (0, 0)),         # st3
                pl.BlockSpec((128, 256), lambda b: (0, 0)),       # heads fc1 (fused)
                pl.BlockSpec((1, 256), lambda b: (0, 0)),         # heads b1
                pl.BlockSpec((256, 128), lambda b: (0, 0)),       # heads fc2 (block-diag)
                pl.BlockSpec((1, 128), lambda b: (0, 0)),         # heads b2
            ],
            out_specs=pl.BlockSpec((TB, 128), lambda b: (b, 0)),
            scratch_shapes=[
                pltpu.VMEM((TB, HO + 2, WO + 2, 128), jnp.float32),   # padded act
                pltpu.VMEM((M, 1152), jnp.float32),                   # im2col patches
            ],
        ),
        compiler_params=pltpu.CompilerParams(
            dimension_semantics=("parallel",)),
    )(xp, kp['w1'], kp['st1'], kp['w2'], kp['st2'], kp['w3'], kp['st3'],
      kp['hw'], kp['hb'], kp['ow'], kp['ob'])

    out = out[:B]
    return out[:, :7], out[:, 7]                                  # policy, value.squeeze(-1)


# ----------------------------------------------------------------------------
# Parameter construction / packing
# ----------------------------------------------------------------------------
def fold_bn(gamma, beta, mean, var, conv_bias, eps=1e-5):
    scale = gamma / jnp.sqrt(var + eps)
    shift = beta + scale * (conv_bias - mean)
    return scale.astype(jnp.float32), shift.astype(jnp.float32)


def init_params(key, hidden_dim=128, board_width=7):
    ks = jax.random.split(key, 7)

    def he(k, shape):                     # kaiming_normal_, fan_out, relu (HWIO)
        fan_out = shape[-1] * shape[0] * shape[1]
        return jax.random.normal(k, shape, jnp.float32) * jnp.sqrt(2.0 / fan_out)

    def xavier(k, shape):                 # xavier_normal_ ([in, out] layout)
        fan_in, fan_out = shape
        return jax.random.normal(k, shape, jnp.float32) * jnp.sqrt(2.0 / (fan_in + fan_out))

    p = {}
    p['w1'] = he(ks[0], (4, 4, 1, 64))
    p['w2'] = he(ks[1], (3, 3, 64, 128))
    p['w3'] = he(ks[2], (3, 3, 128, hidden_dim))
    # BatchNorm eval stats: gamma=1, beta=0, running_mean=0, running_var=1; conv bias=0.
    for i, c in zip((1, 2, 3), (64, 128, hidden_dim)):
        gamma, beta = jnp.ones((c,)), jnp.zeros((c,))
        mean, var, bias = jnp.zeros((c,)), jnp.ones((c,)), jnp.zeros((c,))
        p[f's{i}'], p[f't{i}'] = fold_bn(gamma, beta, mean, var, bias)
    p['pw1'] = xavier(ks[3], (hidden_dim, hidden_dim))
    p['pb1'] = jnp.zeros((hidden_dim,), jnp.float32)
    p['pw2'] = xavier(ks[4], (hidden_dim, board_width))
    p['pb2'] = jnp.zeros((board_width,), jnp.float32)
    p['vw1'] = xavier(ks[5], (hidden_dim, hidden_dim))
    p['vb1'] = jnp.zeros((hidden_dim,), jnp.float32)
    p['vw2'] = xavier(ks[6], (hidden_dim, 1))
    p['vb2'] = jnp.zeros((1,), jnp.float32)
    return p


def pack_params(p):
    """One-time repack into the kernel's im2col / fused-head layouts (weights bf16)."""
    bf16 = jnp.bfloat16
    kp = {}
    # conv1: HWIO (4,4,1,64) -> pad Cin 1->8, Cout 64->128 -> (4*4*8, 128)
    w1 = jnp.pad(p['w1'], ((0, 0), (0, 0), (0, 7), (0, 64)))
    kp['w1'] = w1.reshape(4 * 4 * 8, 128).astype(bf16)
    kp['st1'] = jnp.stack([jnp.pad(p['s1'], (0, 64)), jnp.pad(p['t1'], (0, 64))])
    # conv2: (3,3,64,128) -> pad Cin 64->128 -> (1152, 128)
    w2 = jnp.pad(p['w2'], ((0, 0), (0, 0), (0, 64), (0, 0)))
    kp['w2'] = w2.reshape(3 * 3 * 128, 128).astype(bf16)
    kp['st2'] = jnp.stack([p['s2'], p['t2']])
    # conv3: (3,3,128,128) -> (1152, 128)
    kp['w3'] = p['w3'].reshape(3 * 3 * 128, 128).astype(bf16)
    kp['st3'] = jnp.stack([p['s3'], p['t3']])
    # Heads: first layers fused to (128,256); second layers block-diagonal, lane-dense.
    kp['hw'] = jnp.concatenate([p['pw1'], p['vw1']], axis=1).astype(bf16)   # (128,256)
    kp['hb'] = jnp.concatenate([p['pb1'], p['vb1']])[None, :]               # (1,256)
    ow = jnp.zeros((256, 128), jnp.float32)
    ow = ow.at[:128, :7].set(p['pw2'])
    ow = ow.at[128:, 7:8].set(p['vw2'])
    kp['ow'] = ow.astype(bf16)                                              # (256,128)
    ob = jnp.zeros((128,), jnp.float32).at[:7].set(p['pb2']).at[7].set(p['vb2'][0])
    kp['ob'] = ob[None, :]                                                  # (1,128)
    return kp


# ----------------------------------------------------------------------------
# Pure-JAX reference (for sanity check)
# ----------------------------------------------------------------------------
def reference_forward(x_nchw, p):
    x = jnp.transpose(x_nchw, (0, 2, 3, 1)).astype(jnp.float32)
    dn = ('NHWC', 'HWIO', 'NHWC')

    def block(h, w, s, t, pad):
        y = jax.lax.conv_general_dilated(h, w, (1, 1), [(pad, pad), (pad, pad)],
                                         dimension_numbers=dn)
        return jnp.maximum(y * s + t, 0.0)

    h = block(x, p['w1'], p['s1'], p['t1'], 2)
    h = block(h, p['w2'], p['s2'], p['t2'], 1)
    h = block(h, p['w3'], p['s3'], p['t3'], 1)
    feat = jnp.mean(h, axis=(1, 2))
    ph = jnp.maximum(feat @ p['pw1'] + p['pb1'], 0.0)
    pol = ph @ p['pw2'] + p['pb2']
    vh = jnp.maximum(feat @ p['vw1'] + p['vb1'], 0.0)
    val = (vh @ p['vw2'] + p['vb2'])[:, 0]
    return pol, val


if __name__ == "__main__":
    key = jax.random.PRNGKey(0)
    k_x, k_p = jax.random.split(key)

    B = 2
    x = jax.random.normal(k_x, (B, 1, 6, 7), jnp.float32)    # (batch, channels, H, W)
    params = init_params(k_p)
    kparams = pack_params(params)

    policy_logits, value = connect4_forward(x, kparams)
    jax.block_until_ready((policy_logits, value))

    assert policy_logits.shape == (B, 7), policy_logits.shape
    assert value.shape == (B,), value.shape

    ref_pol, ref_val = reference_forward(x, params)
    # bf16 matmul operands (f32 accumulation) -> ~1e-3 level error at these scales.
    assert jnp.allclose(policy_logits, ref_pol, atol=2e-2, rtol=2e-2), \
        (policy_logits, ref_pol)
    assert jnp.allclose(value, ref_val, atol=2e-2, rtol=2e-2), (value, ref_val)

    print("KERNEL_OK")
</pallas_src>

<mosaic_0001>
module attributes {stable_mosaic.version = 11 : i64} {
  func.func @connect4_fused_kernel(%arg0: i32, %arg1: memref<2x10x11x8xf32, #tpu.memory_space<vmem>>, %arg2: memref<128x128xbf16, #tpu.memory_space<vmem>>, %arg3: memref<2x128xf32, #tpu.memory_space<vmem>>, %arg4: memref<1152x128xbf16, #tpu.memory_space<vmem>>, %arg5: memref<2x128xf32, #tpu.memory_space<vmem>>, %arg6: memref<1152x128xbf16, #tpu.memory_space<vmem>>, %arg7: memref<2x128xf32, #tpu.memory_space<vmem>>, %arg8: memref<128x256xbf16, #tpu.memory_space<vmem>>, %arg9: memref<1x256xf32, #tpu.memory_space<vmem>>, %arg10: memref<256x128xbf16, #tpu.memory_space<vmem>>, %arg11: memref<1x128xf32, #tpu.memory_space<vmem>>, %arg12: memref<2x128xf32, #tpu.memory_space<vmem>>, %arg13: memref<2x9x10x128xf32, #tpu.memory_space<vmem>>, %arg14: memref<112x1152xf32, #tpu.memory_space<vmem>>) attributes {dimension_semantics = [#tpu.dimension_semantics<parallel>], iteration_bounds = array<i64: 1>, scalar_prefetch = 0 : i64, scratch_operands = 2 : i64, tpu.core_type = #tpu.core_type<tc>, window_params = [{transform_indices = @transform_0, window_bounds = array<i64: 2, 10, 11, 8>}, {pipeline_mode = #tpu.pipeline_mode<synchronous>, transform_indices = @transform_1, window_bounds = array<i64: 128, 128>}, {pipeline_mode = #tpu.pipeline_mode<synchronous>, transform_indices = @transform_2, window_bounds = array<i64: 2, 128>}, {pipeline_mode = #tpu.pipeline_mode<synchronous>, transform_indices = @transform_3, window_bounds = array<i64: 1152, 128>}, {pipeline_mode = #tpu.pipeline_mode<synchronous>, transform_indices = @transform_4, window_bounds = array<i64: 2, 128>}, {pipeline_mode = #tpu.pipeline_mode<synchronous>, transform_indices = @transform_5, window_bounds = array<i64: 1152, 128>}, {pipeline_mode = #tpu.pipeline_mode<synchronous>, transform_indices = @transform_6, window_bounds = array<i64: 2, 128>}, {pipeline_mode = #tpu.pipeline_mode<synchronous>, transform_indices = @transform_7, window_bounds = array<i64: 128, 256>}, {pipeline_mode = #tpu.pipeline_mode<synchronous>, transform_indices = @transform_8, window_bounds = array<i64: 1, 256>}, {pipeline_mode = #tpu.pipeline_mode<synchronous>, transform_indices = @transform_9, window_bounds = array<i64: 256, 128>}, {pipeline_mode = #tpu.pipeline_mode<synchronous>, transform_indices = @transform_10, window_bounds = array<i64: 1, 128>}, {transform_indices = @transform_11, window_bounds = array<i64: 2, 128>}]} {
    %c0 = arith.constant 0 : index
    %c0_0 = arith.constant 0 : index
    %c0_1 = arith.constant 0 : index
    %c0_2 = arith.constant 0 : index
    %0 = vector.load %arg1[%c0, %c0_0, %c0_1, %c0_2] : memref<2x10x11x8xf32, #tpu.memory_space<vmem>>, vector<2x7x8x8xf32>
    %1 = vector.shape_cast %0 : vector<2x7x8x8xf32> to vector<112x8xf32>
    %c0_3 = arith.constant 0 : index
    %c0_4 = arith.constant 0 : index
    %2 = vector.load %arg14[%c0_3, %c0_4] : memref<112x1152xf32, #tpu.memory_space<vmem>>, vector<112x8xf32>
    tpu.vector_store %arg14[%c0_3, %c0_4], %1 {strides = array<i32>} : memref<112x1152xf32, #tpu.memory_space<vmem>>, vector<112x8xf32>,
    %c0_5 = arith.constant 0 : index
    %c0_6 = arith.constant 0 : index
    %c1 = arith.constant 1 : index
    %c0_7 = arith.constant 0 : index
    %3 = vector.load %arg1[%c0_5, %c0_6, %c1, %c0_7] : memref<2x10x11x8xf32, #tpu.memory_space<vmem>>, vector<2x7x8x8xf32>
    %4 = vector.shape_cast %3 : vector<2x7x8x8xf32> to vector<112x8xf32>
    %c0_8 = arith.constant 0 : index
    %c8 = arith.constant 8 : index
    %5 = vector.load %arg14[%c0_8, %c8] : memref<112x1152xf32, #tpu.memory_space<vmem>>, vector<112x8xf32>
    tpu.vector_store %arg14[%c0_8, %c8], %4 {strides = array<i32>} : memref<112x1152xf32, #tpu.memory_space<vmem>>, vector<112x8xf32>,
    %c0_9 = arith.constant 0 : index
    %c0_10 = arith.constant 0 : index
    %c2 = arith.constant 2 : index
    %c0_11 = arith.constant 0 : index
    %6 = vector.load %arg1[%c0_9, %c0_10, %c2, %c0_11] : memref<2x10x11x8xf32, #tpu.memory_space<vmem>>, vector<2x7x8x8xf32>
    %7 = vector.shape_cast %6 : vector<2x7x8x8xf32> to vector<112x8xf32>
    %c0_12 = arith.constant 0 : index
    %c16 = arith.constant 16 : index
    %8 = vector.load %arg14[%c0_12, %c16] : memref<112x1152xf32, #tpu.memory_space<vmem>>, vector<112x8xf32>
    tpu.vector_store %arg14[%c0_12, %c16], %7 {strides = array<i32>} : memref<112x1152xf32, #tpu.memory_space<vmem>>, vector<112x8xf32>,
    %c0_13 = arith.constant 0 : index
    %c0_14 = arith.constant 0 : index
    %c3 = arith.constant 3 : index
    %c0_15 = arith.constant 0 : index
    %9 = vector.load %arg1[%c0_13, %c0_14, %c3, %c0_15] : memref<2x10x11x8xf32, #tpu.memory_space<vmem>>, vector<2x7x8x8xf32>
    %10 = vector.shape_cast %9 : vector<2x7x8x8xf32> to vector<112x8xf32>
    %c0_16 = arith.constant 0 : index
    %c24 = arith.constant 24 : index
    %11 = vector.load %arg14[%c0_16, %c24] : memref<112x1152xf32, #tpu.memory_space<vmem>>, vector<112x8xf32>
    tpu.vector_store %arg14[%c0_16, %c24], %10 {strides = array<i32>} : memref<112x1152xf32, #tpu.memory_space<vmem>>, vector<112x8xf32>,
    %c0_17 = arith.constant 0 : index
    %c1_18 = arith.constant 1 : index
    %c0_19 = arith.constant 0 : index
    %c0_20 = arith.constant 0 : index
    %12 = vector.load %arg1[%c0_17, %c1_18, %c0_19, %c0_20] : memref<2x10x11x8xf32, #tpu.memory_space<vmem>>, vector<2x7x8x8xf32>
    %13 = vector.shape_cast %12 : vector<2x7x8x8xf32> to vector<112x8xf32>
    %c0_21 = arith.constant 0 : index
    %c32 = arith.constant 32 : index
    %14 = vector.load %arg14[%c0_21, %c32] : memref<112x1152xf32, #tpu.memory_space<vmem>>, vector<112x8xf32>
    tpu.vector_store %arg14[%c0_21, %c32], %13 {strides = array<i32>} : memref<112x1152xf32, #tpu.memory_space<vmem>>, vector<112x8xf32>,
    %c0_22 = arith.constant 0 : index
    %c1_23 = arith.constant 1 : index
    %c1_24 = arith.constant 1 : index
    %c0_25 = arith.constant 0 : index
    %15 = vector.load %arg1[%c0_22, %c1_23, %c1_24, %c0_25] : memref<2x10x11x8xf32, #tpu.memory_space<vmem>>, vector<2x7x8x8xf32>
    %16 = vector.shape_cast %15 : vector<2x7x8x8xf32> to vector<112x8xf32>
    %c0_26 = arith.constant 0 : index
    %c40 = arith.constant 40 : index
    %17 = vector.load %arg14[%c0_26, %c40] : memref<112x1152xf32, #tpu.memory_space<vmem>>, vector<112x8xf32>
    tpu.vector_store %arg14[%c0_26, %c40], %16 {strides = array<i32>} : memref<112x1152xf32, #tpu.memory_space<vmem>>, vector<112x8xf32>,
    %c0_27 = arith.constant 0 : index
    %c1_28 = arith.constant 1 : index
    %c2_29 = arith.constant 2 : index
    %c0_30 = arith.constant 0 : index
    %18 = vector.load %arg1[%c0_27, %c1_28, %c2_29, %c0_30] : memref<2x10x11x8xf32, #tpu.memory_space<vmem>>, vector<2x7x8x8xf32>
    %19 = vector.shape_cast %18 : vector<2x7x8x8xf32> to vector<112x8xf32>
    %c0_31 = arith.constant 0 : index
    %c48 = arith.constant 48 : index
    %20 = vector.load %arg14[%c0_31, %c48] : memref<112x1152xf32, #tpu.memory_space<vmem>>, vector<112x8xf32>
    tpu.vector_store %arg14[%c0_31, %c48], %19 {strides = array<i32>} : memref<112x1152xf32, #tpu.memory_space<vmem>>, vector<112x8xf32>,
    %c0_32 = arith.constant 0 : index
    %c1_33 = arith.constant 1 : index
    %c3_34 = arith.constant 3 : index
    %c0_35 = arith.constant 0 : index
    %21 = vector.load %arg1[%c0_32, %c1_33, %c3_34, %c0_35] : memref<2x10x11x8xf32, #tpu.memory_space<vmem>>, vector<2x7x8x8xf32>
    %22 = vector.shape_cast %21 : vector<2x7x8x8xf32> to vector<112x8xf32>
    %c0_36 = arith.constant 0 : index
    %c56 = arith.constant 56 : index
    %23 = vector.load %arg14[%c0_36, %c56] : memref<112x1152xf32, #tpu.memory_space<vmem>>, vector<112x8xf32>
    tpu.vector_store %arg14[%c0_36, %c56], %22 {strides = array<i32>} : memref<112x1152xf32, #tpu.memory_space<vmem>>, vector<112x8xf32>,
    %c0_37 = arith.constant 0 : index
    %c2_38 = arith.constant 2 : index
    %c0_39 = arith.constant 0 : index
    %c0_40 = arith.constant 0 : index
    %24 = vector.load %arg1[%c0_37, %c2_38, %c0_39, %c0_40] : memref<2x10x11x8xf32, #tpu.memory_space<vmem>>, vector<2x7x8x8xf32>
    %25 = vector.shape_cast %24 : vector<2x7x8x8xf32> to vector<112x8xf32>
    %c0_41 = arith.constant 0 : index
    %c64 = arith.constant 64 : index
    %26 = vector.load %arg14[%c0_41, %c64] : memref<112x1152xf32, #tpu.memory_space<vmem>>, vector<112x8xf32>
    tpu.vector_store %arg14[%c0_41, %c64], %25 {strides = array<i32>} : memref<112x1152xf32, #tpu.memory_space<vmem>>, vector<112x8xf32>,
    %c0_42 = arith.constant 0 : index
    %c2_43 = arith.constant 2 : index
    %c1_44 = arith.constant 1 : index
    %c0_45 = arith.constant 0 : index
    %27 = vector.load %arg1[%c0_42, %c2_43, %c1_44, %c0_45] : memref<2x10x11x8xf32, #tpu.memory_space<vmem>>, vector<2x7x8x8xf32>
    %28 = vector.shape_cast %27 : vector<2x7x8x8xf32> to vector<112x8xf32>
    %c0_46 = arith.constant 0 : index
    %c72 = arith.constant 72 : index
    %29 = vector.load %arg14[%c0_46, %c72] : memref<112x1152xf32, #tpu.memory_space<vmem>>, vector<112x8xf32>
    tpu.vector_store %arg14[%c0_46, %c72], %28 {strides = array<i32>} : memref<112x1152xf32, #tpu.memory_space<vmem>>, vector<112x8xf32>,
    %c0_47 = arith.constant 0 : index
    %c2_48 = arith.constant 2 : index
    %c2_49 = arith.constant 2 : index
    %c0_50 = arith.constant 0 : index
    %30 = vector.load %arg1[%c0_47, %c2_48, %c2_49, %c0_50] : memref<2x10x11x8xf32, #tpu.memory_space<vmem>>, vector<2x7x8x8xf32>
    %31 = vector.shape_cast %30 : vector<2x7x8x8xf32> to vector<112x8xf32>
    %c0_51 = arith.constant 0 : index
    %c80 = arith.constant 80 : index
    %32 = vector.load %arg14[%c0_51, %c80] : memref<112x1152xf32, #tpu.memory_space<vmem>>, vector<112x8xf32>
    tpu.vector_store %arg14[%c0_51, %c80], %31 {strides = array<i32>} : memref<112x1152xf32, #tpu.memory_space<vmem>>, vector<112x8xf32>,
    %c0_52 = arith.constant 0 : index
    %c2_53 = arith.constant 2 : index
    %c3_54 = arith.constant 3 : index
    %c0_55 = arith.constant 0 : index
    %33 = vector.load %arg1[%c0_52, %c2_53, %c3_54, %c0_55] : memref<2x10x11x8xf32, #tpu.memory_space<vmem>>, vector<2x7x8x8xf32>
    %34 = vector.shape_cast %33 : vector<2x7x8x8xf32> to vector<112x8xf32>
    %c0_56 = arith.constant 0 : index
    %c88 = arith.constant 88 : index
    %35 = vector.load %arg14[%c0_56, %c88] : memref<112x1152xf32, #tpu.memory_space<vmem>>, vector<112x8xf32>
    tpu.vector_store %arg14[%c0_56, %c88], %34 {strides = array<i32>} : memref<112x1152xf32, #tpu.memory_space<vmem>>, vector<112x8xf32>,
    %c0_57 = arith.constant 0 : index
    %c3_58 = arith.constant 3 : index
    %c0_59 = arith.constant 0 : index
    %c0_60 = arith.constant 0 : index
    %36 = vector.load %arg1[%c0_57, %c3_58, %c0_59, %c0_60] : memref<2x10x11x8xf32, #tpu.memory_space<vmem>>, vector<2x7x8x8xf32>
    %37 = vector.shape_cast %36 : vector<2x7x8x8xf32> to vector<112x8xf32>
    %c0_61 = arith.constant 0 : index
    %c96 = arith.constant 96 : index
    %38 = vector.load %arg14[%c0_61, %c96] : memref<112x1152xf32, #tpu.memory_space<vmem>>, vector<112x8xf32>
    tpu.vector_store %arg14[%c0_61, %c96], %37 {strides = array<i32>} : memref<112x1152xf32, #tpu.memory_space<vmem>>, vector<112x8xf32>,
    %c0_62 = arith.constant 0 : index
    %c3_63 = arith.constant 3 : index
    %c1_64 = arith.constant 1 : index
    %c0_65 = arith.constant 0 : index
    %39 = vector.load %arg1[%c0_62, %c3_63, %c1_64, %c0_65] : memref<2x10x11x8xf32, #tpu.memory_space<vmem>>, vector<2x7x8x8xf32>
    %40 = vector.shape_cast %39 : vector<2x7x8x8xf32> to vector<112x8xf32>
    %c0_66 = arith.constant 0 : index
    %c104 = arith.constant 104 : index
    %41 = vector.load %arg14[%c0_66, %c104] : memref<112x1152xf32, #tpu.memory_space<vmem>>, vector<112x8xf32>
    tpu.vector_store %arg14[%c0_66, %c104], %40 {strides = array<i32>} : memref<112x1152xf32, #tpu.memory_space<vmem>>, vector<112x8xf32>,
    %c0_67 = arith.constant 0 : index
    %c3_68 = arith.constant 3 : index
    %c2_69 = arith.constant 2 : index
    %c0_70 = arith.constant 0 : index
    %42 = vector.load %arg1[%c0_67, %c3_68, %c2_69, %c0_70] : memref<2x10x11x8xf32, #tpu.memory_space<vmem>>, vector<2x7x8x8xf32>
    %43 = vector.shape_cast %42 : vector<2x7x8x8xf32> to vector<112x8xf32>
    %c0_71 = arith.constant 0 : index
    %c112 = arith.constant 112 : index
    %44 = vector.load %arg14[%c0_71, %c112] : memref<112x1152xf32, #tpu.memory_space<vmem>>, vector<112x8xf32>
    tpu.vector_store %arg14[%c0_71, %c112], %43 {strides = array<i32>} : memref<112x1152xf32, #tpu.memory_space<vmem>>, vector<112x8xf32>,
    %c0_72 = arith.constant 0 : index
    %c3_73 = arith.constant 3 : index
    %c3_74 = arith.constant 3 : index
    %c0_75 = arith.constant 0 : index
    %45 = vector.load %arg1[%c0_72, %c3_73, %c3_74, %c0_75] : memref<2x10x11x8xf32, #tpu.memory_space<vmem>>, vector<2x7x8x8xf32>
    %46 = vector.shape_cast %45 : vector<2x7x8x8xf32> to vector<112x8xf32>
    %c0_76 = arith.constant 0 : index
    %c120 = arith.constant 120 : index
    %47 = vector.load %arg14[%c0_76, %c120] : memref<112x1152xf32, #tpu.memory_space<vmem>>, vector<112x8xf32>
    tpu.vector_store %arg14[%c0_76, %c120], %46 {strides = array<i32>} : memref<112x1152xf32, #tpu.memory_space<vmem>>, vector<112x8xf32>,
    %c0_77 = arith.constant 0 : index
    %c0_78 = arith.constant 0 : index
    %48 = vector.load %arg14[%c0_77, %c0_78] : memref<112x1152xf32, #tpu.memory_space<vmem>>, vector<112x128xf32>
    %49 = arith.truncf %48 : vector<112x128xf32> to vector<112x128xbf16>
    %c0_79 = arith.constant 0 : index
    %c0_80 = arith.constant 0 : index
    %50 = vector.load %arg2[%c0_79, %c0_80] : memref<128x128xbf16, #tpu.memory_space<vmem>>, vector<128x128xbf16>
    %cst = arith.constant dense<0.000000e+00> : vector<112x128xf32>
    %51 = tpu.matmul %49, %50, %cst {dimension_numbers = #tpu.dot_dimension_numbers<[1], [0], [0], [1], [0, 0, 1, 1], [], []>} : vector<112x128xbf16>, vector<128x128xbf16>, vector<112x128xf32> -> vector<112x128xf32>
    %c0_81 = arith.constant 0 : index
    %c0_82 = arith.constant 0 : index
    %52 = vector.load %arg3[%c0_81, %c0_82] : memref<2x128xf32, #tpu.memory_space<vmem>>, vector<1x128xf32>
    %53 = vector.broadcast %52 : vector<1x128xf32> to vector<112x128xf32>
    %54 = arith.mulf %51, %53 : vector<112x128xf32>
    %c1_83 = arith.constant 1 : index
    %c0_84 = arith.constant 0 : index
    %55 = vector.load %arg3[%c1_83, %c0_84] : memref<2x128xf32, #tpu.memory_space<vmem>>, vector<1x128xf32>
    %56 = vector.broadcast %55 : vector<1x128xf32> to vector<112x128xf32>
    %57 = arith.addf %54, %56 : vector<112x128xf32>
    %cst_85 = arith.constant 0.000000e+00 : f32
    %58 = vector.broadcast %cst_85 : f32 to vector<112x128xf32>
    %59 = arith.maximumf %57, %58 : vector<112x128xf32>
    %cst_86 = arith.constant 0.000000e+00 : f32
    %60 = vector.broadcast %cst_86 : f32 to vector<2x9x10x128xf32>
    %c0_87 = arith.constant 0 : index
    %c0_88 = arith.constant 0 : index
    %c0_89 = arith.constant 0 : index
    %c0_90 = arith.constant 0 : index
    %61 = vector.load %arg13[%c0_87, %c0_88, %c0_89, %c0_90] : memref<2x9x10x128xf32, #tpu.memory_space<vmem>>, vector<2x9x10x128xf32>
    tpu.vector_store %arg13[%c0_87, %c0_88, %c0_89, %c0_90], %60 {strides = array<i32>} : memref<2x9x10x128xf32, #tpu.memory_space<vmem>>, vector<2x9x10x128xf32>,
    %62 = vector.shape_cast %59 : vector<112x128xf32> to vector<2x7x8x128xf32>
    %c0_91 = arith.constant 0 : index
    %c1_92 = arith.constant 1 : index
    %c1_93 = arith.constant 1 : index
    %c0_94 = arith.constant 0 : index
    %63 = vector.load %arg13[%c0_91, %c1_92, %c1_93, %c0_94] : memref<2x9x10x128xf32, #tpu.memory_space<vmem>>, vector<2x7x8x128xf32>
    tpu.vector_store %arg13[%c0_91, %c1_92, %c1_93, %c0_94], %62 {strides = array<i32>} : memref<2x9x10x128xf32, #tpu.memory_space<vmem>>, vector<2x7x8x128xf32>,
    %c0_95 = arith.constant 0 : index
    %c0_96 = arith.constant 0 : index
    %c0_97 = arith.constant 0 : index
    %c0_98 = arith.constant 0 : index
    %64 = vector.load %arg13[%c0_95, %c0_96, %c0_97, %c0_98] : memref<2x9x10x128xf32, #tpu.memory_space<vmem>>, vector<2x7x8x128xf32>
    %65 = vector.shape_cast %64 : vector<2x7x8x128xf32> to vector<112x128xf32>
    %c0_99 = arith.constant 0 : index
    %c0_100 = arith.constant 0 : index
    %66 = vector.load %arg14[%c0_99, %c0_100] : memref<112x1152xf32, #tpu.memory_space<vmem>>, vector<112x128xf32>
    tpu.vector_store %arg14[%c0_99, %c0_100], %65 {strides = array<i32>} : memref<112x1152xf32, #tpu.memory_space<vmem>>, vector<112x128xf32>,
    %c0_101 = arith.constant 0 : index
    %c0_102 = arith.constant 0 : index
    %c1_103 = arith.constant 1 : index
    %c0_104 = arith.constant 0 : index
    %67 = vector.load %arg13[%c0_101, %c0_102, %c1_103, %c0_104] : memref<2x9x10x128xf32, #tpu.memory_space<vmem>>, vector<2x7x8x128xf32>
    %68 = vector.shape_cast %67 : vector<2x7x8x128xf32> to vector<112x128xf32>
    %c0_105 = arith.constant 0 : index
    %c128 = arith.constant 128 : index
    %69 = vector.load %arg14[%c0_105, %c128] : memref<112x1152xf32, #tpu.memory_space<vmem>>, vector<112x128xf32>
    tpu.vector_store %arg14[%c0_105, %c128], %68 {strides = array<i32>} : memref<112x1152xf32, #tpu.memory_space<vmem>>, vector<112x128xf32>,
    %c0_106 = arith.constant 0 : index
    %c0_107 = arith.constant 0 : index
    %c2_108 = arith.constant 2 : index
    %c0_109 = arith.constant 0 : index
    %70 = vector.load %arg13[%c0_106, %c0_107, %c2_108, %c0_109] : memref<2x9x10x128xf32, #tpu.memory_space<vmem>>, vector<2x7x8x128xf32>
    %71 = vector.shape_cast %70 : vector<2x7x8x128xf32> to vector<112x128xf32>
    %c0_110 = arith.constant 0 : index
    %c256 = arith.constant 256 : index
    %72 = vector.load %arg14[%c0_110, %c256] : memref<112x1152xf32, #tpu.memory_space<vmem>>, vector<112x128xf32>
    tpu.vector_store %arg14[%c0_110, %c256], %71 {strides = array<i32>} : memref<112x1152xf32, #tpu.memory_space<vmem>>, vector<112x128xf32>,
    %c0_111 = arith.constant 0 : index
    %c1_112 = arith.constant 1 : index
    %c0_113 = arith.constant 0 : index
    %c0_114 = arith.constant 0 : index
    %73 = vector.load %arg13[%c0_111, %c1_112, %c0_113, %c0_114] : memref<2x9x10x128xf32, #tpu.memory_space<vmem>>, vector<2x7x8x128xf32>
    %74 = vector.shape_cast %73 : vector<2x7x8x128xf32> to vector<112x128xf32>
    %c0_115 = arith.constant 0 : index
    %c384 = arith.constant 384 : index
    %75 = vector.load %arg14[%c0_115, %c384] : memref<112x1152xf32, #tpu.memory_space<vmem>>, vector<112x128xf32>
    tpu.vector_store %arg14[%c0_115, %c384], %74 {strides = array<i32>} : memref<112x1152xf32, #tpu.memory_space<vmem>>, vector<112x128xf32>,
    %c0_116 = arith.constant 0 : index
    %c1_117 = arith.constant 1 : index
    %c1_118 = arith.constant 1 : index
    %c0_119 = arith.constant 0 : index
    %76 = vector.load %arg13[%c0_116, %c1_117, %c1_118, %c0_119] : memref<2x9x10x128xf32, #tpu.memory_space<vmem>>, vector<2x7x8x128xf32>
    %77 = vector.shape_cast %76 : vector<2x7x8x128xf32> to vector<112x128xf32>
    %c0_120 = arith.constant 0 : index
    %c512 = arith.constant 512 : index
    %78 = vector.load %arg14[%c0_120, %c512] : memref<112x1152xf32, #tpu.memory_space<vmem>>, vector<112x128xf32>
    tpu.vector_store %arg14[%c0_120, %c512], %77 {strides = array<i32>} : memref<112x1152xf32, #tpu.memory_space<vmem>>, vector<112x128xf32>,
    %c0_121 = arith.constant 0 : index
    %c1_122 = arith.constant 1 : index
    %c2_123 = arith.constant 2 : index
    %c0_124 = arith.constant 0 : index
    %79 = vector.load %arg13[%c0_121, %c1_122, %c2_123, %c0_124] : memref<2x9x10x128xf32, #tpu.memory_space<vmem>>, vector<2x7x8x128xf32>
    %80 = vector.shape_cast %79 : vector<2x7x8x128xf32> to vector<112x128xf32>
    %c0_125 = arith.constant 0 : index
    %c640 = arith.constant 640 : index
    %81 = vector.load %arg14[%c0_125, %c640] : memref<112x1152xf32, #tpu.memory_space<vmem>>, vector<112x128xf32>
    tpu.vector_store %arg14[%c0_125, %c640], %80 {strides = array<i32>} : memref<112x1152xf32, #tpu.memory_space<vmem>>, vector<112x128xf32>,
    %c0_126 = arith.constant 0 : index
    %c2_127 = arith.constant 2 : index
    %c0_128 = arith.constant 0 : index
    %c0_129 = arith.constant 0 : index
    %82 = vector.load %arg13[%c0_126, %c2_127, %c0_128, %c0_129] : memref<2x9x10x128xf32, #tpu.memory_space<vmem>>, vector<2x7x8x128xf32>
    %83 = vector.shape_cast %82 : vector<2x7x8x128xf32> to vector<112x128xf32>
    %c0_130 = arith.constant 0 : index
    %c768 = arith.constant 768 : index
    %84 = vector.load %arg14[%c0_130, %c768] : memref<112x1152xf32, #tpu.memory_space<vmem>>, vector<112x128xf32>
    tpu.vector_store %arg14[%c0_130, %c768], %83 {strides = array<i32>} : memref<112x1152xf32, #tpu.memory_space<vmem>>, vector<112x128xf32>,
    %c0_131 = arith.constant 0 : index
    %c2_132 = arith.constant 2 : index
    %c1_133 = arith.constant 1 : index
    %c0_134 = arith.constant 0 : index
    %85 = vector.load %arg13[%c0_131, %c2_132, %c1_133, %c0_134] : memref<2x9x10x128xf32, #tpu.memory_space<vmem>>, vector<2x7x8x128xf32>
    %86 = vector.shape_cast %85 : vector<2x7x8x128xf32> to vector<112x128xf32>
    %c0_135 = arith.constant 0 : index
    %c896 = arith.constant 896 : index
    %87 = vector.load %arg14[%c0_135, %c896] : memref<112x1152xf32, #tpu.memory_space<vmem>>, vector<112x128xf32>
    tpu.vector_store %arg14[%c0_135, %c896], %86 {strides = array<i32>} : memref<112x1152xf32, #tpu.memory_space<vmem>>, vector<112x128xf32>,
    %c0_136 = arith.constant 0 : index
    %c2_137 = arith.constant 2 : index
    %c2_138 = arith.constant 2 : index
    %c0_139 = arith.constant 0 : index
    %88 = vector.load %arg13[%c0_136, %c2_137, %c2_138, %c0_139] : memref<2x9x10x128xf32, #tpu.memory_space<vmem>>, vector<2x7x8x128xf32>
    %89 = vector.shape_cast %88 : vector<2x7x8x128xf32> to vector<112x128xf32>
    %c0_140 = arith.constant 0 : index
    %c1024 = arith.constant 1024 : index
    %90 = vector.load %arg14[%c0_140, %c1024] : memref<112x1152xf32, #tpu.memory_space<vmem>>, vector<112x128xf32>
    tpu.vector_store %arg14[%c0_140, %c1024], %89 {strides = array<i32>} : memref<112x1152xf32, #tpu.memory_space<vmem>>, vector<112x128xf32>,
    %c0_141 = arith.constant 0 : index
    %c0_142 = arith.constant 0 : index
    %91 = vector.load %arg14[%c0_141, %c0_142] : memref<112x1152xf32, #tpu.memory_space<vmem>>, vector<112x1152xf32>
    %92 = arith.truncf %91 : vector<112x1152xf32> to vector<112x1152xbf16>
    %c0_143 = arith.constant 0 : index
    %c0_144 = arith.constant 0 : index
    %93 = vector.load %arg4[%c0_143, %c0_144] : memref<1152x128xbf16, #tpu.memory_space<vmem>>, vector<1152x128xbf16>
    %cst_145 = arith.constant dense<0.000000e+00> : vector<112x128xf32>
    %94 = tpu.matmul %92, %93, %cst_145 {dimension_numbers = #tpu.dot_dimension_numbers<[1], [0], [0], [1], [0, 0, 1, 1], [], []>} : vector<112x1152xbf16>, vector<1152x128xbf16>, vector<112x128xf32> -> vector<112x128xf32>
    %c0_146 = arith.constant 0 : index
    %c0_147 = arith.constant 0 : index
    %95 = vector.load %arg5[%c0_146, %c0_147] : memref<2x128xf32, #tpu.memory_space<vmem>>, vector<1x128xf32>
    %96 = vector.broadcast %95 : vector<1x128xf32> to vector<112x128xf32>
    %97 = arith.mulf %94, %96 : vector<112x128xf32>
    %c1_148 = arith.constant 1 : index
    %c0_149 = arith.constant 0 : index
    %98 = vector.load %arg5[%c1_148, %c0_149] : memref<2x128xf32, #tpu.memory_space<vmem>>, vector<1x128xf32>
    %99 = vector.broadcast %98 : vector<1x128xf32> to vector<112x128xf32>
    %100 = arith.addf %97, %99 : vector<112x128xf32>
    %cst_150 = arith.constant 0.000000e+00 : f32
    %101 = vector.broadcast %cst_150 : f32 to vector<112x128xf32>
    %102 = arith.maximumf %100, %101 : vector<112x128xf32>
    %cst_151 = arith.constant 0.000000e+00 : f32
    %103 = vector.broadcast %cst_151 : f32 to vector<2x9x10x128xf32>
    %c0_152 = arith.constant 0 : index
    %c0_153 = arith.constant 0 : index
    %c0_154 = arith.constant 0 : index
    %c0_155 = arith.constant 0 : index
    %104 = vector.load %arg13[%c0_152, %c0_153, %c0_154, %c0_155] : memref<2x9x10x128xf32, #tpu.memory_space<vmem>>, vector<2x9x10x128xf32>
    tpu.vector_store %arg13[%c0_152, %c0_153, %c0_154, %c0_155], %103 {strides = array<i32>} : memref<2x9x10x128xf32, #tpu.memory_space<vmem>>, vector<2x9x10x128xf32>,
    %105 = vector.shape_cast %102 : vector<112x128xf32> to vector<2x7x8x128xf32>
    %c0_156 = arith.constant 0 : index
    %c1_157 = arith.constant 1 : index
    %c1_158 = arith.constant 1 : index
    %c0_159 = arith.constant 0 : index
    %106 = vector.load %arg13[%c0_156, %c1_157, %c1_158, %c0_159] : memref<2x9x10x128xf32, #tpu.memory_space<vmem>>, vector<2x7x8x128xf32>
    tpu.vector_store %arg13[%c0_156, %c1_157, %c1_158, %c0_159], %105 {strides = array<i32>} : memref<2x9x10x128xf32, #tpu.memory_space<vmem>>, vector<2x7x8x128xf32>,
    %c0_160 = arith.constant 0 : index
    %c0_161 = arith.constant 0 : index
    %c0_162 = arith.constant 0 : index
    %c0_163 = arith.constant 0 : index
    %107 = vector.load %arg13[%c0_160, %c0_161, %c0_162, %c0_163] : memref<2x9x10x128xf32, #tpu.memory_space<vmem>>, vector<2x7x8x128xf32>
    %108 = vector.shape_cast %107 : vector<2x7x8x128xf32> to vector<112x128xf32>
    %c0_164 = arith.constant 0 : index
    %c0_165 = arith.constant 0 : index
    %109 = vector.load %arg14[%c0_164, %c0_165] : memref<112x1152xf32, #tpu.memory_space<vmem>>, vector<112x128xf32>
    tpu.vector_store %arg14[%c0_164, %c0_165], %108 {strides = array<i32>} : memref<112x1152xf32, #tpu.memory_space<vmem>>, vector<112x128xf32>,
    %c0_166 = arith.constant 0 : index
    %c0_167 = arith.constant 0 : index
    %c1_168 = arith.constant 1 : index
    %c0_169 = arith.constant 0 : index
    %110 = vector.load %arg13[%c0_166, %c0_167, %c1_168, %c0_169] : memref<2x9x10x128xf32, #tpu.memory_space<vmem>>, vector<2x7x8x128xf32>
    %111 = vector.shape_cast %110 : vector<2x7x8x128xf32> to vector<112x128xf32>
    %c0_170 = arith.constant 0 : index
    %c128_171 = arith.constant 128 : index
    %112 = vector.load %arg14[%c0_170, %c128_171] : memref<112x1152xf32, #tpu.memory_space<vmem>>, vector<112x128xf32>
    tpu.vector_store %arg14[%c0_170, %c128_171], %111 {strides = array<i32>} : memref<112x1152xf32, #tpu.memory_space<vmem>>, vector<112x128xf32>,
    %c0_172 = arith.constant 0 : index
    %c0_173 = arith.constant 0 : index
    %c2_174 = arith.constant 2 : index
    %c0_175 = arith.constant 0 : index
    %113 = vector.load %arg13[%c0_172, %c0_173, %c2_174, %c0_175] : memref<2x9x10x128xf32, #tpu.memory_space<vmem>>, vector<2x7x8x128xf32>
    %114 = vector.shape_cast %113 : vector<2x7x8x128xf32> to vector<112x128xf32>
    %c0_176 = arith.constant 0 : index
    %c256_177 = arith.constant 256 : index
    %115 = vector.load %arg14[%c0_176, %c256_177] : memref<112x1152xf32, #tpu.memory_space<vmem>>, vector<112x128xf32>
    tpu.vector_store %arg14[%c0_176, %c256_177], %114 {strides = array<i32>} : memref<112x1152xf32, #tpu.memory_space<vmem>>, vector<112x128xf32>,
    %c0_178 = arith.constant 0 : index
    %c1_179 = arith.constant 1 : index
    %c0_180 = arith.constant 0 : index
    %c0_181 = arith.constant 0 : index
    %116 = vector.load %arg13[%c0_178, %c1_179, %c0_180, %c0_181] : memref<2x9x10x128xf32, #tpu.memory_space<vmem>>, vector<2x7x8x128xf32>
    %117 = vector.shape_cast %116 : vector<2x7x8x128xf32> to vector<112x128xf32>
    %c0_182 = arith.constant 0 : index
    %c384_183 = arith.constant 384 : index
    %118 = vector.load %arg14[%c0_182, %c384_183] : memref<112x1152xf32, #tpu.memory_space<vmem>>, vector<112x128xf32>
    tpu.vector_store %arg14[%c0_182, %c384_183], %117 {strides = array<i32>} : memref<112x1152xf32, #tpu.memory_space<vmem>>, vector<112x128xf32>,
    %c0_184 = arith.constant 0 : index
    %c1_185 = arith.constant 1 : index
    %c1_186 = arith.constant 1 : index
    %c0_187 = arith.constant 0 : index
    %119 = vector.load %arg13[%c0_184, %c1_185, %c1_186, %c0_187] : memref<2x9x10x128xf32, #tpu.memory_space<vmem>>, vector<2x7x8x128xf32>
    %120 = vector.shape_cast %119 : vector<2x7x8x128xf32> to vector<112x128xf32>
    %c0_188 = arith.constant 0 : index
    %c512_189 = arith.constant 512 : index
    %121 = vector.load %arg14[%c0_188, %c512_189] : memref<112x1152xf32, #tpu.memory_space<vmem>>, vector<112x128xf32>
    tpu.vector_store %arg14[%c0_188, %c512_189], %120 {strides = array<i32>} : memref<112x1152xf32, #tpu.memory_space<vmem>>, vector<112x128xf32>,
    %c0_190 = arith.constant 0 : index
    %c1_191 = arith.constant 1 : index
    %c2_192 = arith.constant 2 : index
    %c0_193 = arith.constant 0 : index
    %122 = vector.load %arg13[%c0_190, %c1_191, %c2_192, %c0_193] : memref<2x9x10x128xf32, #tpu.memory_space<vmem>>, vector<2x7x8x128xf32>
    %123 = vector.shape_cast %122 : vector<2x7x8x128xf32> to vector<112x128xf32>
    %c0_194 = arith.constant 0 : index
    %c640_195 = arith.constant 640 : index
    %124 = vector.load %arg14[%c0_194, %c640_195] : memref<112x1152xf32, #tpu.memory_space<vmem>>, vector<112x128xf32>
    tpu.vector_store %arg14[%c0_194, %c640_195], %123 {strides = array<i32>} : memref<112x1152xf32, #tpu.memory_space<vmem>>, vector<112x128xf32>,
    %c0_196 = arith.constant 0 : index
    %c2_197 = arith.constant 2 : index
    %c0_198 = arith.constant 0 : index
    %c0_199 = arith.constant 0 : index
    %125 = vector.load %arg13[%c0_196, %c2_197, %c0_198, %c0_199] : memref<2x9x10x128xf32, #tpu.memory_space<vmem>>, vector<2x7x8x128xf32>
    %126 = vector.shape_cast %125 : vector<2x7x8x128xf32> to vector<112x128xf32>
    %c0_200 = arith.constant 0 : index
    %c768_201 = arith.constant 768 : index
    %127 = vector.load %arg14[%c0_200, %c768_201] : memref<112x1152xf32, #tpu.memory_space<vmem>>, vector<112x128xf32>
    tpu.vector_store %arg14[%c0_200, %c768_201], %126 {strides = array<i32>} : memref<112x1152xf32, #tpu.memory_space<vmem>>, vector<112x128xf32>,
    %c0_202 = arith.constant 0 : index
    %c2_203 = arith.constant 2 : index
    %c1_204 = arith.constant 1 : index
    %c0_205 = arith.constant 0 : index
    %128 = vector.load %arg13[%c0_202, %c2_203, %c1_204, %c0_205] : memref<2x9x10x128xf32, #tpu.memory_space<vmem>>, vector<2x7x8x128xf32>
    %129 = vector.shape_cast %128 : vector<2x7x8x128xf32> to vector<112x128xf32>
    %c0_206 = arith.constant 0 : index
    %c896_207 = arith.constant 896 : index
    %130 = vector.load %arg14[%c0_206, %c896_207] : memref<112x1152xf32, #tpu.memory_space<vmem>>, vector<112x128xf32>
    tpu.vector_store %arg14[%c0_206, %c896_207], %129 {strides = array<i32>} : memref<112x1152xf32, #tpu.memory_space<vmem>>, vector<112x128xf32>,
    %c0_208 = arith.constant 0 : index
    %c2_209 = arith.constant 2 : index
    %c2_210 = arith.constant 2 : index
    %c0_211 = arith.constant 0 : index
    %131 = vector.load %arg13[%c0_208, %c2_209, %c2_210, %c0_211] : memref<2x9x10x128xf32, #tpu.memory_space<vmem>>, vector<2x7x8x128xf32>
    %132 = vector.shape_cast %131 : vector<2x7x8x128xf32> to vector<112x128xf32>
    %c0_212 = arith.constant 0 : index
    %c1024_213 = arith.constant 1024 : index
    %133 = vector.load %arg14[%c0_212, %c1024_213] : memref<112x1152xf32, #tpu.memory_space<vmem>>, vector<112x128xf32>
    tpu.vector_store %arg14[%c0_212, %c1024_213], %132 {strides = array<i32>} : memref<112x1152xf32, #tpu.memory_space<vmem>>, vector<112x128xf32>,
    %c0_214 = arith.constant 0 : index
    %c0_215 = arith.constant 0 : index
    %134 = vector.load %arg14[%c0_214, %c0_215] : memref<112x1152xf32, #tpu.memory_space<vmem>>, vector<112x1152xf32>
    %135 = arith.truncf %134 : vector<112x1152xf32> to vector<112x1152xbf16>
    %c0_216 = arith.constant 0 : index
    %c0_217 = arith.constant 0 : index
    %136 = vector.load %arg6[%c0_216, %c0_217] : memref<1152x128xbf16, #tpu.memory_space<vmem>>, vector<1152x128xbf16>
    %cst_218 = arith.constant dense<0.000000e+00> : vector<112x128xf32>
    %137 = tpu.matmul %135, %136, %cst_218 {dimension_numbers = #tpu.dot_dimension_numbers<[1], [0], [0], [1], [0, 0, 1, 1], [], []>} : vector<112x1152xbf16>, vector<1152x128xbf16>, vector<112x128xf32> -> vector<112x128xf32>
    %c0_219 = arith.constant 0 : index
    %c0_220 = arith.constant 0 : index
    %138 = vector.load %arg7[%c0_219, %c0_220] : memref<2x128xf32, #tpu.memory_space<vmem>>, vector<1x128xf32>
    %139 = vector.broadcast %138 : vector<1x128xf32> to vector<112x128xf32>
    %140 = arith.mulf %137, %139 : vector<112x128xf32>
    %c1_221 = arith.constant 1 : index
    %c0_222 = arith.constant 0 : index
    %141 = vector.load %arg7[%c1_221, %c0_222] : memref<2x128xf32, #tpu.memory_space<vmem>>, vector<1x128xf32>
    %142 = vector.broadcast %141 : vector<1x128xf32> to vector<112x128xf32>
    %143 = arith.addf %140, %142 : vector<112x128xf32>
    %cst_223 = arith.constant 0.000000e+00 : f32
    %144 = vector.broadcast %cst_223 : f32 to vector<112x128xf32>
    %145 = arith.maximumf %143, %144 : vector<112x128xf32>
    %146 = vector.shape_cast %145 : vector<112x128xf32> to vector<2x56x128xf32>
    %cst_224 = arith.constant dense<0.000000e+00> : vector<2x128xf32>
    %147 = vector.multi_reduction <add>, %146, %cst_224 [1] : vector<2x56x128xf32> to vector<2x128xf32>
    %cst_225 = arith.constant 5.600000e+01 : f32
    %148 = vector.broadcast %cst_225 : f32 to vector<2x128xf32>
    %149 = arith.divf %147, %148 : vector<2x128xf32>
    %150 = arith.truncf %149 : vector<2x128xf32> to vector<2x128xbf16>
    %c0_226 = arith.constant 0 : index
    %c0_227 = arith.constant 0 : index
    %151 = vector.load %arg8[%c0_226, %c0_227] : memref<128x256xbf16, #tpu.memory_space<vmem>>, vector<128x256xbf16>
    %cst_228 = arith.constant dense<0.000000e+00> : vector<2x256xf32>
    %152 = tpu.matmul %150, %151, %cst_228 {dimension_numbers = #tpu.dot_dimension_numbers<[1], [0], [0], [1], [0, 0, 1, 1], [], []>} : vector<2x128xbf16>, vector<128x256xbf16>, vector<2x256xf32> -> vector<2x256xf32>
    %c0_229 = arith.constant 0 : index
    %c0_230 = arith.constant 0 : index
    %153 = vector.load %arg9[%c0_229, %c0_230] : memref<1x256xf32, #tpu.memory_space<vmem>>, vector<1x256xf32>
    %154 = vector.broadcast %153 : vector<1x256xf32> to vector<2x256xf32>
    %155 = arith.addf %152, %154 : vector<2x256xf32>
    %cst_231 = arith.constant 0.000000e+00 : f32
    %156 = vector.broadcast %cst_231 : f32 to vector<2x256xf32>
    %157 = arith.maximumf %155, %156 : vector<2x256xf32>
    %158 = arith.truncf %157 : vector<2x256xf32> to vector<2x256xbf16>
    %c0_232 = arith.constant 0 : index
    %c0_233 = arith.constant 0 : index
    %159 = vector.load %arg10[%c0_232, %c0_233] : memref<256x128xbf16, #tpu.memory_space<vmem>>, vector<256x128xbf16>
    %cst_234 = arith.constant dense<0.000000e+00> : vector<2x128xf32>
    %160 = tpu.matmul %158, %159, %cst_234 {dimension_numbers = #tpu.dot_dimension_numbers<[1], [0], [0], [1], [0, 0, 1, 1], [], []>} : vector<2x256xbf16>, vector<256x128xbf16>, vector<2x128xf32> -> vector<2x128xf32>
    %c0_235 = arith.constant 0 : index
    %c0_236 = arith.constant 0 : index
    %161 = vector.load %arg11[%c0_235, %c0_236] : memref<1x128xf32, #tpu.memory_space<vmem>>, vector<1x128xf32>
    %162 = vector.broadcast %161 : vector<1x128xf32> to vector<2x128xf32>
    %163 = arith.addf %160, %162 : vector<2x128xf32>
    %c0_237 = arith.constant 0 : index
    %c0_238 = arith.constant 0 : index
    %164 = vector.load %arg12[%c0_237, %c0_238] : memref<2x128xf32, #tpu.memory_space<vmem>>, vector<2x128xf32>
    tpu.vector_store %arg12[%c0_237, %c0_238], %163 {strides = array<i32>} : memref<2x128xf32, #tpu.memory_space<vmem>>, vector<2x128xf32>,
    return
  }
  func.func @transform_0(%arg0: i32) -> (i32, i32, i32, i32) {
    %c0_i32 = arith.constant 0 : i32
    %c0_i32_0 = arith.constant 0 : i32
    %c0_i32_1 = arith.constant 0 : i32
    %c0_i32_2 = arith.constant 0 : i32
    return %arg0, %c0_i32, %c0_i32_0, %c0_i32_1 : i32, i32, i32, i32
  }
  func.func @transform_1(%arg0: i32) -> (i32, i32) {
    %c0_i32 = arith.constant 0 : i32
    %c0_i32_0 = arith.constant 0 : i32
    %c0_i32_1 = arith.constant 0 : i32
    return %c0_i32, %c0_i32_0 : i32, i32
  }
  func.func @transform_2(%arg0: i32) -> (i32, i32) {
    %c0_i32 = arith.constant 0 : i32
    %c0_i32_0 = arith.constant 0 : i32
    %c0_i32_1 = arith.constant 0 : i32
    return %c0_i32, %c0_i32_0 : i32, i32
  }
  func.func @transform_3(%arg0: i32) -> (i32, i32) {
    %c0_i32 = arith.constant 0 : i32
    %c0_i32_0 = arith.constant 0 : i32
    %c0_i32_1 = arith.constant 0 : i32
    return %c0_i32, %c0_i32_0 : i32, i32
  }
  func.func @transform_4(%arg0: i32) -> (i32, i32) {
    %c0_i32 = arith.constant 0 : i32
    %c0_i32_0 = arith.constant 0 : i32
    %c0_i32_1 = arith.constant 0 : i32
    return %c0_i32, %c0_i32_0 : i32, i32
  }
  func.func @transform_5(%arg0: i32) -> (i32, i32) {
    %c0_i32 = arith.constant 0 : i32
    %c0_i32_0 = arith.constant 0 : i32
    %c0_i32_1 = arith.constant 0 : i32
    return %c0_i32, %c0_i32_0 : i32, i32
  }
  func.func @transform_6(%arg0: i32) -> (i32, i32) {
    %c0_i32 = arith.constant 0 : i32
    %c0_i32_0 = arith.constant 0 : i32
    %c0_i32_1 = arith.constant 0 : i32
    return %c0_i32, %c0_i32_0 : i32, i32
  }
  func.func @transform_7(%arg0: i32) -> (i32, i32) {
    %c0_i32 = arith.constant 0 : i32
    %c0_i32_0 = arith.constant 0 : i32
    %c0_i32_1 = arith.constant 0 : i32
    return %c0_i32, %c0_i32_0 : i32, i32
  }
  func.func @transform_8(%arg0: i32) -> (i32, i32) {
    %c0_i32 = arith.constant 0 : i32
    %c0_i32_0 = arith.constant 0 : i32
    %c0_i32_1 = arith.constant 0 : i32
    return %c0_i32, %c0_i32_0 : i32, i32
  }
  func.func @transform_9(%arg0: i32) -> (i32, i32) {
    %c0_i32 = arith.constant 0 : i32
    %c0_i32_0 = arith.constant 0 : i32
    %c0_i32_1 = arith.constant 0 : i32
    return %c0_i32, %c0_i32_0 : i32, i32
  }
  func.func @transform_10(%arg0: i32) -> (i32, i32) {
    %c0_i32 = arith.constant 0 : i32
    %c0_i32_0 = arith.constant 0 : i32
    %c0_i32_1 = arith.constant 0 : i32
    return %c0_i32, %c0_i32_0 : i32, i32
  }
  func.func @transform_11(%arg0: i32) -> (i32, i32) {
    %c0_i32 = arith.constant 0 : i32
    %c0_i32_0 = arith.constant 0 : i32
    return %arg0, %c0_i32 : i32, i32
  }
}

</mosaic_0001>

<llo_original>
// kernel: connect4_forward.1
$region0: #{connect4_forward.1}
  #allocation0 [shape = 'u32[]', space=smem, size = 0x4, offset = 0x4, fixed_abs, tag = 'smem constant byte address 0x4 - core index']
  #allocation1 [shape = 'u32[144,128]{1,0:T(1,128)}', space=vmem, size = 0x12000, scoped, tag = 'internal scratch']
  #allocation2 [shape = 'f32[2,9,10,128]{3,2,1,0:T(8,128)}', space=vmem, size = 0x24000, scoped, tag = 'scratch operand']
  #allocation3 [shape = 'f32[112,1152]{1,0:T(8,128)}', space=vmem, size = 0x7e000, scoped, tag = 'scratch operand']
  %s0 = inlined_call_operand.vmem [shape: f32[2,10,11,8], index: 0, kind: input, shape index: {}]
  %s1 = inlined_call_operand.vmem [shape: bf16[128,128], index: 1, kind: input, shape index: {}]
  %s2 = inlined_call_operand.vmem [shape: f32[2,128], index: 2, kind: input, shape index: {}]
  %s3 = inlined_call_operand.hbm [shape: bf16[1152,128], index: 3, kind: input, shape index: {}]
  %s4 = inlined_call_operand.vmem [shape: f32[2,128], index: 4, kind: input, shape index: {}]
  %s5 = inlined_call_operand.hbm [shape: bf16[1152,128], index: 5, kind: input, shape index: {}]
  %s6 = inlined_call_operand.vmem [shape: f32[2,128], index: 6, kind: input, shape index: {}]
  %s7 = inlined_call_operand.vmem [shape: bf16[128,256], index: 7, kind: input, shape index: {}]
  %s8 = inlined_call_operand.vmem [shape: f32[1,256], index: 8, kind: input, shape index: {}]
  %s9 = inlined_call_operand.vmem [shape: bf16[256,128], index: 9, kind: input, shape index: {}]
  %s10 = inlined_call_operand.vmem [shape: f32[1,128], index: 10, kind: input, shape index: {}]
  %s11 = inlined_call_operand.vmem [shape: f32[2,128], index: 11, kind: output, shape index: {}]
  %s12 = sld [smem:[#allocation0]]
  $region62: #{connect4_forward.1} parent=0
    _
  %s14 = ssub.s32 1, %s12
  %s15 = scalar_select 0, %s14, %s12
  $region1: #{connect4_forward.1} parent=0
    #allocation4 [shape = 'u8[294912]{0}', space=vmem, size = 0x48000, scoped, tag = 'input window, operand 3, single buffered']
    #allocation5 [shape = 's32[1]{0}', space=sflag, size = 0x4, scoped, tag = 'scoped memory for connect4_forward.1']
    #allocation6 [shape = 'u8[294912]{0}', space=vmem, size = 0x48000, scoped, tag = 'input window, operand 5, single buffered']
    #allocation7 [shape = 's32[1]{0}', space=sflag, size = 0x4, scoped, tag = 'scoped memory for connect4_forward.1']
    %16 = vsyncpa [#allocation5], 0
    %17 = vsyncpa [#allocation7], 0
    // Predicated region
    $region2: #{connect4_forward.1} parent=1 // pred_check
      _
    $region3: #{connect4_forward.1} parent=1 // pred_check_branch
      %19 = sbr.rel (0) target = $region5
    $region4: #{connect4_forward.1} parent=1 // pred_region
      _
    $region5: #{connect4_forward.1} parent=1 // pred_fallthru
      _
    // Predicated region
    $region6: #{connect4_forward.1} parent=1 // pred_check
      _
    $region7: #{connect4_forward.1} parent=1 // pred_check_branch
      %21 = sbr.rel (0) target = $region9
    $region8: #{connect4_forward.1} parent=1 // pred_region
      _
    $region9: #{connect4_forward.1} parent=1 // pred_fallthru
      _
    // Predicated region
    $region10: #{connect4_forward.1} parent=1 // pred_check
      _
    $region11: #{connect4_forward.1} parent=1 // pred_check_branch
      %23 = sbr.rel (0) target = $region13
    $region12: #{connect4_forward.1} parent=1 // pred_region
      _
    $region13: #{connect4_forward.1} parent=1 // pred_fallthru
      _
    // Predicated region
    $region14: #{connect4_forward.1} parent=1 // pred_check
      _
    $region15: #{connect4_forward.1} parent=1 // pred_check_branch
      %25 = sbr.rel (0) target = $region17
    $region16: #{connect4_forward.1} parent=1 // pred_region
      %s27 = ssub.s32 9216, 9216
      %28 = vsyncadd [#allocation5], %s27
      %s29 = sshll.u32 [#allocation4], 4
      %s30 = int_to_ptr.vmem [resolvable:$true] %s29
      %35 = dma.hbm_to_vmem [thread:$0]  %s3, 9216, %s30, [#allocation5], 64, 64, 4
    $region17: #{connect4_forward.1} parent=1 // pred_fallthru
      _
    // Predicated region
    $region18: #{connect4_forward.1} parent=1 // pred_check
      _
    $region19: #{connect4_forward.1} parent=1 // pred_check_branch
      %37 = sbr.rel (0) target = $region21
    $region20: #{connect4_forward.1} parent=1 // pred_region
      _
    $region21: #{connect4_forward.1} parent=1 // pred_fallthru
      _
    // Predicated region
    $region22: #{connect4_forward.1} parent=1 // pred_check
      _
    $region23: #{connect4_forward.1} parent=1 // pred_check_branch
      %39 = sbr.rel (0) target = $region25
    $region24: #{connect4_forward.1} parent=1 // pred_region
      %s41 = ssub.s32 9216, 9216
      %42 = vsyncadd [#allocation7], %s41
      %s43 = sshll.u32 [#allocation6], 4
      %s44 = int_to_ptr.vmem [resolvable:$true] %s43
      %49 = dma.hbm_to_vmem [thread:$0]  %s5, 9216, %s44, [#allocation7], 64, 64, 4
    $region25: #{connect4_forward.1} parent=1 // pred_fallthru
      _
    // Predicated region
    $region26: #{connect4_forward.1} parent=1 // pred_check
      _
    $region27: #{connect4_forward.1} parent=1 // pred_check_branch
      %51 = sbr.rel (0) target = $region29
    $region28: #{connect4_forward.1} parent=1 // pred_region
      _
    $region29: #{connect4_forward.1} parent=1 // pred_fallthru
      _
    // Predicated region
    $region30: #{connect4_forward.1} parent=1 // pred_check
      _
    $region31: #{connect4_forward.1} parent=1 // pred_check_branch
      %53 = sbr.rel (0) target = $region33
    $region32: #{connect4_forward.1} parent=1 // pred_region
      _
    $region33: #{connect4_forward.1} parent=1 // pred_fallthru
      _
    // Predicated region
    $region34: #{connect4_forward.1} parent=1 // pred_check
      _
    $region35: #{connect4_forward.1} parent=1 // pred_check_branch
      %55 = sbr.rel (0) target = $region37
    $region36: #{connect4_forward.1} parent=1 // pred_region
      _
    $region37: #{connect4_forward.1} parent=1 // pred_fallthru
      _
    // Predicated region
    $region38: #{connect4_forward.1} parent=1 // pred_check
      _
    $region39: #{connect4_forward.1} parent=1 // pred_check_branch
      %57 = sbr.rel (0) target = $region41
    $region40: #{connect4_forward.1} parent=1 // pred_region
      _
    $region41: #{connect4_forward.1} parent=1 // pred_fallthru
      _
    // Predicated region
    $region42: #{connect4_forward.1} parent=1 // pred_check
      _
    $region43: #{connect4_forward.1} parent=1 // pred_check_branch
      %59 = sbr.rel (0) target = $region45
    $region44: #{connect4_forward.1} parent=1 // pred_region
      _
    $region45: #{connect4_forward.1} parent=1 // pred_fallthru
      _
    // Predicated region
    $region46: #{connect4_forward.1} parent=1 // pred_check
      _
    $region47: #{connect4_forward.1} parent=1 // pred_check_branch
      %61 = sbr.rel (0) target = $region49
    $region48: #{connect4_forward.1} parent=1 // pred_region
      %62 = dma.done [#allocation5], 9216
    $region49: #{connect4_forward.1} parent=1 // pred_fallthru
      _
    // Predicated region
    $region50: #{connect4_forward.1} parent=1 // pred_check
      _
    $region51: #{connect4_forward.1} parent=1 // pred_check_branch
      %64 = sbr.rel (0) target = $region53
    $region52: #{connect4_forward.1} parent=1 // pred_region
      %65 = dma.done [#allocation7], 9216
    $region53: #{connect4_forward.1} parent=1 // pred_fallthru
      _
    %v67 = vld [vmem:[%s0] sm:$0xff]
    %v68 = vld [vmem:[%s0 + $0x10] sm:$0xff]
    %v69 = vld [vmem:[%s0 + $0x20] sm:$0xff]
    %v70 = vld [vmem:[%s0 + $0x30] sm:$0xff]
    %v71 = vld [vmem:[%s0 + $0x40] sm:$0xff]
    %v72 = vld [vmem:[%s0 + $0x50] sm:$0xff]
    %v73 = vld [vmem:[%s0 + $0x60] sm:$0xff]
    %v74 = vld [vmem:[%s0 + $0xa0] sm:$0xff]
    %v75 = vld [vmem:[%s0 + $0xb0] sm:$0xff]
    %v76 = vld [vmem:[%s0 + $0xc0] sm:$0xff]
    %v77 = vld [vmem:[%s0 + $0xd0] sm:$0xff]
    %v78 = vld [vmem:[%s0 + $0xe0] sm:$0xff]
    %v79 = vld [vmem:[%s0 + $0xf0] sm:$0xff]
    %v80 = vld [vmem:[%s0 + $0x100] sm:$0xff]
    %vm81 = vcmask 64512
    %82 = vst.msk [vmem:[#allocation3] sm:$0xff] %vm81, %v67
    %83 = vst.msk [vmem:[#allocation3 + $0x48] sm:$0xff] %vm81, %v68
    %84 = vst.msk [vmem:[#allocation3 + $0x90] sm:$0xff] %vm81, %v69
    %85 = vst.msk [vmem:[#allocation3 + $0xd8] sm:$0xff] %vm81, %v70
    %86 = vst.msk [vmem:[#allocation3 + $0x120] sm:$0xff] %vm81, %v71
    %87 = vst.msk [vmem:[#allocation3 + $0x168] sm:$0xff] %vm81, %v72
    %88 = vst.msk [vmem:[#allocation3 + $0x1b0] sm:$0xff] %vm81, %v73
    %89 = vst.msk [vmem:[#allocation3 + $0x1f8] sm:$0xff] %vm81, %v74
    %90 = vst.msk [vmem:[#allocation3 + $0x240] sm:$0xff] %vm81, %v75
    %91 = vst.msk [vmem:[#allocation3 + $0x288] sm:$0xff] %vm81, %v76
    %92 = vst.msk [vmem:[#allocation3 + $0x2d0] sm:$0xff] %vm81, %v77
    %93 = vst.msk [vmem:[#allocation3 + $0x318] sm:$0xff] %vm81, %v78
    %94 = vst.msk [vmem:[#allocation3 + $0x360] sm:$0xff] %vm81, %v79
    %95 = vst.msk [vmem:[#allocation3 + $0x3a8] sm:$0xff] %vm81, %v80
    %v96 = vld [vmem:[%s0 + $0x1] sm:$0xff]
    %v97 = vld [vmem:[%s0 + $0x11] sm:$0xff]
    %v98 = vld [vmem:[%s0 + $0x21] sm:$0xff]
    %v99 = vld [vmem:[%s0 + $0x31] sm:$0xff]
    %v100 = vld [vmem:[%s0 + $0x41] sm:$0xff]
    %v101 = vld [vmem:[%s0 + $0x51] sm:$0xff]
    %v102 = vld [vmem:[%s0 + $0x61] sm:$0xff]
    %v103 = vld [vmem:[%s0 + $0xa1] sm:$0xff]
    %v104 = vld [vmem:[%s0 + $0xb1] sm:$0xff]
    %v105 = vld [vmem:[%s0 + $0xc1] sm:$0xff]
    %v106 = vld [vmem:[%s0 + $0xd1] sm:$0xff]
    %v107 = vld [vmem:[%s0 + $0xe1] sm:$0xff]
    %v108 = vld [vmem:[%s0 + $0xf1] sm:$0xff]
    %v109 = vld [vmem:[%s0 + $0x101] sm:$0xff]
    %124 = vrot.lane.b32.xlu0 %v96, 8
    %v125 = vpop.permute.xlu0 %124
    %126 = vrot.lane.b32.xlu0 %v97, 8
    %v127 = vpop.permute.xlu0 %126
    %128 = vrot.lane.b32.xlu0 %v98, 8
    %v129 = vpop.permute.xlu0 %128
    %130 = vrot.lane.b32.xlu0 %v99, 8
    %v131 = vpop.permute.xlu0 %130
    %132 = vrot.lane.b32.xlu0 %v100, 8
    %v133 = vpop.permute.xlu0 %132
    %134 = vrot.lane.b32.xlu0 %v101, 8
    %v135 = vpop.permute.xlu0 %134
    %136 = vrot.lane.b32.xlu0 %v102, 8
    %v137 = vpop.permute.xlu0 %136
    %138 = vrot.lane.b32.xlu0 %v103, 8
    %v139 = vpop.permute.xlu0 %138
    %140 = vrot.lane.b32.xlu0 %v104, 8
    %v141 = vpop.permute.xlu0 %140
    %142 = vrot.lane.b32.xlu0 %v105, 8
    %v143 = vpop.permute.xlu0 %142
    %144 = vrot.lane.b32.xlu0 %v106, 8
    %v145 = vpop.permute.xlu0 %144
    %146 = vrot.lane.b32.xlu0 %v107, 8
    %v147 = vpop.permute.xlu0 %146
    %148 = vrot.lane.b32.xlu0 %v108, 8
    %v149 = vpop.permute.xlu0 %148
    %150 = vrot.lane.b32.xlu0 %v109, 8
    %v151 = vpop.permute.xlu0 %150
    %vm166 = vcmask 130112
    %167 = vst.msk [vmem:[#allocation3] sm:$0xff] %vm166, %v125
    %168 = vst.msk [vmem:[#allocation3 + $0x48] sm:$0xff] %vm166, %v127
    %169 = vst.msk [vmem:[#allocation3 + $0x90] sm:$0xff] %vm166, %v129
    %170 = vst.msk [vmem:[#allocation3 + $0xd8] sm:$0xff] %vm166, %v131
    %171 = vst.msk [vmem:[#allocation3 + $0x120] sm:$0xff] %vm166, %v133
    %172 = vst.msk [vmem:[#allocation3 + $0x168] sm:$0xff] %vm166, %v135
    %173 = vst.msk [vmem:[#allocation3 + $0x1b0] sm:$0xff] %vm166, %v137
    %174 = vst.msk [vmem:[#allocation3 + $0x1f8] sm:$0xff] %vm166, %v139
    %175 = vst.msk [vmem:[#allocation3 + $0x240] sm:$0xff] %vm166, %v141
    %176 = vst.msk [vmem:[#allocation3 + $0x288] sm:$0xff] %vm166, %v143
    %177 = vst.msk [vmem:[#allocation3 + $0x2d0] sm:$0xff] %vm166, %v145
    %178 = vst.msk [vmem:[#allocation3 + $0x318] sm:$0xff] %vm166, %v147
    %179 = vst.msk [vmem:[#allocation3 + $0x360] sm:$0xff] %vm166, %v149
    %180 = vst.msk [vmem:[#allocation3 + $0x3a8] sm:$0xff] %vm166, %v151
    %v181 = vld [vmem:[%s0 + $0x2] sm:$0xff]
    %v182 = vld [vmem:[%s0 + $0x12] sm:$0xff]
    %v183 = vld [vmem:[%s0 + $0x22] sm:$0xff]
    %v184 = vld [vmem:[%s0 + $0x32] sm:$0xff]
    %v185 = vld [vmem:[%s0 + $0x42] sm:$0xff]
    %v186 = vld [vmem:[%s0 + $0x52] sm:$0xff]
    %v187 = vld [vmem:[%s0 + $0x62] sm:$0xff]
    %v188 = vld [vmem:[%s0 + $0xa2] sm:$0xff]
    %v189 = vld [vmem:[%s0 + $0xb2] sm:$0xff]
    %v190 = vld [vmem:[%s0 + $0xc2] sm:$0xff]
    %v191 = vld [vmem:[%s0 + $0xd2] sm:$0xff]
    %v192 = vld [vmem:[%s0 + $0xe2] sm:$0xff]
    %v193 = vld [vmem:[%s0 + $0xf2] sm:$0xff]
    %v194 = vld [vmem:[%s0 + $0x102] sm:$0xff]
    %209 = vrot.lane.b32.xlu0 %v181, 16
    %v210 = vpop.permute.xlu0 %209
    %211 = vrot.lane.b32.xlu0 %v182, 16
    %v212 = vpop.permute.xlu0 %211
    %213 = vrot.lane.b32.xlu0 %v183, 16
    %v214 = vpop.permute.xlu0 %213
    %215 = vrot.lane.b32.xlu0 %v184, 16
    %v216 = vpop.permute.xlu0 %215
    %217 = vrot.lane.b32.xlu0 %v185, 16
    %v218 = vpop.permute.xlu0 %217
    %219 = vrot.lane.b32.xlu0 %v186, 16
    %v220 = vpop.permute.xlu0 %219
    %221 = vrot.lane.b32.xlu0 %v187, 16
    %v222 = vpop.permute.xlu0 %221
    %223 = vrot.lane.b32.xlu0 %v188, 16
    %v224 = vpop.permute.xlu0 %223
    %225 = vrot.lane.b32.xlu0 %v189, 16
    %v226 = vpop.permute.xlu0 %225
    %227 = vrot.lane.b32.xlu0 %v190, 16
    %v228 = vpop.permute.xlu0 %227
    %229 = vrot.lane.b32.xlu0 %v191, 16
    %v230 = vpop.permute.xlu0 %229
    %231 = vrot.lane.b32.xlu0 %v192, 16
    %v232 = vpop.permute.xlu0 %231
    %233 = vrot.lane.b32.xlu0 %v193, 16
    %v234 = vpop.permute.xlu0 %233
    %235 = vrot.lane.b32.xlu0 %v194, 16
    %v236 = vpop.permute.xlu0 %235
    %vm251 = vcmask 195712
    %252 = vst.msk [vmem:[#allocation3] sm:$0xff] %vm251, %v210
    %253 = vst.msk [vmem:[#allocation3 + $0x48] sm:$0xff] %vm251, %v212
    %254 = vst.msk [vmem:[#allocation3 + $0x90] sm:$0xff] %vm251, %v214
    %255 = vst.msk [vmem:[#allocation3 + $0xd8] sm:$0xff] %vm251, %v216
    %256 = vst.msk [vmem:[#allocation3 + $0x120] sm:$0xff] %vm251, %v218
    %257 = vst.msk [vmem:[#allocation3 + $0x168] sm:$0xff] %vm251, %v220
    %258 = vst.msk [vmem:[#allocation3 + $0x1b0] sm:$0xff] %vm251, %v222
    %259 = vst.msk [vmem:[#allocation3 + $0x1f8] sm:$0xff] %vm251, %v224
    %260 = vst.msk [vmem:[#allocation3 + $0x240] sm:$0xff] %vm251, %v226
    %261 = vst.msk [vmem:[#allocation3 + $0x288] sm:$0xff] %vm251, %v228
    %262 = vst.msk [vmem:[#allocation3 + $0x2d0] sm:$0xff] %vm251, %v230
    %263 = vst.msk [vmem:[#allocation3 + $0x318] sm:$0xff] %vm251, %v232
    %264 = vst.msk [vmem:[#allocation3 + $0x360] sm:$0xff] %vm251, %v234
    %265 = vst.msk [vmem:[#allocation3 + $0x3a8] sm:$0xff] %vm251, %v236
    %v266 = vld [vmem:[%s0 + $0x3] sm:$0xff]
    %v267 = vld [vmem:[%s0 + $0x13] sm:$0xff]
    %v268 = vld [vmem:[%s0 + $0x23] sm:$0xff]
    %v269 = vld [vmem:[%s0 + $0x33] sm:$0xff]
    %v270 = vld [vmem:[%s0 + $0x43] sm:$0xff]
    %v271 = vld [vmem:[%s0 + $0x53] sm:$0xff]
    %v272 = vld [vmem:[%s0 + $0x63] sm:$0xff]
    %v273 = vld [vmem:[%s0 + $0xa3] sm:$0xff]
    %v274 = vld [vmem:[%s0 + $0xb3] sm:$0xff]
    %v275 = vld [vmem:[%s0 + $0xc3] sm:$0xff]
    %v276 = vld [vmem:[%s0 + $0xd3] sm:$0xff]
    %v277 = vld [vmem:[%s0 + $0xe3] sm:$0xff]
    %v278 = vld [vmem:[%s0 + $0xf3] sm:$0xff]
    %v279 = vld [vmem:[%s0 + $0x103] sm:$0xff]
    %294 = vrot.lane.b32.xlu0 %v266, 24
    %v295 = vpop.permute.xlu0 %294
    %296 = vrot.lane.b32.xlu0 %v267, 24
    %v297 = vpop.permute.xlu0 %296
    %298 = vrot.lane.b32.xlu0 %v268, 24
    %v299 = vpop.permute.xlu0 %298
    %300 = vrot.lane.b32.xlu0 %v269, 24
    %v301 = vpop.permute.xlu0 %300
    %302 = vrot.lane.b32.xlu0 %v270, 24
    %v303 = vpop.permute.xlu0 %302
    %304 = vrot.lane.b32.xlu0 %v271, 24
    %v305 = vpop.permute.xlu0 %304
    %306 = vrot.lane.b32.xlu0 %v272, 24
    %v307 = vpop.permute.xlu0 %306
    %308 = vrot.lane.b32.xlu0 %v273, 24
    %v309 = vpop.permute.xlu0 %308
    %310 = vrot.lane.b32.xlu0 %v274, 24
    %v311 = vpop.permute.xlu0 %310
    %312 = vrot.lane.b32.xlu0 %v275, 24
    %v313 = vpop.permute.xlu0 %312
    %314 = vrot.lane.b32.xlu0 %v276, 24
    %v315 = vpop.permute.xlu0 %314
    %316 = vrot.lane.b32.xlu0 %v277, 24
    %v317 = vpop.permute.xlu0 %316
    %318 = vrot.lane.b32.xlu0 %v278, 24
    %v319 = vpop.permute.xlu0 %318
    %320 = vrot.lane.b32.xlu0 %v279, 24
    %v321 = vpop.permute.xlu0 %320
    %vm336 = vcmask 261312
    %337 = vst.msk [vmem:[#allocation3] sm:$0xff] %vm336, %v295
    %338 = vst.msk [vmem:[#allocation3 + $0x48] sm:$0xff] %vm336, %v297
    %339 = vst.msk [vmem:[#allocation3 + $0x90] sm:$0xff] %vm336, %v299
    %340 = vst.msk [vmem:[#allocation3 + $0xd8] sm:$0xff] %vm336, %v301
    %341 = vst.msk [vmem:[#allocation3 + $0x120] sm:$0xff] %vm336, %v303
    %342 = vst.msk [vmem:[#allocation3 + $0x168] sm:$0xff] %vm336, %v305
    %343 = vst.msk [vmem:[#allocation3 + $0x1b0] sm:$0xff] %vm336, %v307
    %344 = vst.msk [vmem:[#allocation3 + $0x1f8] sm:$0xff] %vm336, %v309
    %345 = vst.msk [vmem:[#allocation3 + $0x240] sm:$0xff] %vm336, %v311
    %346 = vst.msk [vmem:[#allocation3 + $0x288] sm:$0xff] %vm336, %v313
    %347 = vst.msk [vmem:[#allocation3 + $0x2d0] sm:$0xff] %vm336, %v315
    %348 = vst.msk [vmem:[#allocation3 + $0x318] sm:$0xff] %vm336, %v317
    %349 = vst.msk [vmem:[#allocation3 + $0x360] sm:$0xff] %vm336, %v319
    %350 = vst.msk [vmem:[#allocation3 + $0x3a8] sm:$0xff] %vm336, %v321
    %s351 = scalar_lea.vmem %s0, 16
    %v352 = vld [vmem:[%s351] sm:$0xff]
    %v353 = vld [vmem:[%s351 + $0x10] sm:$0xff]
    %v354 = vld [vmem:[%s351 + $0x20] sm:$0xff]
    %v355 = vld [vmem:[%s351 + $0x30] sm:$0xff]
    %v356 = vld [vmem:[%s351 + $0x40] sm:$0xff]
    %v357 = vld [vmem:[%s351 + $0x50] sm:$0xff]
    %v358 = vld [vmem:[%s351 + $0x60] sm:$0xff]
    %v359 = vld [vmem:[%s351 + $0xa0] sm:$0xff]
    %v360 = vld [vmem:[%s351 + $0xb0] sm:$0xff]
    %v361 = vld [vmem:[%s351 + $0xc0] sm:$0xff]
    %v362 = vld [vmem:[%s351 + $0xd0] sm:$0xff]
    %v363 = vld [vmem:[%s351 + $0xe0] sm:$0xff]
    %v364 = vld [vmem:[%s351 + $0xf0] sm:$0xff]
    %v365 = vld [vmem:[%s351 + $0x100] sm:$0xff]
    %380 = vrot.lane.b32.xlu0 %v352, 32
    %v381 = vpop.permute.xlu0 %380
    %382 = vrot.lane.b32.xlu0 %v353, 32
    %v383 = vpop.permute.xlu0 %382
    %384 = vrot.lane.b32.xlu0 %v354, 32
    %v385 = vpop.permute.xlu0 %384
    %386 = vrot.lane.b32.xlu0 %v355, 32
    %v387 = vpop.permute.xlu0 %386
    %388 = vrot.lane.b32.xlu0 %v356, 32
    %v389 = vpop.permute.xlu0 %388
    %390 = vrot.lane.b32.xlu0 %v357, 32
    %v391 = vpop.permute.xlu0 %390
    %392 = vrot.lane.b32.xlu0 %v358, 32
    %v393 = vpop.permute.xlu0 %392
    %394 = vrot.lane.b32.xlu0 %v359, 32
    %v395 = vpop.permute.xlu0 %394
    %396 = vrot.lane.b32.xlu0 %v360, 32
    %v397 = vpop.permute.xlu0 %396
    %398 = vrot.lane.b32.xlu0 %v361, 32
    %v399 = vpop.permute.xlu0 %398
    %400 = vrot.lane.b32.xlu0 %v362, 32
    %v401 = vpop.permute.xlu0 %400
    %402 = vrot.lane.b32.xlu0 %v363, 32
    %v403 = vpop.permute.xlu0 %402
    %404 = vrot.lane.b32.xlu0 %v364, 32
    %v405 = vpop.permute.xlu0 %404
    %406 = vrot.lane.b32.xlu0 %v365, 32
    %v407 = vpop.permute.xlu0 %406
    %vm422 = vcmask 326912
    %423 = vst.msk [vmem:[#allocation3] sm:$0xff] %vm422, %v381
    %424 = vst.msk [vmem:[#allocation3 + $0x48] sm:$0xff] %vm422, %v383
    %425 = vst.msk [vmem:[#allocation3 + $0x90] sm:$0xff] %vm422, %v385
    %426 = vst.msk [vmem:[#allocation3 + $0xd8] sm:$0xff] %vm422, %v387
    %427 = vst.msk [vmem:[#allocation3 + $0x120] sm:$0xff] %vm422, %v389
    %428 = vst.msk [vmem:[#allocation3 + $0x168] sm:$0xff] %vm422, %v391
    %429 = vst.msk [vmem:[#allocation3 + $0x1b0] sm:$0xff] %vm422, %v393
    %430 = vst.msk [vmem:[#allocation3 + $0x1f8] sm:$0xff] %vm422, %v395
    %431 = vst.msk [vmem:[#allocation3 + $0x240] sm:$0xff] %vm422, %v397
    %432 = vst.msk [vmem:[#allocation3 + $0x288] sm:$0xff] %vm422, %v399
    %433 = vst.msk [vmem:[#allocation3 + $0x2d0] sm:$0xff] %vm422, %v401
    %434 = vst.msk [vmem:[#allocation3 + $0x318] sm:$0xff] %vm422, %v403
    %435 = vst.msk [vmem:[#allocation3 + $0x360] sm:$0xff] %vm422, %v405
    %436 = vst.msk [vmem:[#allocation3 + $0x3a8] sm:$0xff] %vm422, %v407
    %v437 = vld [vmem:[%s351 + $0x1] sm:$0xff]
    %v438 = vld [vmem:[%s351 + $0x11] sm:$0xff]
    %v439 = vld [vmem:[%s351 + $0x21] sm:$0xff]
    %v440 = vld [vmem:[%s351 + $0x31] sm:$0xff]
    %v441 = vld [vmem:[%s351 + $0x41] sm:$0xff]
    %v442 = vld [vmem:[%s351 + $0x51] sm:$0xff]
    %v443 = vld [vmem:[%s351 + $0x61] sm:$0xff]
    %v444 = vld [vmem:[%s351 + $0xa1] sm:$0xff]
    %v445 = vld [vmem:[%s351 + $0xb1] sm:$0xff]
    %v446 = vld [vmem:[%s351 + $0xc1] sm:$0xff]
    %v447 = vld [vmem:[%s351 + $0xd1] sm:$0xff]
    %v448 = vld [vmem:[%s351 + $0xe1] sm:$0xff]
    %v449 = vld [vmem:[%s351 + $0xf1] sm:$0xff]
    %v450 = vld [vmem:[%s351 + $0x101] sm:$0xff]
    %465 = vrot.lane.b32.xlu0 %v437, 40
    %v466 = vpop.permute.xlu0 %465
    %467 = vrot.lane.b32.xlu0 %v438, 40
    %v468 = vpop.permute.xlu0 %467
    %469 = vrot.lane.b32.xlu0 %v439, 40
    %v470 = vpop.permute.xlu0 %469
    %471 = vrot.lane.b32.xlu0 %v440, 40
    %v472 = vpop.permute.xlu0 %471
    %473 = vrot.lane.b32.xlu0 %v441, 40
    %v474 = vpop.permute.xlu0 %473
    %475 = vrot.lane.b32.xlu0 %v442, 40
    %v476 = vpop.permute.xlu0 %475
    %477 = vrot.lane.b32.xlu0 %v443, 40
    %v478 = vpop.permute.xlu0 %477
    %479 = vrot.lane.b32.xlu0 %v444, 40
    %v480 = vpop.permute.xlu0 %479
    %481 = vrot.lane.b32.xlu0 %v445, 40
    %v482 = vpop.permute.xlu0 %481
    %483 = vrot.lane.b32.xlu0 %v446, 40
    %v484 = vpop.permute.xlu0 %483
    %485 = vrot.lane.b32.xlu0 %v447, 40
    %v486 = vpop.permute.xlu0 %485
    %487 = vrot.lane.b32.xlu0 %v448, 40
    %v488 = vpop.permute.xlu0 %487
    %489 = vrot.lane.b32.xlu0 %v449, 40
    %v490 = vpop.permute.xlu0 %489
    %491 = vrot.lane.b32.xlu0 %v450, 40
    %v492 = vpop.permute.xlu0 %491
    %vm507 = vcmask 392512
    %508 = vst.msk [vmem:[#allocation3] sm:$0xff] %vm507, %v466
    %509 = vst.msk [vmem:[#allocation3 + $0x48] sm:$0xff] %vm507, %v468
    %510 = vst.msk [vmem:[#allocation3 + $0x90] sm:$0xff] %vm507, %v470
    %511 = vst.msk [vmem:[#allocation3 + $0xd8] sm:$0xff] %vm507, %v472
    %512 = vst.msk [vmem:[#allocation3 + $0x120] sm:$0xff] %vm507, %v474
    %513 = vst.msk [vmem:[#allocation3 + $0x168] sm:$0xff] %vm507, %v476
    %514 = vst.msk [vmem:[#allocation3 + $0x1b0] sm:$0xff] %vm507, %v478
    %515 = vst.msk [vmem:[#allocation3 + $0x1f8] sm:$0xff] %vm507, %v480
    %516 = vst.msk [vmem:[#allocation3 + $0x240] sm:$0xff] %vm507, %v482
    %517 = vst.msk [vmem:[#allocation3 + $0x288] sm:$0xff] %vm507, %v484
    %518 = vst.msk [vmem:[#allocation3 + $0x2d0] sm:$0xff] %vm507, %v486
    %519 = vst.msk [vmem:[#allocation3 + $0x318] sm:$0xff] %vm507, %v488
    %520 = vst.msk [vmem:[#allocation3 + $0x360] sm:$0xff] %vm507, %v490
    %521 = vst.msk [vmem:[#allocation3 + $0x3a8] sm:$0xff] %vm507, %v492
    %v522 = vld [vmem:[%s351 + $0x2] sm:$0xff]
    %v523 = vld [vmem:[%s351 + $0x12] sm:$0xff]
    %v524 = vld [vmem:[%s351 + $0x22] sm:$0xff]
    %v525 = vld [vmem:[%s351 + $0x32] sm:$0xff]
    %v526 = vld [vmem:[%s351 + $0x42] sm:$0xff]
    %v527 = vld [vmem:[%s351 + $0x52] sm:$0xff]
    %v528 = vld [vmem:[%s351 + $0x62] sm:$0xff]
    %v529 = vld [vmem:[%s351 + $0xa2] sm:$0xff]
    %v530 = vld [vmem:[%s351 + $0xb2] sm:$0xff]
    %v531 = vld [vmem:[%s351 + $0xc2] sm:$0xff]
    %v532 = vld [vmem:[%s351 + $0xd2] sm:$0xff]
    %v533 = vld [vmem:[%s351 + $0xe2] sm:$0xff]
    %v534 = vld [vmem:[%s351 + $0xf2] sm:$0xff]
    %v535 = vld [vmem:[%s351 + $0x102] sm:$0xff]
    %550 = vrot.lane.b32.xlu0 %v522, 48
    %v551 = vpop.permute.xlu0 %550
    %552 = vrot.lane.b32.xlu0 %v523, 48
    %v553 = vpop.permute.xlu0 %552
    %554 = vrot.lane.b32.xlu0 %v524, 48
    %v555 = vpop.permute.xlu0 %554
    %556 = vrot.lane.b32.xlu0 %v525, 48
    %v557 = vpop.permute.xlu0 %556
    %558 = vrot.lane.b32.xlu0 %v526, 48
    %v559 = vpop.permute.xlu0 %558
    %560 = vrot.lane.b32.xlu0 %v527, 48
    %v561 = vpop.permute.xlu0 %560
    %562 = vrot.lane.b32.xlu0 %v528, 48
    %v563 = vpop.permute.xlu0 %562
    %564 = vrot.lane.b32.xlu0 %v529, 48
    %v565 = vpop.permute.xlu0 %564
    %566 = vrot.lane.b32.xlu0 %v530, 48
    %v567 = vpop.permute.xlu0 %566
    %568 = vrot.lane.b32.xlu0 %v531, 48
    %v569 = vpop.permute.xlu0 %568
    %570 = vrot.lane.b32.xlu0 %v532, 48
    %v571 = vpop.permute.xlu0 %570
    %572 = vrot.lane.b32.xlu0 %v533, 48
    %v573 = vpop.permute.xlu0 %572
    %574 = vrot.lane.b32.xlu0 %v534, 48
    %v575 = vpop.permute.xlu0 %574
    %576 = vrot.lane.b32.xlu0 %v535, 48
    %v577 = vpop.permute.xlu0 %576
    %vm592 = vcmask 458112
    %593 = vst.msk [vmem:[#allocation3] sm:$0xff] %vm592, %v551
    %594 = vst.msk [vmem:[#allocation3 + $0x48] sm:$0xff] %vm592, %v553
    %595 = vst.msk [vmem:[#allocation3 + $0x90] sm:$0xff] %vm592, %v555
    %596 = vst.msk [vmem:[#allocation3 + $0xd8] sm:$0xff] %vm592, %v557
    %597 = vst.msk [vmem:[#allocation3 + $0x120] sm:$0xff] %vm592, %v559
    %598 = vst.msk [vmem:[#allocation3 + $0x168] sm:$0xff] %vm592, %v561
    %599 = vst.msk [vmem:[#allocation3 + $0x1b0] sm:$0xff] %vm592, %v563
    %600 = vst.msk [vmem:[#allocation3 + $0x1f8] sm:$0xff] %vm592, %v565
    %601 = vst.msk [vmem:[#allocation3 + $0x240] sm:$0xff] %vm592, %v567
    %602 = vst.msk [vmem:[#allocation3 + $0x288] sm:$0xff] %vm592, %v569
    %603 = vst.msk [vmem:[#allocation3 + $0x2d0] sm:$0xff] %vm592, %v571
    %604 = vst.msk [vmem:[#allocation3 + $0x318] sm:$0xff] %vm592, %v573
    %605 = vst.msk [vmem:[#allocation3 + $0x360] sm:$0xff] %vm592, %v575
    %606 = vst.msk [vmem:[#allocation3 + $0x3a8] sm:$0xff] %vm592, %v577
    %v607 = vld [vmem:[%s351 + $0x3] sm:$0xff]
    %v608 = vld [vmem:[%s351 + $0x13] sm:$0xff]
    %v609 = vld [vmem:[%s351 + $0x23] sm:$0xff]
    %v610 = vld [vmem:[%s351 + $0x33] sm:$0xff]
    %v611 = vld [vmem:[%s351 + $0x43] sm:$0xff]
    %v612 = vld [vmem:[%s351 + $0x53] sm:$0xff]
    %v613 = vld [vmem:[%s351 + $0x63] sm:$0xff]
    %v614 = vld [vmem:[%s351 + $0xa3] sm:$0xff]
    %v615 = vld [vmem:[%s351 + $0xb3] sm:$0xff]
    %v616 = vld [vmem:[%s351 + $0xc3] sm:$0xff]
    %v617 = vld [vmem:[%s351 + $0xd3] sm:$0xff]
    %v618 = vld [vmem:[%s351 + $0xe3] sm:$0xff]
    %v619 = vld [vmem:[%s351 + $0xf3] sm:$0xff]
    %v620 = vld [vmem:[%s351 + $0x103] sm:$0xff]
    %635 = vrot.lane.b32.xlu0 %v607, 56
    %v636 = vpop.permute.xlu0 %635
    %637 = vrot.lane.b32.xlu0 %v608, 56
    %v638 = vpop.permute.xlu0 %637
    %639 = vrot.lane.b32.xlu0 %v609, 56
    %v640 = vpop.permute.xlu0 %639
    %641 = vrot.lane.b32.xlu0 %v610, 56
    %v642 = vpop.permute.xlu0 %641
    %643 = vrot.lane.b32.xlu0 %v611, 56
    %v644 = vpop.permute.xlu0 %643
    %645 = vrot.lane.b32.xlu0 %v612, 56
    %v646 = vpop.permute.xlu0 %645
    %647 = vrot.lane.b32.xlu0 %v613, 56
    %v648 = vpop.permute.xlu0 %647
    %649 = vrot.lane.b32.xlu0 %v614, 56
    %v650 = vpop.permute.xlu0 %649
    %651 = vrot.lane.b32.xlu0 %v615, 56
    %v652 = vpop.permute.xlu0 %651
    %653 = vrot.lane.b32.xlu0 %v616, 56
    %v654 = vpop.permute.xlu0 %653
    %655 = vrot.lane.b32.xlu0 %v617, 56
    %v656 = vpop.permute.xlu0 %655
    %657 = vrot.lane.b32.xlu0 %v618, 56
    %v658 = vpop.permute.xlu0 %657
    %659 = vrot.lane.b32.xlu0 %v619, 56
    %v660 = vpop.permute.xlu0 %659
    %661 = vrot.lane.b32.xlu0 %v620, 56
    %v662 = vpop.permute.xlu0 %661
    %vm677 = vcmask 523712
    %678 = vst.msk [vmem:[#allocation3] sm:$0xff] %vm677, %v636
    %679 = vst.msk [vmem:[#allocation3 + $0x48] sm:$0xff] %vm677, %v638
    %680 = vst.msk [vmem:[#allocation3 + $0x90] sm:$0xff] %vm677, %v640
    %681 = vst.msk [vmem:[#allocation3 + $0xd8] sm:$0xff] %vm677, %v642
    %682 = vst.msk [vmem:[#allocation3 + $0x120] sm:$0xff] %vm677, %v644
    %683 = vst.msk [vmem:[#allocation3 + $0x168] sm:$0xff] %vm677, %v646
    %684 = vst.msk [vmem:[#allocation3 + $0x1b0] sm:$0xff] %vm677, %v648
    %685 = vst.msk [vmem:[#allocation3 + $0x1f8] sm:$0xff] %vm677, %v650
    %686 = vst.msk [vmem:[#allocation3 + $0x240] sm:$0xff] %vm677, %v652
    %687 = vst.msk [vmem:[#allocation3 + $0x288] sm:$0xff] %vm677, %v654
    %688 = vst.msk [vmem:[#allocation3 + $0x2d0] sm:$0xff] %vm677, %v656
    %689 = vst.msk [vmem:[#allocation3 + $0x318] sm:$0xff] %vm677, %v658
    %690 = vst.msk [vmem:[#allocation3 + $0x360] sm:$0xff] %vm677, %v660
    %691 = vst.msk [vmem:[#allocation3 + $0x3a8] sm:$0xff] %vm677, %v662
    %s692 = scalar_lea.vmem %s0, 32
    %v693 = vld [vmem:[%s692] sm:$0xff]
    %v694 = vld [vmem:[%s692 + $0x10] sm:$0xff]
    %v695 = vld [vmem:[%s692 + $0x20] sm:$0xff]
    %v696 = vld [vmem:[%s692 + $0x30] sm:$0xff]
    %v697 = vld [vmem:[%s692 + $0x40] sm:$0xff]
    %v698 = vld [vmem:[%s692 + $0x50] sm:$0xff]
    %v699 = vld [vmem:[%s692 + $0x60] sm:$0xff]
    %v700 = vld [vmem:[%s692 + $0xa0] sm:$0xff]
    %v701 = vld [vmem:[%s692 + $0xb0] sm:$0xff]
    %v702 = vld [vmem:[%s692 + $0xc0] sm:$0xff]
    %v703 = vld [vmem:[%s692 + $0xd0] sm:$0xff]
    %v704 = vld [vmem:[%s692 + $0xe0] sm:$0xff]
    %v705 = vld [vmem:[%s692 + $0xf0] sm:$0xff]
    %v706 = vld [vmem:[%s692 + $0x100] sm:$0xff]
    %721 = vrot.lane.b32.xlu0 %v693, 64
    %v722 = vpop.permute.xlu0 %721
    %723 = vrot.lane.b32.xlu0 %v694, 64
    %v724 = vpop.permute.xlu0 %723
    %725 = vrot.lane.b32.xlu0 %v695, 64
    %v726 = vpop.permute.xlu0 %725
    %727 = vrot.lane.b32.xlu0 %v696, 64
    %v728 = vpop.permute.xlu0 %727
    %729 = vrot.lane.b32.xlu0 %v697, 64
    %v730 = vpop.permute.xlu0 %729
    %731 = vrot.lane.b32.xlu0 %v698, 64
    %v732 = vpop.permute.xlu0 %731
    %733 = vrot.lane.b32.xlu0 %v699, 64
    %v734 = vpop.permute.xlu0 %733
    %735 = vrot.lane.b32.xlu0 %v700, 64
    %v736 = vpop.permute.xlu0 %735
    %737 = vrot.lane.b32.xlu0 %v701, 64
    %v738 = vpop.permute.xlu0 %737
    %739 = vrot.lane.b32.xlu0 %v702, 64
    %v740 = vpop.permute.xlu0 %739
    %741 = vrot.lane.b32.xlu0 %v703, 64
    %v742 = vpop.permute.xlu0 %741
    %743 = vrot.lane.b32.xlu0 %v704, 64
    %v744 = vpop.permute.xlu0 %743
    %745 = vrot.lane.b32.xlu0 %v705, 64
    %v746 = vpop.permute.xlu0 %745
    %747 = vrot.lane.b32.xlu0 %v706, 64
    %v748 = vpop.permute.xlu0 %747
    %vm763 = vcmask 589312
    %764 = vst.msk [vmem:[#allocation3] sm:$0xff] %vm763, %v722
    %765 = vst.msk [vmem:[#allocation3 + $0x48] sm:$0xff] %vm763, %v724
    %766 = vst.msk [vmem:[#allocation3 + $0x90] sm:$0xff] %vm763, %v726
    %767 = vst.msk [vmem:[#allocation3 + $0xd8] sm:$0xff] %vm763, %v728
    %768 = vst.msk [vmem:[#allocation3 + $0x120] sm:$0xff] %vm763, %v730
    %769 = vst.msk [vmem:[#allocation3 + $0x168] sm:$0xff] %vm763, %v732
    %770 = vst.msk [vmem:[#allocation3 + $0x1b0] sm:$0xff] %vm763, %v734
    %771 = vst.msk [vmem:[#allocation3 + $0x1f8] sm:$0xff] %vm763, %v736
    %772 = vst.msk [vmem:[#allocation3 + $0x240] sm:$0xff] %vm763, %v738
    %773 = vst.msk [vmem:[#allocation3 + $0x288] sm:$0xff] %vm763, %v740
    %774 = vst.msk [vmem:[#allocation3 + $0x2d0] sm:$0xff] %vm763, %v742
    %775 = vst.msk [vmem:[#allocation3 + $0x318] sm:$0xff] %vm763, %v744
    %776 = vst.msk [vmem:[#allocation3 + $0x360] sm:$0xff] %vm763, %v746
    %777 = vst.msk [vmem:[#allocation3 + $0x3a8] sm:$0xff] %vm763, %v748
    %v778 = vld [vmem:[%s692 + $0x1] sm:$0xff]
    %v779 = vld [vmem:[%s692 + $0x11] sm:$0xff]
    %v780 = vld [vmem:[%s692 + $0x21] sm:$0xff]
    %v781 = vld [vmem:[%s692 + $0x31] sm:$0xff]
    %v782 = vld [vmem:[%s692 + $0x41] sm:$0xff]
    %v783 = vld [vmem:[%s692 + $0x51] sm:$0xff]
    %v784 = vld [vmem:[%s692 + $0x61] sm:$0xff]
    %v785 = vld [vmem:[%s692 + $0xa1] sm:$0xff]
    %v786 = vld [vmem:[%s692 + $0xb1] sm:$0xff]
    %v787 = vld [vmem:[%s692 + $0xc1] sm:$0xff]
    %v788 = vld [vmem:[%s692 + $0xd1] sm:$0xff]
    %v789 = vld [vmem:[%s692 + $0xe1] sm:$0xff]
    %v790 = vld [vmem:[%s692 + $0xf1] sm:$0xff]
    %v791 = vld [vmem:[%s692 + $0x101] sm:$0xff]
    %806 = vrot.lane.b32.xlu0 %v778, 72
    %v807 = vpop.permute.xlu0 %806
    %808 = vrot.lane.b32.xlu0 %v779, 72
    %v809 = vpop.permute.xlu0 %808
    %810 = vrot.lane.b32.xlu0 %v780, 72
    %v811 = vpop.permute.xlu0 %810
    %812 = vrot.lane.b32.xlu0 %v781, 72
    %v813 = vpop.permute.xlu0 %812
    %814 = vrot.lane.b32.xlu0 %v782, 72
    %v815 = vpop.permute.xlu0 %814
    %816 = vrot.lane.b32.xlu0 %v783, 72
    %v817 = vpop.permute.xlu0 %816
    %818 = vrot.lane.b32.xlu0 %v784, 72
    %v819 = vpop.permute.xlu0 %818
    %820 = vrot.lane.b32.xlu0 %v785, 72
    %v821 = vpop.permute.xlu0 %820
    %822 = vrot.lane.b32.xlu0 %v786, 72
    %v823 = vpop.permute.xlu0 %822
    %824 = vrot.lane.b32.xlu0 %v787, 72
    %v825 = vpop.permute.xlu0 %824
    %826 = vrot.lane.b32.xlu0 %v788, 72
    %v827 = vpop.permute.xlu0 %826
    %828 = vrot.lane.b32.xlu0 %v789, 72
    %v829 = vpop.permute.xlu0 %828
    %830 = vrot.lane.b32.xlu0 %v790, 72
    %v831 = vpop.permute.xlu0 %830
    %832 = vrot.lane.b32.xlu0 %v791, 72
    %v833 = vpop.permute.xlu0 %832
    %vm848 = vcmask 654912
    %849 = vst.msk [vmem:[#allocation3] sm:$0xff] %vm848, %v807
    %850 = vst.msk [vmem:[#allocation3 + $0x48] sm:$0xff] %vm848, %v809
    %851 = vst.msk [vmem:[#allocation3 + $0x90] sm:$0xff] %vm848, %v811
    %852 = vst.msk [vmem:[#allocation3 + $0xd8] sm:$0xff] %vm848, %v813
    %853 = vst.msk [vmem:[#allocation3 + $0x120] sm:$0xff] %vm848, %v815
    %854 = vst.msk [vmem:[#allocation3 + $0x168] sm:$0xff] %vm848, %v817
    %855 = vst.msk [vmem:[#allocation3 + $0x1b0] sm:$0xff] %vm848, %v819
    %856 = vst.msk [vmem:[#allocation3 + $0x1f8] sm:$0xff] %vm848, %v821
    %857 = vst.msk [vmem:[#allocation3 + $0x240] sm:$0xff] %vm848, %v823
    %858 = vst.msk [vmem:[#allocation3 + $0x288] sm:$0xff] %vm848, %v825
    %859 = vst.msk [vmem:[#allocation3 + $0x2d0] sm:$0xff] %vm848, %v827
    %860 = vst.msk [vmem:[#allocation3 + $0x318] sm:$0xff] %vm848, %v829
    %861 = vst.msk [vmem:[#allocation3 + $0x360] sm:$0xff] %vm848, %v831
    %862 = vst.msk [vmem:[#allocation3 + $0x3a8] sm:$0xff] %vm848, %v833
    %v863 = vld [vmem:[%s692 + $0x2] sm:$0xff]
    %v864 = vld [vmem:[%s692 + $0x12] sm:$0xff]
    %v865 = vld [vmem:[%s692 + $0x22] sm:$0xff]
    %v866 = vld [vmem:[%s692 + $0x32] sm:$0xff]
    %v867 = vld [vmem:[%s692 + $0x42] sm:$0xff]
    %v868 = vld [vmem:[%s692 + $0x52] sm:$0xff]
    %v869 = vld [vmem:[%s692 + $0x62] sm:$0xff]
    %v870 = vld [vmem:[%s692 + $0xa2] sm:$0xff]
    %v871 = vld [vmem:[%s692 + $0xb2] sm:$0xff]
    %v872 = vld [vmem:[%s692 + $0xc2] sm:$0xff]
    %v873 = vld [vmem:[%s692 + $0xd2] sm:$0xff]
    %v874 = vld [vmem:[%s692 + $0xe2] sm:$0xff]
    %v875 = vld [vmem:[%s692 + $0xf2] sm:$0xff]
    %v876 = vld [vmem:[%s692 + $0x102] sm:$0xff]
    %891 = vrot.lane.b32.xlu0 %v863, 80
    %v892 = vpop.permute.xlu0 %891
    %893 = vrot.lane.b32.xlu0 %v864, 80
    %v894 = vpop.permute.xlu0 %893
    %895 = vrot.lane.b32.xlu0 %v865, 80
    %v896 = vpop.permute.xlu0 %895
    %897 = vrot.lane.b32.xlu0 %v866, 80
    %v898 = vpop.permute.xlu0 %897
    %899 = vrot.lane.b32.xlu0 %v867, 80
    %v900 = vpop.permute.xlu0 %899
    %901 = vrot.lane.b32.xlu0 %v868, 80
    %v902 = vpop.permute.xlu0 %901
    %903 = vrot.lane.b32.xlu0 %v869, 80
    %v904 = vpop.permute.xlu0 %903
    %905 = vrot.lane.b32.xlu0 %v870, 80
    %v906 = vpop.permute.xlu0 %905
    %907 = vrot.lane.b32.xlu0 %v871, 80
    %v908 = vpop.permute.xlu0 %907
    %909 = vrot.lane.b32.xlu0 %v872, 80
    %v910 = vpop.permute.xlu0 %909
    %911 = vrot.lane.b32.xlu0 %v873, 80
    %v912 = vpop.permute.xlu0 %911
    %913 = vrot.lane.b32.xlu0 %v874, 80
    %v914 = vpop.permute.xlu0 %913
    %915 = vrot.lane.b32.xlu0 %v875, 80
    %v916 = vpop.permute.xlu0 %915
    %917 = vrot.lane.b32.xlu0 %v876, 80
    %v918 = vpop.permute.xlu0 %917
    %vm933 = vcmask 720512
    %934 = vst.msk [vmem:[#allocation3] sm:$0xff] %vm933, %v892
    %935 = vst.msk [vmem:[#allocation3 + $0x48] sm:$0xff] %vm933, %v894
    %936 = vst.msk [vmem:[#allocation3 + $0x90] sm:$0xff] %vm933, %v896
    %937 = vst.msk [vmem:[#allocation3 + $0xd8] sm:$0xff] %vm933, %v898
    %938 = vst.msk [vmem:[#allocation3 + $0x120] sm:$0xff] %vm933, %v900
    %939 = vst.msk [vmem:[#allocation3 + $0x168] sm:$0xff] %vm933, %v902
    %940 = vst.msk [vmem:[#allocation3 + $0x1b0] sm:$0xff] %vm933, %v904
    %941 = vst.msk [vmem:[#allocation3 + $0x1f8] sm:$0xff] %vm933, %v906
    %942 = vst.msk [vmem:[#allocation3 + $0x240] sm:$0xff] %vm933, %v908
    %943 = vst.msk [vmem:[#allocation3 + $0x288] sm:$0xff] %vm933, %v910
    %944 = vst.msk [vmem:[#allocation3 + $0x2d0] sm:$0xff] %vm933, %v912
    %945 = vst.msk [vmem:[#allocation3 + $0x318] sm:$0xff] %vm933, %v914
    %946 = vst.msk [vmem:[#allocation3 + $0x360] sm:$0xff] %vm933, %v916
    %947 = vst.msk [vmem:[#allocation3 + $0x3a8] sm:$0xff] %vm933, %v918
    %v948 = vld [vmem:[%s692 + $0x3] sm:$0xff]
    %v949 = vld [vmem:[%s692 + $0x13] sm:$0xff]
    %v950 = vld [vmem:[%s692 + $0x23] sm:$0xff]
    %v951 = vld [vmem:[%s692 + $0x33] sm:$0xff]
    %v952 = vld [vmem:[%s692 + $0x43] sm:$0xff]
    %v953 = vld [vmem:[%s692 + $0x53] sm:$0xff]
    %v954 = vld [vmem:[%s692 + $0x63] sm:$0xff]
    %v955 = vld [vmem:[%s692 + $0xa3] sm:$0xff]
    %v956 = vld [vmem:[%s692 + $0xb3] sm:$0xff]
    %v957 = vld [vmem:[%s692 + $0xc3] sm:$0xff]
    %v958 = vld [vmem:[%s692 + $0xd3] sm:$0xff]
    %v959 = vld [vmem:[%s692 + $0xe3] sm:$0xff]
    %v960 = vld [vmem:[%s692 + $0xf3] sm:$0xff]
    %v961 = vld [vmem:[%s692 + $0x103] sm:$0xff]
    %976 = vrot.lane.b32.xlu0 %v948, 88
    %v977 = vpop.permute.xlu0 %976
    %978 = vrot.lane.b32.xlu0 %v949, 88
    %v979 = vpop.permute.xlu0 %978
    %980 = vrot.lane.b32.xlu0 %v950, 88
    %v981 = vpop.permute.xlu0 %980
    %982 = vrot.lane.b32.xlu0 %v951, 88
    %v983 = vpop.permute.xlu0 %982
    %984 = vrot.lane.b32.xlu0 %v952, 88
    %v985 = vpop.permute.xlu0 %984
    %986 = vrot.lane.b32.xlu0 %v953, 88
    %v987 = vpop.permute.xlu0 %986
    %988 = vrot.lane.b32.xlu0 %v954, 88
    %v989 = vpop.permute.xlu0 %988
    %990 = vrot.lane.b32.xlu0 %v955, 88
    %v991 = vpop.permute.xlu0 %990
    %992 = vrot.lane.b32.xlu0 %v956, 88
    %v993 = vpop.permute.xlu0 %992
    %994 = vrot.lane.b32.xlu0 %v957, 88
    %v995 = vpop.permute.xlu0 %994
    %996 = vrot.lane.b32.xlu0 %v958, 88
    %v997 = vpop.permute.xlu0 %996
    %998 = vrot.lane.b32.xlu0 %v959, 88
    %v999 = vpop.permute.xlu0 %998
    %1000 = vrot.lane.b32.xlu0 %v960, 88
    %v1001 = vpop.permute.xlu0 %1000
    %1002 = vrot.lane.b32.xlu0 %v961, 88
    %v1003 = vpop.permute.xlu0 %1002
    %vm1018 = vcmask 786112
    %1019 = vst.msk [vmem:[#allocation3] sm:$0xff] %vm1018, %v977
    %1020 = vst.msk [vmem:[#allocation3 + $0x48] sm:$0xff] %vm1018, %v979
    %1021 = vst.msk [vmem:[#allocation3 + $0x90] sm:$0xff] %vm1018, %v981
    %1022 = vst.msk [vmem:[#allocation3 + $0xd8] sm:$0xff] %vm1018, %v983
    %1023 = vst.msk [vmem:[#allocation3 + $0x120] sm:$0xff] %vm1018, %v985
    %1024 = vst.msk [vmem:[#allocation3 + $0x168] sm:$0xff] %vm1018, %v987
    %1025 = vst.msk [vmem:[#allocation3 + $0x1b0] sm:$0xff] %vm1018, %v989
    %1026 = vst.msk [vmem:[#allocation3 + $0x1f8] sm:$0xff] %vm1018, %v991
    %1027 = vst.msk [vmem:[#allocation3 + $0x240] sm:$0xff] %vm1018, %v993
    %1028 = vst.msk [vmem:[#allocation3 + $0x288] sm:$0xff] %vm1018, %v995
    %1029 = vst.msk [vmem:[#allocation3 + $0x2d0] sm:$0xff] %vm1018, %v997
    %1030 = vst.msk [vmem:[#allocation3 + $0x318] sm:$0xff] %vm1018, %v999
    %1031 = vst.msk [vmem:[#allocation3 + $0x360] sm:$0xff] %vm1018, %v1001
    %1032 = vst.msk [vmem:[#allocation3 + $0x3a8] sm:$0xff] %vm1018, %v1003
    %s1033 = scalar_lea.vmem %s0, 48
    %v1034 = vld [vmem:[%s1033] sm:$0xff]
    %v1035 = vld [vmem:[%s1033 + $0x10] sm:$0xff]
    %v1036 = vld [vmem:[%s1033 + $0x20] sm:$0xff]
    %v1037 = vld [vmem:[%s1033 + $0x30] sm:$0xff]
    %v1038 = vld [vmem:[%s1033 + $0x40] sm:$0xff]
    %v1039 = vld [vmem:[%s1033 + $0x50] sm:$0xff]
    %v1040 = vld [vmem:[%s1033 + $0x60] sm:$0xff]
    %v1041 = vld [vmem:[%s1033 + $0xa0] sm:$0xff]
    %v1042 = vld [vmem:[%s1033 + $0xb0] sm:$0xff]
    %v1043 = vld [vmem:[%s1033 + $0xc0] sm:$0xff]
    %v1044 = vld [vmem:[%s1033 + $0xd0] sm:$0xff]
    %v1045 = vld [vmem:[%s1033 + $0xe0] sm:$0xff]
    %v1046 = vld [vmem:[%s1033 + $0xf0] sm:$0xff]
    %v1047 = vld [vmem:[%s1033 + $0x100] sm:$0xff]
    %1062 = vrot.lane.b32.xlu0 %v1034, 96
    %v1063 = vpop.permute.xlu0 %1062
    %1064 = vrot.lane.b32.xlu0 %v1035, 96
    %v1065 = vpop.permute.xlu0 %1064
    %1066 = vrot.lane.b32.xlu0 %v1036, 96
    %v1067 = vpop.permute.xlu0 %1066
    %1068 = vrot.lane.b32.xlu0 %v1037, 96
    %v1069 = vpop.permute.xlu0 %1068
    %1070 = vrot.lane.b32.xlu0 %v1038, 96
    %v1071 = vpop.permute.xlu0 %1070
    %1072 = vrot.lane.b32.xlu0 %v1039, 96
    %v1073 = vpop.permute.xlu0 %1072
    %1074 = vrot.lane.b32.xlu0 %v1040, 96
    %v1075 = vpop.permute.xlu0 %1074
    %1076 = vrot.lane.b32.xlu0 %v1041, 96
    %v1077 = vpop.permute.xlu0 %1076
    %1078 = vrot.lane.b32.xlu0 %v1042, 96
    %v1079 = vpop.permute.xlu0 %1078
    %1080 = vrot.lane.b32.xlu0 %v1043, 96
    %v1081 = vpop.permute.xlu0 %1080
    %1082 = vrot.lane.b32.xlu0 %v1044, 96
    %v1083 = vpop.permute.xlu0 %1082
    %1084 = vrot.lane.b32.xlu0 %v1045, 96
    %v1085 = vpop.permute.xlu0 %1084
    %1086 = vrot.lane.b32.xlu0 %v1046, 96
    %v1087 = vpop.permute.xlu0 %1086
    %1088 = vrot.lane.b32.xlu0 %v1047, 96
    %v1089 = vpop.permute.xlu0 %1088
    %vm1104 = vcmask 851712
    %1105 = vst.msk [vmem:[#allocation3] sm:$0xff] %vm1104, %v1063
    %1106 = vst.msk [vmem:[#allocation3 + $0x48] sm:$0xff] %vm1104, %v1065
    %1107 = vst.msk [vmem:[#allocation3 + $0x90] sm:$0xff] %vm1104, %v1067
    %1108 = vst.msk [vmem:[#allocation3 + $0xd8] sm:$0xff] %vm1104, %v1069
    %1109 = vst.msk [vmem:[#allocation3 + $0x120] sm:$0xff] %vm1104, %v1071
    %1110 = vst.msk [vmem:[#allocation3 + $0x168] sm:$0xff] %vm1104, %v1073
    %1111 = vst.msk [vmem:[#allocation3 + $0x1b0] sm:$0xff] %vm1104, %v1075
    %1112 = vst.msk [vmem:[#allocation3 + $0x1f8] sm:$0xff] %vm1104, %v1077
    %1113 = vst.msk [vmem:[#allocation3 + $0x240] sm:$0xff] %vm1104, %v1079
    %1114 = vst.msk [vmem:[#allocation3 + $0x288] sm:$0xff] %vm1104, %v1081
    %1115 = vst.msk [vmem:[#allocation3 + $0x2d0] sm:$0xff] %vm1104, %v1083
    %1116 = vst.msk [vmem:[#allocation3 + $0x318] sm:$0xff] %vm1104, %v1085
    %1117 = vst.msk [vmem:[#allocation3 + $0x360] sm:$0xff] %vm1104, %v1087
    %1118 = vst.msk [vmem:[#allocation3 + $0x3a8] sm:$0xff] %vm1104, %v1089
    %v1119 = vld [vmem:[%s1033 + $0x1] sm:$0xff]
    %v1120 = vld [vmem:[%s1033 + $0x11] sm:$0xff]
    %v1121 = vld [vmem:[%s1033 + $0x21] sm:$0xff]
    %v1122 = vld [vmem:[%s1033 + $0x31] sm:$0xff]
    %v1123 = vld [vmem:[%s1033 + $0x41] sm:$0xff]
    %v1124 = vld [vmem:[%s1033 + $0x51] sm:$0xff]
    %v1125 = vld [vmem:[%s1033 + $0x61] sm:$0xff]
    %v1126 = vld [vmem:[%s1033 + $0xa1] sm:$0xff]
    %v1127 = vld [vmem:[%s1033 + $0xb1] sm:$0xff]
    %v1128 = vld [vmem:[%s1033 + $0xc1] sm:$0xff]
    %v1129 = vld [vmem:[%s1033 + $0xd1] sm:$0xff]
    %v1130 = vld [vmem:[%s1033 + $0xe1] sm:$0xff]
    %v1131 = vld [vmem:[%s1033 + $0xf1] sm:$0xff]
    %v1132 = vld [vmem:[%s1033 + $0x101] sm:$0xff]
    %1147 = vrot.lane.b32.xlu0 %v1119, 104
    %v1148 = vpop.permute.xlu0 %1147
    %1149 = vrot.lane.b32.xlu0 %v1120, 104
    %v1150 = vpop.permute.xlu0 %1149
    %1151 = vrot.lane.b32.xlu0 %v1121, 104
    %v1152 = vpop.permute.xlu0 %1151
    %1153 = vrot.lane.b32.xlu0 %v1122, 104
    %v1154 = vpop.permute.xlu0 %1153
    %1155 = vrot.lane.b32.xlu0 %v1123, 104
    %v1156 = vpop.permute.xlu0 %1155
    %1157 = vrot.lane.b32.xlu0 %v1124, 104
    %v1158 = vpop.permute.xlu0 %1157
    %1159 = vrot.lane.b32.xlu0 %v1125, 104
    %v1160 = vpop.permute.xlu0 %1159
    %1161 = vrot.lane.b32.xlu0 %v1126, 104
    %v1162 = vpop.permute.xlu0 %1161
    %1163 = vrot.lane.b32.xlu0 %v1127, 104
    %v1164 = vpop.permute.xlu0 %1163
    %1165 = vrot.lane.b32.xlu0 %v1128, 104
    %v1166 = vpop.permute.xlu0 %1165
    %1167 = vrot.lane.b32.xlu0 %v1129, 104
    %v1168 = vpop.permute.xlu0 %1167
    %1169 = vrot.lane.b32.xlu0 %v1130, 104
    %v1170 = vpop.permute.xlu0 %1169
    %1171 = vrot.lane.b32.xlu0 %v1131, 104
    %v1172 = vpop.permute.xlu0 %1171
    %1173 = vrot.lane.b32.xlu0 %v1132, 104
    %v1174 = vpop.permute.xlu0 %1173
    %vm1189 = vcmask 917312
    %1190 = vst.msk [vmem:[#allocation3] sm:$0xff] %vm1189, %v1148
    %1191 = vst.msk [vmem:[#allocation3 + $0x48] sm:$0xff] %vm1189, %v1150
    %1192 = vst.msk [vmem:[#allocation3 + $0x90] sm:$0xff] %vm1189, %v1152
    %1193 = vst.msk [vmem:[#allocation3 + $0xd8] sm:$0xff] %vm1189, %v1154
    %1194 = vst.msk [vmem:[#allocation3 + $0x120] sm:$0xff] %vm1189, %v1156
    %1195 = vst.msk [vmem:[#allocation3 + $0x168] sm:$0xff] %vm1189, %v1158
    %1196 = vst.msk [vmem:[#allocation3 + $0x1b0] sm:$0xff] %vm1189, %v1160
    %1197 = vst.msk [vmem:[#allocation3 + $0x1f8] sm:$0xff] %vm1189, %v1162
    %1198 = vst.msk [vmem:[#allocation3 + $0x240] sm:$0xff] %vm1189, %v1164
    %1199 = vst.msk [vmem:[#allocation3 + $0x288] sm:$0xff] %vm1189, %v1166
    %1200 = vst.msk [vmem:[#allocation3 + $0x2d0] sm:$0xff] %vm1189, %v1168
    %1201 = vst.msk [vmem:[#allocation3 + $0x318] sm:$0xff] %vm1189, %v1170
    %1202 = vst.msk [vmem:[#allocation3 + $0x360] sm:$0xff] %vm1189, %v1172
    %1203 = vst.msk [vmem:[#allocation3 + $0x3a8] sm:$0xff] %vm1189, %v1174
    %v1204 = vld [vmem:[%s1033 + $0x2] sm:$0xff]
    %v1205 = vld [vmem:[%s1033 + $0x12] sm:$0xff]
    %v1206 = vld [vmem:[%s1033 + $0x22] sm:$0xff]
    %v1207 = vld [vmem:[%s1033 + $0x32] sm:$0xff]
    %v1208 = vld [vmem:[%s1033 + $0x42] sm:$0xff]
    %v1209 = vld [vmem:[%s1033 + $0x52] sm:$0xff]
    %v1210 = vld [vmem:[%s1033 + $0x62] sm:$0xff]
    %v1211 = vld [vmem:[%s1033 + $0xa2] sm:$0xff]
    %v1212 = vld [vmem:[%s1033 + $0xb2] sm:$0xff]
    %v1213 = vld [vmem:[%s1033 + $0xc2] sm:$0xff]
    %v1214 = vld [vmem:[%s1033 + $0xd2] sm:$0xff]
    %v1215 = vld [vmem:[%s1033 + $0xe2] sm:$0xff]
    %v1216 = vld [vmem:[%s1033 + $0xf2] sm:$0xff]
    %v1217 = vld [vmem:[%s1033 + $0x102] sm:$0xff]
    %1232 = vrot.lane.b32.xlu0 %v1204, 112
    %v1233 = vpop.permute.xlu0 %1232
    %1234 = vrot.lane.b32.xlu0 %v1205, 112
    %v1235 = vpop.permute.xlu0 %1234
    %1236 = vrot.lane.b32.xlu0 %v1206, 112
    %v1237 = vpop.permute.xlu0 %1236
    %1238 = vrot.lane.b32.xlu0 %v1207, 112
    %v1239 = vpop.permute.xlu0 %1238
    %1240 = vrot.lane.b32.xlu0 %v1208, 112
    %v1241 = vpop.permute.xlu0 %1240
    %1242 = vrot.lane.b32.xlu0 %v1209, 112
    %v1243 = vpop.permute.xlu0 %1242
    %1244 = vrot.lane.b32.xlu0 %v1210, 112
    %v1245 = vpop.permute.xlu0 %1244
    %1246 = vrot.lane.b32.xlu0 %v1211, 112
    %v1247 = vpop.permute.xlu0 %1246
    %1248 = vrot.lane.b32.xlu0 %v1212, 112
    %v1249 = vpop.permute.xlu0 %1248
    %1250 = vrot.lane.b32.xlu0 %v1213, 112
    %v1251 = vpop.permute.xlu0 %1250
    %1252 = vrot.lane.b32.xlu0 %v1214, 112
    %v1253 = vpop.permute.xlu0 %1252
    %1254 = vrot.lane.b32.xlu0 %v1215, 112
    %v1255 = vpop.permute.xlu0 %1254
    %1256 = vrot.lane.b32.xlu0 %v1216, 112
    %v1257 = vpop.permute.xlu0 %1256
    %1258 = vrot.lane.b32.xlu0 %v1217, 112
    %v1259 = vpop.permute.xlu0 %1258
    %vm1274 = vcmask 982912
    %1275 = vst.msk [vmem:[#allocation3] sm:$0xff] %vm1274, %v1233
    %1276 = vst.msk [vmem:[#allocation3 + $0x48] sm:$0xff] %vm1274, %v1235
    %1277 = vst.msk [vmem:[#allocation3 + $0x90] sm:$0xff] %vm1274, %v1237
    %1278 = vst.msk [vmem:[#allocation3 + $0xd8] sm:$0xff] %vm1274, %v1239
    %1279 = vst.msk [vmem:[#allocation3 + $0x120] sm:$0xff] %vm1274, %v1241
    %1280 = vst.msk [vmem:[#allocation3 + $0x168] sm:$0xff] %vm1274, %v1243
    %1281 = vst.msk [vmem:[#allocation3 + $0x1b0] sm:$0xff] %vm1274, %v1245
    %1282 = vst.msk [vmem:[#allocation3 + $0x1f8] sm:$0xff] %vm1274, %v1247
    %1283 = vst.msk [vmem:[#allocation3 + $0x240] sm:$0xff] %vm1274, %v1249
    %1284 = vst.msk [vmem:[#allocation3 + $0x288] sm:$0xff] %vm1274, %v1251
    %1285 = vst.msk [vmem:[#allocation3 + $0x2d0] sm:$0xff] %vm1274, %v1253
    %1286 = vst.msk [vmem:[#allocation3 + $0x318] sm:$0xff] %vm1274, %v1255
    %1287 = vst.msk [vmem:[#allocation3 + $0x360] sm:$0xff] %vm1274, %v1257
    %1288 = vst.msk [vmem:[#allocation3 + $0x3a8] sm:$0xff] %vm1274, %v1259
    %v1289 = vld [vmem:[%s1033 + $0x3] sm:$0xff]
    %v1290 = vld [vmem:[%s1033 + $0x13] sm:$0xff]
    %v1291 = vld [vmem:[%s1033 + $0x23] sm:$0xff]
    %v1292 = vld [vmem:[%s1033 + $0x33] sm:$0xff]
    %v1293 = vld [vmem:[%s1033 + $0x43] sm:$0xff]
    %v1294 = vld [vmem:[%s1033 + $0x53] sm:$0xff]
    %v1295 = vld [vmem:[%s1033 + $0x63] sm:$0xff]
    %v1296 = vld [vmem:[%s1033 + $0xa3] sm:$0xff]
    %v1297 = vld [vmem:[%s1033 + $0xb3] sm:$0xff]
    %v1298 = vld [vmem:[%s1033 + $0xc3] sm:$0xff]
    %v1299 = vld [vmem:[%s1033 + $0xd3] sm:$0xff]
    %v1300 = vld [vmem:[%s1033 + $0xe3] sm:$0xff]
    %v1301 = vld [vmem:[%s1033 + $0xf3] sm:$0xff]
    %v1302 = vld [vmem:[%s1033 + $0x103] sm:$0xff]
    %1317 = vrot.lane.b32.xlu0 %v1289, 120
    %v1318 = vpop.permute.xlu0 %1317
    %1319 = vrot.lane.b32.xlu0 %v1290, 120
    %v1320 = vpop.permute.xlu0 %1319
    %1321 = vrot.lane.b32.xlu0 %v1291, 120
    %v1322 = vpop.permute.xlu0 %1321
    %1323 = vrot.lane.b32.xlu0 %v1292, 120
    %v1324 = vpop.permute.xlu0 %1323
    %1325 = vrot.lane.b32.xlu0 %v1293, 120
    %v1326 = vpop.permute.xlu0 %1325
    %1327 = vrot.lane.b32.xlu0 %v1294, 120
    %v1328 = vpop.permute.xlu0 %1327
    %1329 = vrot.lane.b32.xlu0 %v1295, 120
    %v1330 = vpop.permute.xlu0 %1329
    %1331 = vrot.lane.b32.xlu0 %v1296, 120
    %v1332 = vpop.permute.xlu0 %1331
    %1333 = vrot.lane.b32.xlu0 %v1297, 120
    %v1334 = vpop.permute.xlu0 %1333
    %1335 = vrot.lane.b32.xlu0 %v1298, 120
    %v1336 = vpop.permute.xlu0 %1335
    %1337 = vrot.lane.b32.xlu0 %v1299, 120
    %v1338 = vpop.permute.xlu0 %1337
    %1339 = vrot.lane.b32.xlu0 %v1300, 120
    %v1340 = vpop.permute.xlu0 %1339
    %1341 = vrot.lane.b32.xlu0 %v1301, 120
    %v1342 = vpop.permute.xlu0 %1341
    %1343 = vrot.lane.b32.xlu0 %v1302, 120
    %v1344 = vpop.permute.xlu0 %1343
    %vm1359 = vcmask 1048512
    %1360 = vst.msk [vmem:[#allocation3] sm:$0xff] %vm1359, %v1318
    %1361 = vst.msk [vmem:[#allocation3 + $0x48] sm:$0xff] %vm1359, %v1320
    %1362 = vst.msk [vmem:[#allocation3 + $0x90] sm:$0xff] %vm1359, %v1322
    %1363 = vst.msk [vmem:[#allocation3 + $0xd8] sm:$0xff] %vm1359, %v1324
    %1364 = vst.msk [vmem:[#allocation3 + $0x120] sm:$0xff] %vm1359, %v1326
    %1365 = vst.msk [vmem:[#allocation3 + $0x168] sm:$0xff] %vm1359, %v1328
    %1366 = vst.msk [vmem:[#allocation3 + $0x1b0] sm:$0xff] %vm1359, %v1330
    %1367 = vst.msk [vmem:[#allocation3 + $0x1f8] sm:$0xff] %vm1359, %v1332
    %1368 = vst.msk [vmem:[#allocation3 + $0x240] sm:$0xff] %vm1359, %v1334
    %1369 = vst.msk [vmem:[#allocation3 + $0x288] sm:$0xff] %vm1359, %v1336
    %1370 = vst.msk [vmem:[#allocation3 + $0x2d0] sm:$0xff] %vm1359, %v1338
    %1371 = vst.msk [vmem:[#allocation3 + $0x318] sm:$0xff] %vm1359, %v1340
    %1372 = vst.msk [vmem:[#allocation3 + $0x360] sm:$0xff] %vm1359, %v1342
    %1373 = vst.msk [vmem:[#allocation3 + $0x3a8] sm:$0xff] %vm1359, %v1344
    %v1374 = vld [vmem:[#allocation3] sm:$0xff]
    %v1375 = vld [vmem:[#allocation3 + $0x48] sm:$0xff]
    %v1376 = vld [vmem:[#allocation3 + $0x90] sm:$0xff]
    %v1377 = vld [vmem:[#allocation3 + $0xd8] sm:$0xff]
    %v1378 = vld [vmem:[#allocation3 + $0x120] sm:$0xff]
    %v1379 = vld [vmem:[#allocation3 + $0x168] sm:$0xff]
    %v1380 = vld [vmem:[#allocation3 + $0x1b0] sm:$0xff]
    %v1381 = vld [vmem:[#allocation3 + $0x1f8] sm:$0xff]
    %v1382 = vld [vmem:[#allocation3 + $0x240] sm:$0xff]
    %v1383 = vld [vmem:[#allocation3 + $0x288] sm:$0xff]
    %v1384 = vld [vmem:[#allocation3 + $0x2d0] sm:$0xff]
    %v1385 = vld [vmem:[#allocation3 + $0x318] sm:$0xff]
    %v1386 = vld [vmem:[#allocation3 + $0x360] sm:$0xff]
    %v1387 = vld [vmem:[#allocation3 + $0x3a8] sm:$0xff]
    %v1388 = vpack.c.bf16 %v1375, %v1374
    %v1389 = vpack.c.bf16 %v1377, %v1376
    %v1390 = vpack.c.bf16 %v1379, %v1378
    %v1391 = vpack.c.bf16 %v1381, %v1380
    %v1392 = vpack.c.bf16 %v1383, %v1382
    %v1393 = vpack.c.bf16 %v1385, %v1384
    %v1394 = vpack.c.bf16 %v1387, %v1386
    %v1395 = vld [vmem:[%s1] sm:$0xf]
    %v1396 = vld [vmem:[%s1 + $0x4] sm:$0xf]
    %v1397 = vld [vmem:[%s1 + $0x8] sm:$0xf]
    %v1398 = vld [vmem:[%s1 + $0xc] sm:$0xf]
    %v1399 = vld [vmem:[%s1 + $0x10] sm:$0xf]
    %v1400 = vld [vmem:[%s1 + $0x14] sm:$0xf]
    %v1401 = vld [vmem:[%s1 + $0x18] sm:$0xf]
    %v1402 = vld [vmem:[%s1 + $0x1c] sm:$0xf]
    %v1403 = vld [vmem:[%s1 + $0x20] sm:$0xf]
    %v1404 = vld [vmem:[%s1 + $0x24] sm:$0xf]
    %v1405 = vld [vmem:[%s1 + $0x28] sm:$0xf]
    %v1406 = vld [vmem:[%s1 + $0x2c] sm:$0xf]
    %v1407 = vld [vmem:[%s1 + $0x30] sm:$0xf]
    %v1408 = vld [vmem:[%s1 + $0x34] sm:$0xf]
    %v1409 = vld [vmem:[%s1 + $0x38] sm:$0xf]
    %v1410 = vld [vmem:[%s1 + $0x3c] sm:$0xf]
    %v1427 = vunpack.c.l.b16 %v1395
    %v1428 = vunpack.c.l.b16 %v1396
    %v1429 = vunpack.c.l.b16 %v1397
    %v1430 = vunpack.c.l.b16 %v1398
    %v1431 = vunpack.c.l.b16 %v1399
    %v1432 = vunpack.c.l.b16 %v1400
    %v1433 = vunpack.c.l.b16 %v1401
    %v1434 = vunpack.c.l.b16 %v1402
    %v1435 = vunpack.c.l.b16 %v1403
    %v1436 = vunpack.c.l.b16 %v1404
    %v1437 = vunpack.c.l.b16 %v1405
    %v1438 = vunpack.c.l.b16 %v1406
    %v1439 = vunpack.c.l.b16 %v1407
    %v1440 = vunpack.c.l.b16 %v1408
    %v1441 = vunpack.c.l.b16 %v1409
    %v1442 = vunpack.c.l.b16 %v1410
    %v1443 = vpack.c.b16 %v1428, %v1427
    %v1444 = vpack.c.b16 %v1430, %v1429
    %v1445 = vpack.c.b16 %v1432, %v1431
    %v1446 = vpack.c.b16 %v1434, %v1433
    %v1447 = vpack.c.b16 %v1436, %v1435
    %v1448 = vpack.c.b16 %v1438, %v1437
    %v1449 = vpack.c.b16 %v1440, %v1439
    %v1450 = vpack.c.b16 %v1442, %v1441
    %1459 = vmatprep.subr.bf16.mxu0 0
    %1460 = vmatpush1.bf16.msra.mxu0 %v1450
    %1461 = vmatprep.subr.bf16.mxu0 0
    %1462 = vmatpush1.bf16.msra.mxu0 %v1449
    %1463 = vmatprep.subr.bf16.mxu0 0
    %1464 = vmatpush1.bf16.msra.mxu0 %v1448
    %1465 = vmatprep.subr.bf16.mxu0 0
    %1466 = vmatpush1.bf16.msra.mxu0 %v1447
    %1467 = vmatprep.subr.bf16.mxu0 0
    %1468 = vmatpush1.bf16.msra.mxu0 %v1446
    %1469 = vmatprep.subr.bf16.mxu0 0
    %1470 = vmatpush1.bf16.msra.mxu0 %v1445
    %1471 = vmatprep.subr.bf16.mxu0 0
    %1472 = vmatpush1.bf16.msra.mxu0 %v1444
    %1473 = vmatprep.subr.bf16.mxu0 0
    %1474 = vmatpush1.bf16.msra.mxu0 %v1443
    %1475 = vmatprep.subr.bf16.mxu0 0
    %1476 = vmatpush2.bf16.msra.mxu0 0
    %1477 = vmatprep.subr.bf16.mxu0 0
    %1478 = vmatpush2.bf16.msra.mxu0 0
    %1479 = vmatprep.subr.bf16.mxu0 0
    %1480 = vmatpush2.bf16.msra.mxu0 0
    %1481 = vmatprep.subr.bf16.mxu0 0
    %1482 = vmatpush2.bf16.msra.mxu0 0
    %1483 = vmatprep.subr.bf16.mxu0 0
    %1484 = vmatpush2.bf16.msra.mxu0 0
    %1485 = vmatprep.subr.bf16.mxu0 0
    %1486 = vmatpush2.bf16.msra.mxu0 0
    %1487 = vmatprep.subr.bf16.mxu0 0
    %1488 = vmatpush2.bf16.msra.mxu0 0
    %1489 = vmatprep.subr.bf16.mxu0 0
    %1490 = vmatpush2.bf16.msra.mxu0 0
    %1491 = vmatprep.mubr.bf16.mxu0 0
    %1492 = vmatmul.mubr.bf16.gmra.mxu0 %v1388
    %v1493 = vpop.f32.mrf.mxu0
    %v1494 = vadd.f32 0.0, %v1493
    %v1495 = vpop.f32.mrf.mxu0
    %v1496 = vpop.f32.mrf.mxu0
    %v1497 = vadd.f32 0.0, %v1496
    %v1498 = vpop.f32.mrf.mxu0
    %1499 = vmatprep.mubr.bf16.mxu0 0
    %1500 = vmatmul.mubr.bf16.gmra.mxu0 %v1389
    %v1501 = vpop.f32.mrf.mxu0
    %v1502 = vadd.f32 0.0, %v1501
    %v1503 = vpop.f32.mrf.mxu0
    %v1504 = vpop.f32.mrf.mxu0
    %v1505 = vadd.f32 0.0, %v1504
    %v1506 = vpop.f32.mrf.mxu0
    %1507 = vmatprep.mubr.bf16.mxu0 0
    %1508 = vmatmul.mubr.bf16.gmra.mxu0 %v1390
    %v1509 = vpop.f32.mrf.mxu0
    %v1510 = vadd.f32 0.0, %v1509
    %v1511 = vpop.f32.mrf.mxu0
    %v1512 = vpop.f32.mrf.mxu0
    %v1513 = vadd.f32 0.0, %v1512
    %v1514 = vpop.f32.mrf.mxu0
    %1515 = vmatprep.mubr.bf16.mxu0 0
    %1516 = vmatmul.mubr.bf16.gmra.mxu0 %v1391
    %v1517 = vpop.f32.mrf.mxu0
    %v1518 = vadd.f32 0.0, %v1517
    %v1519 = vpop.f32.mrf.mxu0
    %v1520 = vpop.f32.mrf.mxu0
    %v1521 = vadd.f32 0.0, %v1520
    %v1522 = vpop.f32.mrf.mxu0
    %1523 = vmatprep.mubr.bf16.mxu0 0
    %1524 = vmatmul.mubr.bf16.gmra.mxu0 %v1392
    %v1525 = vpop.f32.mrf.mxu0
    %v1526 = vadd.f32 0.0, %v1525
    %v1527 = vpop.f32.mrf.mxu0
    %v1528 = vpop.f32.mrf.mxu0
    %v1529 = vadd.f32 0.0, %v1528
    %v1530 = vpop.f32.mrf.mxu0
    %1531 = vmatprep.mubr.bf16.mxu0 0
    %1532 = vmatmul.mubr.bf16.gmra.mxu0 %v1393
    %v1533 = vpop.f32.mrf.mxu0
    %v1534 = vadd.f32 0.0, %v1533
    %v1535 = vpop.f32.mrf.mxu0
    %v1536 = vpop.f32.mrf.mxu0
    %v1537 = vadd.f32 0.0, %v1536
    %v1538 = vpop.f32.mrf.mxu0
    %1539 = vmatprep.mubr.bf16.mxu0 0
    %1540 = vmatmul.mubr.bf16.gmra.mxu0 %v1394
    %v1541 = vpop.f32.mrf.mxu0
    %v1542 = vadd.f32 0.0, %v1541
    %v1543 = vpop.f32.mrf.mxu0
    %v1544 = vpop.f32.mrf.mxu0
    %v1545 = vadd.f32 0.0, %v1544
    %v1546 = vpop.f32.mrf.mxu0
    %1547 = vdwg.mxu0
    %v1548 = vld [vmem:[%s2] sm:$0x1]
    %v1549 = vlaneseq
    %v1550 = vshrl.u32 %v1549, 7
    %v1551 = vsub.s32 0, %v1550
    %v1552 = vrot.slane %v1548, %v1551
    %v1553 = vmul.f32 %v1494, %v1552
    %v1554 = vmul.f32 %v1497, %v1552
    %v1555 = vmul.f32 %v1502, %v1552
    %v1556 = vmul.f32 %v1505, %v1552
    %v1557 = vmul.f32 %v1510, %v1552
    %v1558 = vmul.f32 %v1513, %v1552
    %v1559 = vmul.f32 %v1518, %v1552
    %v1560 = vmul.f32 %v1521, %v1552
    %v1561 = vmul.f32 %v1526, %v1552
    %v1562 = vmul.f32 %v1529, %v1552
    %v1563 = vmul.f32 %v1534, %v1552
    %v1564 = vmul.f32 %v1537, %v1552
    %v1565 = vmul.f32 %v1542, %v1552
    %v1566 = vmul.f32 %v1545, %v1552
    %v1567 = vld [vmem:[%s2 + $0x1] sm:$0x1]
    %v1568 = vlaneseq
    %v1569 = vshrl.u32 %v1568, 7
    %v1570 = vsub.s32 0, %v1569
    %v1571 = vrot.slane %v1567, %v1570
    %v1572 = vadd.f32 %v1553, %v1571
    %v1573 = vadd.f32 %v1554, %v1571
    %v1574 = vadd.f32 %v1555, %v1571
    %v1575 = vadd.f32 %v1556, %v1571
    %v1576 = vadd.f32 %v1557, %v1571
    %v1577 = vadd.f32 %v1558, %v1571
    %v1578 = vadd.f32 %v1559, %v1571
    %v1579 = vadd.f32 %v1560, %v1571
    %v1580 = vadd.f32 %v1561, %v1571
    %v1581 = vadd.f32 %v1562, %v1571
    %v1582 = vadd.f32 %v1563, %v1571
    %v1583 = vadd.f32 %v1564, %v1571
    %v1584 = vadd.f32 %v1565, %v1571
    %v1585 = vadd.f32 %v1566, %v1571
    %v1586 = vmax.f32 %v1572, 0.0
    %v1587 = vmax.f32 %v1573, 0.0
    %v1588 = vmax.f32 %v1574, 0.0
    %v1589 = vmax.f32 %v1575, 0.0
    %v1590 = vmax.f32 %v1576, 0.0
    %v1591 = vmax.f32 %v1577, 0.0
    %v1592 = vmax.f32 %v1578, 0.0
    %v1593 = vmax.f32 %v1579, 0.0
    %v1594 = vmax.f32 %v1580, 0.0
    %v1595 = vmax.f32 %v1581, 0.0
    %v1596 = vmax.f32 %v1582, 0.0
    %v1597 = vmax.f32 %v1583, 0.0
    %v1598 = vmax.f32 %v1584, 0.0
    %v1599 = vmax.f32 %v1585, 0.0
    %1600 = vst [vmem:[#allocation2] sm:$0xff] 0.0
    %1601 = vst [vmem:[#allocation2 + $0x8] sm:$0x3] 0.0
    %1602 = vst [vmem:[#allocation2 + $0x10] sm:$0xff] 0.0
    %1603 = vst [vmem:[#allocation2 + $0x18] sm:$0x3] 0.0
    %1604 = vst [vmem:[#allocation2 + $0x20] sm:$0xff] 0.0
    %1605 = vst [vmem:[#allocation2 + $0x28] sm:$0x3] 0.0
    %1606 = vst [vmem:[#allocation2 + $0x30] sm:$0xff] 0.0
    %1607 = vst [vmem:[#allocation2 + $0x38] sm:$0x3] 0.0
    %1608 = vst [vmem:[#allocation2 + $0x40] sm:$0xff] 0.0
    %1609 = vst [vmem:[#allocation2 + $0x48] sm:$0x3] 0.0
    %1610 = vst [vmem:[#allocation2 + $0x50] sm:$0xff] 0.0
    %1611 = vst [vmem:[#allocation2 + $0x58] sm:$0x3] 0.0
    %1612 = vst [vmem:[#allocation2 + $0x60] sm:$0xff] 0.0
    %1613 = vst [vmem:[#allocation2 + $0x68] sm:$0x3] 0.0
    %1614 = vst [vmem:[#allocation2 + $0x70] sm:$0xff] 0.0
    %1615 = vst [vmem:[#allocation2 + $0x78] sm:$0x3] 0.0
    %1616 = vst [vmem:[#allocation2 + $0x80] sm:$0xff] 0.0
    %1617 = vst [vmem:[#allocation2 + $0x88] sm:$0x3] 0.0
    %1618 = vst [vmem:[#allocation2 + $0x90] sm:$0xff] 0.0
    %1619 = vst [vmem:[#allocation2 + $0x98] sm:$0x3] 0.0
    %1620 = vst [vmem:[#allocation2 + $0xa0] sm:$0xff] 0.0
    %1621 = vst [vmem:[#allocation2 + $0xa8] sm:$0x3] 0.0
    %1622 = vst [vmem:[#allocation2 + $0xb0] sm:$0xff] 0.0
    %1623 = vst [vmem:[#allocation2 + $0xb8] sm:$0x3] 0.0
    %1624 = vst [vmem:[#allocation2 + $0xc0] sm:$0xff] 0.0
    %1625 = vst [vmem:[#allocation2 + $0xc8] sm:$0x3] 0.0
    %1626 = vst [vmem:[#allocation2 + $0xd0] sm:$0xff] 0.0
    %1627 = vst [vmem:[#allocation2 + $0xd8] sm:$0x3] 0.0
    %1628 = vst [vmem:[#allocation2 + $0xe0] sm:$0xff] 0.0
    %1629 = vst [vmem:[#allocation2 + $0xe8] sm:$0x3] 0.0
    %1630 = vst [vmem:[#allocation2 + $0xf0] sm:$0xff] 0.0
    %1631 = vst [vmem:[#allocation2 + $0xf8] sm:$0x3] 0.0
    %1632 = vst [vmem:[#allocation2 + $0x100] sm:$0xff] 0.0
    %1633 = vst [vmem:[#allocation2 + $0x108] sm:$0x3] 0.0
    %1634 = vst [vmem:[#allocation2 + $0x110] sm:$0xff] 0.0
    %1635 = vst [vmem:[#allocation2 + $0x118] sm:$0x3] 0.0
    %s1636 = scalar_lea.vmem [#allocation2], 16
    %1637 = vst [vmem:[%s1636 + $0x1] sm:$0xff] %v1586
    %1638 = vst [vmem:[%s1636 + $0x11] sm:$0xff] %v1587
    %1639 = vst [vmem:[%s1636 + $0x21] sm:$0xff] %v1588
    %1640 = vst [vmem:[%s1636 + $0x31] sm:$0xff] %v1589
    %1641 = vst [vmem:[%s1636 + $0x41] sm:$0xff] %v1590
    %1642 = vst [vmem:[%s1636 + $0x51] sm:$0xff] %v1591
    %1643 = vst [vmem:[%s1636 + $0x61] sm:$0xff] %v1592
    %1644 = vst [vmem:[%s1636 + $0x91] sm:$0xff] %v1593
    %1645 = vst [vmem:[%s1636 + $0xa1] sm:$0xff] %v1594
    %1646 = vst [vmem:[%s1636 + $0xb1] sm:$0xff] %v1595
    %1647 = vst [vmem:[%s1636 + $0xc1] sm:$0xff] %v1596
    %1648 = vst [vmem:[%s1636 + $0xd1] sm:$0xff] %v1597
    %1649 = vst [vmem:[%s1636 + $0xe1] sm:$0xff] %v1598
    %1650 = vst [vmem:[%s1636 + $0xf1] sm:$0xff] %v1599
    %v1651 = vld [vmem:[#allocation2] sm:$0xff]
    %v1652 = vld [vmem:[#allocation2 + $0x10] sm:$0xff]
    %v1653 = vld [vmem:[#allocation2 + $0x20] sm:$0xff]
    %v1654 = vld [vmem:[#allocation2 + $0x30] sm:$0xff]
    %v1655 = vld [vmem:[#allocation2 + $0x40] sm:$0xff]
    %v1656 = vld [vmem:[#allocation2 + $0x50] sm:$0xff]
    %v1657 = vld [vmem:[#allocation2 + $0x60] sm:$0xff]
    %v1658 = vld [vmem:[#allocation2 + $0x90] sm:$0xff]
    %v1659 = vld [vmem:[#allocation2 + $0xa0] sm:$0xff]
    %v1660 = vld [vmem:[#allocation2 + $0xb0] sm:$0xff]
    %v1661 = vld [vmem:[#allocation2 + $0xc0] sm:$0xff]
    %v1662 = vld [vmem:[#allocation2 + $0xd0] sm:$0xff]
    %v1663 = vld [vmem:[#allocation2 + $0xe0] sm:$0xff]
    %v1664 = vld [vmem:[#allocation2 + $0xf0] sm:$0xff]
    %1665 = vst [vmem:[#allocation3] sm:$0xff] %v1651
    %1666 = vst [vmem:[#allocation3 + $0x48] sm:$0xff] %v1652
    %1667 = vst [vmem:[#allocation3 + $0x90] sm:$0xff] %v1653
    %1668 = vst [vmem:[#allocation3 + $0xd8] sm:$0xff] %v1654
    %1669 = vst [vmem:[#allocation3 + $0x120] sm:$0xff] %v1655
    %1670 = vst [vmem:[#allocation3 + $0x168] sm:$0xff] %v1656
    %1671 = vst [vmem:[#allocation3 + $0x1b0] sm:$0xff] %v1657
    %1672 = vst [vmem:[#allocation3 + $0x1f8] sm:$0xff] %v1658
    %1673 = vst [vmem:[#allocation3 + $0x240] sm:$0xff] %v1659
    %1674 = vst [vmem:[#allocation3 + $0x288] sm:$0xff] %v1660
    %1675 = vst [vmem:[#allocation3 + $0x2d0] sm:$0xff] %v1661
    %1676 = vst [vmem:[#allocation3 + $0x318] sm:$0xff] %v1662
    %1677 = vst [vmem:[#allocation3 + $0x360] sm:$0xff] %v1663
    %1678 = vst [vmem:[#allocation3 + $0x3a8] sm:$0xff] %v1664
    %v1679 = vld [vmem:[#allocation2 + $0x1] sm:$0xff]
    %v1680 = vld [vmem:[#allocation2 + $0x11] sm:$0xff]
    %v1681 = vld [vmem:[#allocation2 + $0x21] sm:$0xff]
    %v1682 = vld [vmem:[#allocation2 + $0x31] sm:$0xff]
    %v1683 = vld [vmem:[#allocation2 + $0x41] sm:$0xff]
    %v1684 = vld [vmem:[#allocation2 + $0x51] sm:$0xff]
    %v1685 = vld [vmem:[#allocation2 + $0x61] sm:$0xff]
    %v1686 = vld [vmem:[#allocation2 + $0x91] sm:$0xff]
    %v1687 = vld [vmem:[#allocation2 + $0xa1] sm:$0xff]
    %v1688 = vld [vmem:[#allocation2 + $0xb1] sm:$0xff]
    %v1689 = vld [vmem:[#allocation2 + $0xc1] sm:$0xff]
    %v1690 = vld [vmem:[#allocation2 + $0xd1] sm:$0xff]
    %v1691 = vld [vmem:[#allocation2 + $0xe1] sm:$0xff]
    %v1692 = vld [vmem:[#allocation2 + $0xf1] sm:$0xff]
    %1693 = vst [vmem:[#allocation3 + $0x8] sm:$0xff] %v1679
    %1694 = vst [vmem:[#allocation3 + $0x50] sm:$0xff] %v1680
    %1695 = vst [vmem:[#allocation3 + $0x98] sm:$0xff] %v1681
    %1696 = vst [vmem:[#allocation3 + $0xe0] sm:$0xff] %v1682
    %1697 = vst [vmem:[#allocation3 + $0x128] sm:$0xff] %v1683
    %1698 = vst [vmem:[#allocation3 + $0x170] sm:$0xff] %v1684
    %1699 = vst [vmem:[#allocation3 + $0x1b8] sm:$0xff] %v1685
    %1700 = vst [vmem:[#allocation3 + $0x200] sm:$0xff] %v1686
    %1701 = vst [vmem:[#allocation3 + $0x248] sm:$0xff] %v1687
    %1702 = vst [vmem:[#allocation3 + $0x290] sm:$0xff] %v1688
    %1703 = vst [vmem:[#allocation3 + $0x2d8] sm:$0xff] %v1689
    %1704 = vst [vmem:[#allocation3 + $0x320] sm:$0xff] %v1690
    %1705 = vst [vmem:[#allocation3 + $0x368] sm:$0xff] %v1691
    %1706 = vst [vmem:[#allocation3 + $0x3b0] sm:$0xff] %v1692
    %v1707 = vld [vmem:[#allocation2 + $0x2] sm:$0xff]
    %v1708 = vld [vmem:[#allocation2 + $0x12] sm:$0xff]
    %v1709 = vld [vmem:[#allocation2 + $0x22] sm:$0xff]
    %v1710 = vld [vmem:[#allocation2 + $0x32] sm:$0xff]
    %v1711 = vld [vmem:[#allocation2 + $0x42] sm:$0xff]
    %v1712 = vld [vmem:[#allocation2 + $0x52] sm:$0xff]
    %v1713 = vld [vmem:[#allocation2 + $0x62] sm:$0xff]
    %v1714 = vld [vmem:[#allocation2 + $0x92] sm:$0xff]
    %v1715 = vld [vmem:[#allocation2 + $0xa2] sm:$0xff]
    %v1716 = vld [vmem:[#allocation2 + $0xb2] sm:$0xff]
    %v1717 = vld [vmem:[#allocation2 + $0xc2] sm:$0xff]
    %v1718 = vld [vmem:[#allocation2 + $0xd2] sm:$0xff]
    %v1719 = vld [vmem:[#allocation2 + $0xe2] sm:$0xff]
    %v1720 = vld [vmem:[#allocation2 + $0xf2] sm:$0xff]
    %1721 = vst [vmem:[#allocation3 + $0x10] sm:$0xff] %v1707
    %1722 = vst [vmem:[#allocation3 + $0x58] sm:$0xff] %v1708
    %1723 = vst [vmem:[#allocation3 + $0xa0] sm:$0xff] %v1709
    %1724 = vst [vmem:[#allocation3 + $0xe8] sm:$0xff] %v1710
    %1725 = vst [vmem:[#allocation3 + $0x130] sm:$0xff] %v1711
    %1726 = vst [vmem:[#allocation3 + $0x178] sm:$0xff] %v1712
    %1727 = vst [vmem:[#allocation3 + $0x1c0] sm:$0xff] %v1713
    %1728 = vst [vmem:[#allocation3 + $0x208] sm:$0xff] %v1714
    %1729 = vst [vmem:[#allocation3 + $0x250] sm:$0xff] %v1715
    %1730 = vst [vmem:[#allocation3 + $0x298] sm:$0xff] %v1716
    %1731 = vst [vmem:[#allocation3 + $0x2e0] sm:$0xff] %v1717
    %1732 = vst [vmem:[#allocation3 + $0x328] sm:$0xff] %v1718
    %1733 = vst [vmem:[#allocation3 + $0x370] sm:$0xff] %v1719
    %1734 = vst [vmem:[#allocation3 + $0x3b8] sm:$0xff] %v1720
    %v1735 = vld [vmem:[%s1636] sm:$0xff]
    %v1736 = vld [vmem:[%s1636 + $0x10] sm:$0xff]
    %v1737 = vld [vmem:[%s1636 + $0x20] sm:$0xff]
    %v1738 = vld [vmem:[%s1636 + $0x30] sm:$0xff]
    %v1739 = vld [vmem:[%s1636 + $0x40] sm:$0xff]
    %v1740 = vld [vmem:[%s1636 + $0x50] sm:$0xff]
    %v1741 = vld [vmem:[%s1636 + $0x60] sm:$0xff]
    %v1742 = vld [vmem:[%s1636 + $0x90] sm:$0xff]
    %v1743 = vld [vmem:[%s1636 + $0xa0] sm:$0xff]
    %v1744 = vld [vmem:[%s1636 + $0xb0] sm:$0xff]
    %v1745 = vld [vmem:[%s1636 + $0xc0] sm:$0xff]
    %v1746 = vld [vmem:[%s1636 + $0xd0] sm:$0xff]
    %v1747 = vld [vmem:[%s1636 + $0xe0] sm:$0xff]
    %v1748 = vld [vmem:[%s1636 + $0xf0] sm:$0xff]
    %1749 = vst [vmem:[#allocation3 + $0x18] sm:$0xff] %v1735
    %1750 = vst [vmem:[#allocation3 + $0x60] sm:$0xff] %v1736
    %1751 = vst [vmem:[#allocation3 + $0xa8] sm:$0xff] %v1737
    %1752 = vst [vmem:[#allocation3 + $0xf0] sm:$0xff] %v1738
    %1753 = vst [vmem:[#allocation3 + $0x138] sm:$0xff] %v1739
    %1754 = vst [vmem:[#allocation3 + $0x180] sm:$0xff] %v1740
    %1755 = vst [vmem:[#allocation3 + $0x1c8] sm:$0xff] %v1741
    %1756 = vst [vmem:[#allocation3 + $0x210] sm:$0xff] %v1742
    %1757 = vst [vmem:[#allocation3 + $0x258] sm:$0xff] %v1743
    %1758 = vst [vmem:[#allocation3 + $0x2a0] sm:$0xff] %v1744
    %1759 = vst [vmem:[#allocation3 + $0x2e8] sm:$0xff] %v1745
    %1760 = vst [vmem:[#allocation3 + $0x330] sm:$0xff] %v1746
    %1761 = vst [vmem:[#allocation3 + $0x378] sm:$0xff] %v1747
    %1762 = vst [vmem:[#allocation3 + $0x3c0] sm:$0xff] %v1748
    %v1763 = vld [vmem:[%s1636 + $0x1] sm:$0xff]
    %v1764 = vld [vmem:[%s1636 + $0x11] sm:$0xff]
    %v1765 = vld [vmem:[%s1636 + $0x21] sm:$0xff]
    %v1766 = vld [vmem:[%s1636 + $0x31] sm:$0xff]
    %v1767 = vld [vmem:[%s1636 + $0x41] sm:$0xff]
    %v1768 = vld [vmem:[%s1636 + $0x51] sm:$0xff]
    %v1769 = vld [vmem:[%s1636 + $0x61] sm:$0xff]
    %v1770 = vld [vmem:[%s1636 + $0x91] sm:$0xff]
    %v1771 = vld [vmem:[%s1636 + $0xa1] sm:$0xff]
    %v1772 = vld [vmem:[%s1636 + $0xb1] sm:$0xff]
    %v1773 = vld [vmem:[%s1636 + $0xc1] sm:$0xff]
    %v1774 = vld [vmem:[%s1636 + $0xd1] sm:$0xff]
    %v1775 = vld [vmem:[%s1636 + $0xe1] sm:$0xff]
    %v1776 = vld [vmem:[%s1636 + $0xf1] sm:$0xff]
    %1777 = vst [vmem:[#allocation3 + $0x20] sm:$0xff] %v1763
    %1778 = vst [vmem:[#allocation3 + $0x68] sm:$0xff] %v1764
    %1779 = vst [vmem:[#allocation3 + $0xb0] sm:$0xff] %v1765
    %1780 = vst [vmem:[#allocation3 + $0xf8] sm:$0xff] %v1766
    %1781 = vst [vmem:[#allocation3 + $0x140] sm:$0xff] %v1767
    %1782 = vst [vmem:[#allocation3 + $0x188] sm:$0xff] %v1768
    %1783 = vst [vmem:[#allocation3 + $0x1d0] sm:$0xff] %v1769
    %1784 = vst [vmem:[#allocation3 + $0x218] sm:$0xff] %v1770
    %1785 = vst [vmem:[#allocation3 + $0x260] sm:$0xff] %v1771
    %1786 = vst [vmem:[#allocation3 + $0x2a8] sm:$0xff] %v1772
    %1787 = vst [vmem:[#allocation3 + $0x2f0] sm:$0xff] %v1773
    %1788 = vst [vmem:[#allocation3 + $0x338] sm:$0xff] %v1774
    %1789 = vst [vmem:[#allocation3 + $0x380] sm:$0xff] %v1775
    %1790 = vst [vmem:[#allocation3 + $0x3c8] sm:$0xff] %v1776
    %v1791 = vld [vmem:[%s1636 + $0x2] sm:$0xff]
    %v1792 = vld [vmem:[%s1636 + $0x12] sm:$0xff]
    %v1793 = vld [vmem:[%s1636 + $0x22] sm:$0xff]
    %v1794 = vld [vmem:[%s1636 + $0x32] sm:$0xff]
    %v1795 = vld [vmem:[%s1636 + $0x42] sm:$0xff]
    %v1796 = vld [vmem:[%s1636 + $0x52] sm:$0xff]
    %v1797 = vld [vmem:[%s1636 + $0x62] sm:$0xff]
    %v1798 = vld [vmem:[%s1636 + $0x92] sm:$0xff]
    %v1799 = vld [vmem:[%s1636 + $0xa2] sm:$0xff]
    %v1800 = vld [vmem:[%s1636 + $0xb2] sm:$0xff]
    %v1801 = vld [vmem:[%s1636 + $0xc2] sm:$0xff]
    %v1802 = vld [vmem:[%s1636 + $0xd2] sm:$0xff]
    %v1803 = vld [vmem:[%s1636 + $0xe2] sm:$0xff]
    %v1804 = vld [vmem:[%s1636 + $0xf2] sm:$0xff]
    %1805 = vst [vmem:[#allocation3 + $0x28] sm:$0xff] %v1791
    %1806 = vst [vmem:[#allocation3 + $0x70] sm:$0xff] %v1792
    %1807 = vst [vmem:[#allocation3 + $0xb8] sm:$0xff] %v1793
    %1808 = vst [vmem:[#allocation3 + $0x100] sm:$0xff] %v1794
    %1809 = vst [vmem:[#allocation3 + $0x148] sm:$0xff] %v1795
    %1810 = vst [vmem:[#allocation3 + $0x190] sm:$0xff] %v1796
    %1811 = vst [vmem:[#allocation3 + $0x1d8] sm:$0xff] %v1797
    %1812 = vst [vmem:[#allocation3 + $0x220] sm:$0xff] %v1798
    %1813 = vst [vmem:[#allocation3 + $0x268] sm:$0xff] %v1799
    %1814 = vst [vmem:[#allocation3 + $0x2b0] sm:$0xff] %v1800
    %1815 = vst [vmem:[#allocation3 + $0x2f8] sm:$0xff] %v1801
    %1816 = vst [vmem:[#allocation3 + $0x340] sm:$0xff] %v1802
    %1817 = vst [vmem:[#allocation3 + $0x388] sm:$0xff] %v1803
    %1818 = vst [vmem:[#allocation3 + $0x3d0] sm:$0xff] %v1804
    %s1819 = scalar_lea.vmem [#allocation2], 32
    %v1820 = vld [vmem:[%s1819] sm:$0xff]
    %v1821 = vld [vmem:[%s1819 + $0x10] sm:$0xff]
    %v1822 = vld [vmem:[%s1819 + $0x20] sm:$0xff]
    %v1823 = vld [vmem:[%s1819 + $0x30] sm:$0xff]
    %v1824 = vld [vmem:[%s1819 + $0x40] sm:$0xff]
    %v1825 = vld [vmem:[%s1819 + $0x50] sm:$0xff]
    %v1826 = vld [vmem:[%s1819 + $0x60] sm:$0xff]
    %v1827 = vld [vmem:[%s1819 + $0x90] sm:$0xff]
    %v1828 = vld [vmem:[%s1819 + $0xa0] sm:$0xff]
    %v1829 = vld [vmem:[%s1819 + $0xb0] sm:$0xff]
    %v1830 = vld [vmem:[%s1819 + $0xc0] sm:$0xff]
    %v1831 = vld [vmem:[%s1819 + $0xd0] sm:$0xff]
    %v1832 = vld [vmem:[%s1819 + $0xe0] sm:$0xff]
    %v1833 = vld [vmem:[%s1819 + $0xf0] sm:$0xff]
    %1834 = vst [vmem:[#allocation3 + $0x30] sm:$0xff] %v1820
    %1835 = vst [vmem:[#allocation3 + $0x78] sm:$0xff] %v1821
    %1836 = vst [vmem:[#allocation3 + $0xc0] sm:$0xff] %v1822
    %1837 = vst [vmem:[#allocation3 + $0x108] sm:$0xff] %v1823
    %1838 = vst [vmem:[#allocation3 + $0x150] sm:$0xff] %v1824
    %1839 = vst [vmem:[#allocation3 + $0x198] sm:$0xff] %v1825
    %1840 = vst [vmem:[#allocation3 + $0x1e0] sm:$0xff] %v1826
    %1841 = vst [vmem:[#allocation3 + $0x228] sm:$0xff] %v1827
    %1842 = vst [vmem:[#allocation3 + $0x270] sm:$0xff] %v1828
    %1843 = vst [vmem:[#allocation3 + $0x2b8] sm:$0xff] %v1829
    %1844 = vst [vmem:[#allocation3 + $0x300] sm:$0xff] %v1830
    %1845 = vst [vmem:[#allocation3 + $0x348] sm:$0xff] %v1831
    %1846 = vst [vmem:[#allocation3 + $0x390] sm:$0xff] %v1832
    %1847 = vst [vmem:[#allocation3 + $0x3d8] sm:$0xff] %v1833
    %v1848 = vld [vmem:[%s1819 + $0x1] sm:$0xff]
    %v1849 = vld [vmem:[%s1819 + $0x11] sm:$0xff]
    %v1850 = vld [vmem:[%s1819 + $0x21] sm:$0xff]
    %v1851 = vld [vmem:[%s1819 + $0x31] sm:$0xff]
    %v1852 = vld [vmem:[%s1819 + $0x41] sm:$0xff]
    %v1853 = vld [vmem:[%s1819 + $0x51] sm:$0xff]
    %v1854 = vld [vmem:[%s1819 + $0x61] sm:$0xff]
    %v1855 = vld [vmem:[%s1819 + $0x91] sm:$0xff]
    %v1856 = vld [vmem:[%s1819 + $0xa1] sm:$0xff]
    %v1857 = vld [vmem:[%s1819 + $0xb1] sm:$0xff]
    %v1858 = vld [vmem:[%s1819 + $0xc1] sm:$0xff]
    %v1859 = vld [vmem:[%s1819 + $0xd1] sm:$0xff]
    %v1860 = vld [vmem:[%s1819 + $0xe1] sm:$0xff]
    %v1861 = vld [vmem:[%s1819 + $0xf1] sm:$0xff]
    %1862 = vst [vmem:[#allocation3 + $0x38] sm:$0xff] %v1848
    %1863 = vst [vmem:[#allocation3 + $0x80] sm:$0xff] %v1849
    %1864 = vst [vmem:[#allocation3 + $0xc8] sm:$0xff] %v1850
    %1865 = vst [vmem:[#allocation3 + $0x110] sm:$0xff] %v1851
    %1866 = vst [vmem:[#allocation3 + $0x158] sm:$0xff] %v1852
    %1867 = vst [vmem:[#allocation3 + $0x1a0] sm:$0xff] %v1853
    %1868 = vst [vmem:[#allocation3 + $0x1e8] sm:$0xff] %v1854
    %1869 = vst [vmem:[#allocation3 + $0x230] sm:$0xff] %v1855
    %1870 = vst [vmem:[#allocation3 + $0x278] sm:$0xff] %v1856
    %1871 = vst [vmem:[#allocation3 + $0x2c0] sm:$0xff] %v1857
    %1872 = vst [vmem:[#allocation3 + $0x308] sm:$0xff] %v1858
    %1873 = vst [vmem:[#allocation3 + $0x350] sm:$0xff] %v1859
    %1874 = vst [vmem:[#allocation3 + $0x398] sm:$0xff] %v1860
    %1875 = vst [vmem:[#allocation3 + $0x3e0] sm:$0xff] %v1861
    %v1876 = vld [vmem:[%s1819 + $0x2] sm:$0xff]
    %v1877 = vld [vmem:[%s1819 + $0x12] sm:$0xff]
    %v1878 = vld [vmem:[%s1819 + $0x22] sm:$0xff]
    %v1879 = vld [vmem:[%s1819 + $0x32] sm:$0xff]
    %v1880 = vld [vmem:[%s1819 + $0x42] sm:$0xff]
    %v1881 = vld [vmem:[%s1819 + $0x52] sm:$0xff]
    %v1882 = vld [vmem:[%s1819 + $0x62] sm:$0xff]
    %v1883 = vld [vmem:[%s1819 + $0x92] sm:$0xff]
    %v1884 = vld [vmem:[%s1819 + $0xa2] sm:$0xff]
    %v1885 = vld [vmem:[%s1819 + $0xb2] sm:$0xff]
    %v1886 = vld [vmem:[%s1819 + $0xc2] sm:$0xff]
    %v1887 = vld [vmem:[%s1819 + $0xd2] sm:$0xff]
    %v1888 = vld [vmem:[%s1819 + $0xe2] sm:$0xff]
    %v1889 = vld [vmem:[%s1819 + $0xf2] sm:$0xff]
    %1890 = vst [vmem:[#allocation3 + $0x40] sm:$0xff] %v1876
    %1891 = vst [vmem:[#allocation3 + $0x88] sm:$0xff] %v1877
    %1892 = vst [vmem:[#allocation3 + $0xd0] sm:$0xff] %v1878
    %1893 = vst [vmem:[#allocation3 + $0x118] sm:$0xff] %v1879
    %1894 = vst [vmem:[#allocation3 + $0x160] sm:$0xff] %v1880
    %1895 = vst [vmem:[#allocation3 + $0x1a8] sm:$0xff] %v1881
    %1896 = vst [vmem:[#allocation3 + $0x1f0] sm:$0xff] %v1882
    %1897 = vst [vmem:[#allocation3 + $0x238] sm:$0xff] %v1883
    %1898 = vst [vmem:[#allocation3 + $0x280] sm:$0xff] %v1884
    %1899 = vst [vmem:[#allocation3 + $0x2c8] sm:$0xff] %v1885
    %1900 = vst [vmem:[#allocation3 + $0x310] sm:$0xff] %v1886
    %1901 = vst [vmem:[#allocation3 + $0x358] sm:$0xff] %v1887
    %1902 = vst [vmem:[#allocation3 + $0x3a0] sm:$0xff] %v1888
    %1903 = vst [vmem:[#allocation3 + $0x3e8] sm:$0xff] %v1889
    %v1904 = vld [vmem:[#allocation3] sm:$0xff]
    %v1905 = vld [vmem:[#allocation3 + $0x8] sm:$0xff]
    %v1906 = vld [vmem:[#allocation3 + $0x10] sm:$0xff]
    %v1907 = vld [vmem:[#allocation3 + $0x18] sm:$0xff]
    %v1908 = vld [vmem:[#allocation3 + $0x20] sm:$0xff]
    %v1909 = vld [vmem:[#allocation3 + $0x28] sm:$0xff]
    %v1910 = vld [vmem:[#allocation3 + $0x30] sm:$0xff]
    %v1911 = vld [vmem:[#allocation3 + $0x38] sm:$0xff]
    %v1912 = vld [vmem:[#allocation3 + $0x40] sm:$0xff]
    %v1913 = vld [vmem:[#allocation3 + $0x48] sm:$0xff]
    %v1914 = vld [vmem:[#allocation3 + $0x50] sm:$0xff]
    %v1915 = vld [vmem:[#allocation3 + $0x58] sm:$0xff]
    %v1916 = vld [vmem:[#allocation3 + $0x60] sm:$0xff]
    %v1917 = vld [vmem:[#allocation3 + $0x68] sm:$0xff]
    %v1918 = vld [vmem:[#allocation3 + $0x70] sm:$0xff]
    %v1919 = vld [vmem:[#allocation3 + $0x78] sm:$0xff]
    %v1920 = vld [vmem:[#allocation3 + $0x80] sm:$0xff]
    %v1921 = vld [vmem:[#allocation3 + $0x88] sm:$0xff]
    %v1922 = vld [vmem:[#allocation3 + $0x90] sm:$0xff]
    %v1923 = vld [vmem:[#allocation3 + $0x98] sm:$0xff]
    %v1924 = vld [vmem:[#allocation3 + $0xa0] sm:$0xff]
    %v1925 = vld [vmem:[#allocation3 + $0xa8] sm:$0xff]
    %v1926 = vld [vmem:[#allocation3 + $0xb0] sm:$0xff]
    %v1927 = vld [vmem:[#allocation3 + $0xb8] sm:$0xff]
    %v1928 = vld [vmem:[#allocation3 + $0xc0] sm:$0xff]
    %v1929 = vld [vmem:[#allocation3 + $0xc8] sm:$0xff]
    %v1930 = vld [vmem:[#allocation3 + $0xd0] sm:$0xff]
    %v1931 = vld [vmem:[#allocation3 + $0xd8] sm:$0xff]
    %v1932 = vld [vmem:[#allocation3 + $0xe0] sm:$0xff]
    %v1933 = vld [vmem:[#allocation3 + $0xe8] sm:$0xff]
    %v1934 = vld [vmem:[#allocation3 + $0xf0] sm:$0xff]
    %v1935 = vld [vmem:[#allocation3 + $0xf8] sm:$0xff]
    %v1936 = vld [vmem:[#allocation3 + $0x100] sm:$0xff]
    %v1937 = vld [vmem:[#allocation3 + $0x108] sm:$0xff]
    %v1938 = vld [vmem:[#allocation3 + $0x110] sm:$0xff]
    %v1939 = vld [vmem:[#allocation3 + $0x118] sm:$0xff]
    %v1940 = vld [vmem:[#allocation3 + $0x120] sm:$0xff]
    %v1941 = vld [vmem:[#allocation3 + $0x128] sm:$0xff]
    %v1942 = vld [vmem:[#allocation3 + $0x130] sm:$0xff]
    %v1943 = vld [vmem:[#allocation3 + $0x138] sm:$0xff]
    %v1944 = vld [vmem:[#allocation3 + $0x140] sm:$0xff]
    %v1945 = vld [vmem:[#allocation3 + $0x148] sm:$0xff]
    %v1946 = vld [vmem:[#allocation3 + $0x150] sm:$0xff]
    %v1947 = vld [vmem:[#allocation3 + $0x158] sm:$0xff]
    %v1948 = vld [vmem:[#allocation3 + $0x160] sm:$0xff]
    %v1949 = vld [vmem:[#allocation3 + $0x168] sm:$0xff]
    %v1950 = vld [vmem:[#allocation3 + $0x170] sm:$0xff]
    %v1951 = vld [vmem:[#allocation3 + $0x178] sm:$0xff]
    %v1952 = vld [vmem:[#allocation3 + $0x180] sm:$0xff]
    %v1953 = vld [vmem:[#allocation3 + $0x188] sm:$0xff]
    %v1954 = vld [vmem:[#allocation3 + $0x190] sm:$0xff]
    %v1955 = vld [vmem:[#allocation3 + $0x198] sm:$0xff]
    %v1956 = vld [vmem:[#allocation3 + $0x1a0] sm:$0xff]
    %v1957 = vld [vmem:[#allocation3 + $0x1a8] sm:$0xff]
    %v1958 = vld [vmem:[#allocation3 + $0x1b0] sm:$0xff]
    %v1959 = vld [vmem:[#allocation3 + $0x1b8] sm:$0xff]
    %v1960 = vld [vmem:[#allocation3 + $0x1c0] sm:$0xff]
    %v1961 = vld [vmem:[#allocation3 + $0x1c8] sm:$0xff]
    %v1962 = vld [vmem:[#allocation3 + $0x1d0] sm:$0xff]
    %v1963 = vld [vmem:[#allocation3 + $0x1d8] sm:$0xff]
    %v1964 = vld [vmem:[#allocation3 + $0x1e0] sm:$0xff]
    %v1965 = vld [vmem:[#allocation3 + $0x1e8] sm:$0xff]
    %v1966 = vld [vmem:[#allocation3 + $0x1f0] sm:$0xff]
    %v1967 = vld [vmem:[#allocation3 + $0x1f8] sm:$0xff]
    %v1968 = vld [vmem:[#allocation3 + $0x200] sm:$0xff]
    %v1969 = vld [vmem:[#allocation3 + $0x208] sm:$0xff]
    %v1970 = vld [vmem:[#allocation3 + $0x210] sm:$0xff]
    %v1971 = vld [vmem:[#allocation3 + $0x218] sm:$0xff]
    %v1972 = vld [vmem:[#allocation3 + $0x220] sm:$0xff]
    %v1973 = vld [vmem:[#allocation3 + $0x228] sm:$0xff]
    %v1974 = vld [vmem:[#allocation3 + $0x230] sm:$0xff]
    %v1975 = vld [vmem:[#allocation3 + $0x238] sm:$0xff]
    %v1976 = vld [vmem:[#allocation3 + $0x240] sm:$0xff]
    %v1977 = vld [vmem:[#allocation3 + $0x248] sm:$0xff]
    %v1978 = vld [vmem:[#allocation3 + $0x250] sm:$0xff]
    %v1979 = vld [vmem:[#allocation3 + $0x258] sm:$0xff]
    %v1980 = vld [vmem:[#allocation3 + $0x260] sm:$0xff]
    %v1981 = vld [vmem:[#allocation3 + $0x268] sm:$0xff]
    %v1982 = vld [vmem:[#allocation3 + $0x270] sm:$0xff]
    %v1983 = vld [vmem:[#allocation3 + $0x278] sm:$0xff]
    %v1984 = vld [vmem:[#allocation3 + $0x280] sm:$0xff]
    %v1985 = vld [vmem:[#allocation3 + $0x288] sm:$0xff]
    %v1986 = vld [vmem:[#allocation3 + $0x290] sm:$0xff]
    %v1987 = vld [vmem:[#allocation3 + $0x298] sm:$0xff]
    %v1988 = vld [vmem:[#allocation3 + $0x2a0] sm:$0xff]
    %v1989 = vld [vmem:[#allocation3 + $0x2a8] sm:$0xff]
    %v1990 = vld [vmem:[#allocation3 + $0x2b0] sm:$0xff]
    %v1991 = vld [vmem:[#allocation3 + $0x2b8] sm:$0xff]
    %v1992 = vld [vmem:[#allocation3 + $0x2c0] sm:$0xff]
    %v1993 = vld [vmem:[#allocation3 + $0x2c8] sm:$0xff]
    %v1994 = vld [vmem:[#allocation3 + $0x2d0] sm:$0xff]
    %v1995 = vld [vmem:[#allocation3 + $0x2d8] sm:$0xff]
    %v1996 = vld [vmem:[#allocation3 + $0x2e0] sm:$0xff]
    %v1997 = vld [vmem:[#allocation3 + $0x2e8] sm:$0xff]
    %v1998 = vld [vmem:[#allocation3 + $0x2f0] sm:$0xff]
    %v1999 = vld [vmem:[#allocation3 + $0x2f8] sm:$0xff]
    %v2000 = vld [vmem:[#allocation3 + $0x300] sm:$0xff]
    %v2001 = vld [vmem:[#allocation3 + $0x308] sm:$0xff]
    %v2002 = vld [vmem:[#allocation3 + $0x310] sm:$0xff]
    %v2003 = vld [vmem:[#allocation3 + $0x318] sm:$0xff]
    %v2004 = vld [vmem:[#allocation3 + $0x320] sm:$0xff]
    %v2005 = vld [vmem:[#allocation3 + $0x328] sm:$0xff]
    %v2006 = vld [vmem:[#allocation3 + $0x330] sm:$0xff]
    %v2007 = vld [vmem:[#allocation3 + $0x338] sm:$0xff]
    %v2008 = vld [vmem:[#allocation3 + $0x340] sm:$0xff]
    %v2009 = vld [vmem:[#allocation3 + $0x348] sm:$0xff]
    %v2010 = vld [vmem:[#allocation3 + $0x350] sm:$0xff]
    %v2011 = vld [vmem:[#allocation3 + $0x358] sm:$0xff]
    %v2012 = vld [vmem:[#allocation3 + $0x360] sm:$0xff]
    %v2013 = vld [vmem:[#allocation3 + $0x368] sm:$0xff]
    %v2014 = vld [vmem:[#allocation3 + $0x370] sm:$0xff]
    %v2015 = vld [vmem:[#allocation3 + $0x378] sm:$0xff]
    %v2016 = vld [vmem:[#allocation3 + $0x380] sm:$0xff]
    %v2017 = vld [vmem:[#allocation3 + $0x388] sm:$0xff]
    %v2018 = vld [vmem:[#allocation3 + $0x390] sm:$0xff]
    %v2019 = vld [vmem:[#allocation3 + $0x398] sm:$0xff]
    %v2020 = vld [vmem:[#allocation3 + $0x3a0] sm:$0xff]
    %v2021 = vld [vmem:[#allocation3 + $0x3a8] sm:$0xff]
    %v2022 = vld [vmem:[#allocation3 + $0x3b0] sm:$0xff]
    %v2023 = vld [vmem:[#allocation3 + $0x3b8] sm:$0xff]
    %v2024 = vld [vmem:[#allocation3 + $0x3c0] sm:$0xff]
    %v2025 = vld [vmem:[#allocation3 + $0x3c8] sm:$0xff]
    %v2026 = vld [vmem:[#allocation3 + $0x3d0] sm:$0xff]
    %v2027 = vld [vmem:[#allocation3 + $0x3d8] sm:$0xff]
    %v2028 = vld [vmem:[#allocation3 + $0x3e0] sm:$0xff]
    %v2029 = vld [vmem:[#allocation3 + $0x3e8] sm:$0xff]
    %v2030 = vpack.c.bf16 %v1913, %v1904
    %v2031 = vpack.c.bf16 %v1914, %v1905
    %v2032 = vpack.c.bf16 %v1915, %v1906
    %v2033 = vpack.c.bf16 %v1916, %v1907
    %v2034 = vpack.c.bf16 %v1917, %v1908
    %v2035 = vpack.c.bf16 %v1918, %v1909
    %v2036 = vpack.c.bf16 %v1919, %v1910
    %v2037 = vpack.c.bf16 %v1920, %v1911
    %v2038 = vpack.c.bf16 %v1921, %v1912
    %v2039 = vpack.c.bf16 %v1931, %v1922
    %v2040 = vpack.c.bf16 %v1932, %v1923
    %v2041 = vpack.c.bf16 %v1933, %v1924
    %v2042 = vpack.c.bf16 %v1934, %v1925
    %v2043 = vpack.c.bf16 %v1935, %v1926
    %v2044 = vpack.c.bf16 %v1936, %v1927
    %v2045 = vpack.c.bf16 %v1937, %v1928
    %v2046 = vpack.c.bf16 %v1938, %v1929
    %v2047 = vpack.c.bf16 %v1939, %v1930
    %v2048 = vpack.c.bf16 %v1949, %v1940
    %v2049 = vpack.c.bf16 %v1950, %v1941
    %v2050 = vpack.c.bf16 %v1951, %v1942
    %v2051 = vpack.c.bf16 %v1952, %v1943
    %v2052 = vpack.c.bf16 %v1953, %v1944
    %v2053 = vpack.c.bf16 %v1954, %v1945
    %v2054 = vpack.c.bf16 %v1955, %v1946
    %v2055 = vpack.c.bf16 %v1956, %v1947
    %v2056 = vpack.c.bf16 %v1957, %v1948
    %v2057 = vpack.c.bf16 %v1967, %v1958
    %v2058 = vpack.c.bf16 %v1968, %v1959
    %v2059 = vpack.c.bf16 %v1969, %v1960
    %v2060 = vpack.c.bf16 %v1970, %v1961
    %v2061 = vpack.c.bf16 %v1971, %v1962
    %v2062 = vpack.c.bf16 %v1972, %v1963
    %v2063 = vpack.c.bf16 %v1973, %v1964
    %v2064 = vpack.c.bf16 %v1974, %v1965
    %v2065 = vpack.c.bf16 %v1975, %v1966
    %v2066 = vpack.c.bf16 %v1985, %v1976
    %v2067 = vpack.c.bf16 %v1986, %v1977
    %v2068 = vpack.c.bf16 %v1987, %v1978
    %v2069 = vpack.c.bf16 %v1988, %v1979
    %v2070 = vpack.c.bf16 %v1989, %v1980
    %v2071 = vpack.c.bf16 %v1990, %v1981
    %v2072 = vpack.c.bf16 %v1991, %v1982
    %v2073 = vpack.c.bf16 %v1992, %v1983
    %v2074 = vpack.c.bf16 %v1993, %v1984
    %v2075 = vpack.c.bf16 %v2003, %v1994
    %v2076 = vpack.c.bf16 %v2004, %v1995
    %v2077 = vpack.c.bf16 %v2005, %v1996
    %v2078 = vpack.c.bf16 %v2006, %v1997
    %v2079 = vpack.c.bf16 %v2007, %v1998
    %v2080 = vpack.c.bf16 %v2008, %v1999
    %v2081 = vpack.c.bf16 %v2009, %v2000
    %v2082 = vpack.c.bf16 %v2010, %v2001
    %v2083 = vpack.c.bf16 %v2011, %v2002
    %v2084 = vpack.c.bf16 %v2021, %v2012
    %v2085 = vpack.c.bf16 %v2022, %v2013
    %v2086 = vpack.c.bf16 %v2023, %v2014
    %v2087 = vpack.c.bf16 %v2024, %v2015
    %v2088 = vpack.c.bf16 %v2025, %v2016
    %v2089 = vpack.c.bf16 %v2026, %v2017
    %v2090 = vpack.c.bf16 %v2027, %v2018
    %v2091 = vpack.c.bf16 %v2028, %v2019
    %v2092 = vpack.c.bf16 %v2029, %v2020
    %v2093 = vld [vmem:[#allocation4] sm:$0xf]
    %v2094 = vld [vmem:[#allocation4 + $0x4] sm:$0xf]
    %v2095 = vld [vmem:[#allocation4 + $0x8] sm:$0xf]
    %v2096 = vld [vmem:[#allocation4 + $0xc] sm:$0xf]
    %v2097 = vld [vmem:[#allocation4 + $0x10] sm:$0xf]
    %v2098 = vld [vmem:[#allocation4 + $0x14] sm:$0xf]
    %v2099 = vld [vmem:[#allocation4 + $0x18] sm:$0xf]
    %v2100 = vld [vmem:[#allocation4 + $0x1c] sm:$0xf]
    %v2101 = vld [vmem:[#allocation4 + $0x20] sm:$0xf]
    %v2102 = vld [vmem:[#allocation4 + $0x24] sm:$0xf]
    %v2103 = vld [vmem:[#allocation4 + $0x28] sm:$0xf]
    %v2104 = vld [vmem:[#allocation4 + $0x2c] sm:$0xf]
    %v2105 = vld [vmem:[#allocation4 + $0x30] sm:$0xf]
    %v2106 = vld [vmem:[#allocation4 + $0x34] sm:$0xf]
    %v2107 = vld [vmem:[#allocation4 + $0x38] sm:$0xf]
    %v2108 = vld [vmem:[#allocation4 + $0x3c] sm:$0xf]
    %v2109 = vld [vmem:[#allocation4 + $0x40] sm:$0xf]
    %v2110 = vld [vmem:[#allocation4 + $0x44] sm:$0xf]
    %v2111 = vld [vmem:[#allocation4 + $0x48] sm:$0xf]
    %v2112 = vld [vmem:[#allocation4 + $0x4c] sm:$0xf]
    %v2113 = vld [vmem:[#allocation4 + $0x50] sm:$0xf]
    %v2114 = vld [vmem:[#allocation4 + $0x54] sm:$0xf]
    %v2115 = vld [vmem:[#allocation4 + $0x58] sm:$0xf]
    %v2116 = vld [vmem:[#allocation4 + $0x5c] sm:$0xf]
    %v2117 = vld [vmem:[#allocation4 + $0x60] sm:$0xf]
    %v2118 = vld [vmem:[#allocation4 + $0x64] sm:$0xf]
    %v2119 = vld [vmem:[#allocation4 + $0x68] sm:$0xf]
    %v2120 = vld [vmem:[#allocation4 + $0x6c] sm:$0xf]
    %v2121 = vld [vmem:[#allocation4 + $0x70] sm:$0xf]
    %v2122 = vld [vmem:[#allocation4 + $0x74] sm:$0xf]
    %v2123 = vld [vmem:[#allocation4 + $0x78] sm:$0xf]
    %v2124 = vld [vmem:[#allocation4 + $0x7c] sm:$0xf]
    %v2125 = vld [vmem:[#allocation4 + $0x80] sm:$0xf]
    %v2126 = vld [vmem:[#allocation4 + $0x84] sm:$0xf]
    %v2127 = vld [vmem:[#allocation4 + $0x88] sm:$0xf]
    %v2128 = vld [vmem:[#allocation4 + $0x8c] sm:$0xf]
    %v2129 = vld [vmem:[#allocation4 + $0x90] sm:$0xf]
    %v2130 = vld [vmem:[#allocation4 + $0x94] sm:$0xf]
    %v2131 = vld [vmem:[#allocation4 + $0x98] sm:$0xf]
    %v2132 = vld [vmem:[#allocation4 + $0x9c] sm:$0xf]
    %v2133 = vld [vmem:[#allocation4 + $0xa0] sm:$0xf]
    %v2134 = vld [vmem:[#allocation4 + $0xa4] sm:$0xf]
    %v2135 = vld [vmem:[#allocation4 + $0xa8] sm:$0xf]
    %v2136 = vld [vmem:[#allocation4 + $0xac] sm:$0xf]
    %v2137 = vld [vmem:[#allocation4 + $0xb0] sm:$0xf]
    %v2138 = vld [vmem:[#allocation4 + $0xb4] sm:$0xf]
    %v2139 = vld [vmem:[#allocation4 + $0xb8] sm:$0xf]
    %v2140 = vld [vmem:[#allocation4 + $0xbc] sm:$0xf]
    %v2141 = vld [vmem:[#allocation4 + $0xc0] sm:$0xf]
    %v2142 = vld [vmem:[#allocation4 + $0xc4] sm:$0xf]
    %v2143 = vld [vmem:[#allocation4 + $0xc8] sm:$0xf]
    %v2144 = vld [vmem:[#allocation4 + $0xcc] sm:$0xf]
    %v2145 = vld [vmem:[#allocation4 + $0xd0] sm:$0xf]
    %v2146 = vld [vmem:[#allocation4 + $0xd4] sm:$0xf]
    %v2147 = vld [vmem:[#allocation4 + $0xd8] sm:$0xf]
    %v2148 = vld [vmem:[#allocation4 + $0xdc] sm:$0xf]
    %v2149 = vld [vmem:[#allocation4 + $0xe0] sm:$0xf]
    %v2150 = vld [vmem:[#allocation4 + $0xe4] sm:$0xf]
    %v2151 = vld [vmem:[#allocation4 + $0xe8] sm:$0xf]
    %v2152 = vld [vmem:[#allocation4 + $0xec] sm:$0xf]
    %v2153 = vld [vmem:[#allocation4 + $0xf0] sm:$0xf]
    %v2154 = vld [vmem:[#allocation4 + $0xf4] sm:$0xf]
    %v2155 = vld [vmem:[#allocation4 + $0xf8] sm:$0xf]
    %v2156 = vld [vmem:[#allocation4 + $0xfc] sm:$0xf]
    %v2157 = vld [vmem:[#allocation4 + $0x100] sm:$0xf]
    %v2158 = vld [vmem:[#allocation4 + $0x104] sm:$0xf]
    %v2159 = vld [vmem:[#allocation4 + $0x108] sm:$0xf]
    %v2160 = vld [vmem:[#allocation4 + $0x10c] sm:$0xf]
    %v2161 = vld [vmem:[#allocation4 + $0x110] sm:$0xf]
    %v2162 = vld [vmem:[#allocation4 + $0x114] sm:$0xf]
    %v2163 = vld [vmem:[#allocation4 + $0x118] sm:$0xf]
    %v2164 = vld [vmem:[#allocation4 + $0x11c] sm:$0xf]
    %v2165 = vld [vmem:[#allocation4 + $0x120] sm:$0xf]
    %v2166 = vld [vmem:[#allocation4 + $0x124] sm:$0xf]
    %v2167 = vld [vmem:[#allocation4 + $0x128] sm:$0xf]
    %v2168 = vld [vmem:[#allocation4 + $0x12c] sm:$0xf]
    %v2169 = vld [vmem:[#allocation4 + $0x130] sm:$0xf]
    %v2170 = vld [vmem:[#allocation4 + $0x134] sm:$0xf]
    %v2171 = vld [vmem:[#allocation4 + $0x138] sm:$0xf]
    %v2172 = vld [vmem:[#allocation4 + $0x13c] sm:$0xf]
    %v2173 = vld [vmem:[#allocation4 + $0x140] sm:$0xf]
    %v2174 = vld [vmem:[#allocation4 + $0x144] sm:$0xf]
    %v2175 = vld [vmem:[#allocation4 + $0x148] sm:$0xf]
    %v2176 = vld [vmem:[#allocation4 + $0x14c] sm:$0xf]
    %v2177 = vld [vmem:[#allocation4 + $0x150] sm:$0xf]
    %v2178 = vld [vmem:[#allocation4 + $0x154] sm:$0xf]
    %v2179 = vld [vmem:[#allocation4 + $0x158] sm:$0xf]
    %v2180 = vld [vmem:[#allocation4 + $0x15c] sm:$0xf]
    %v2181 = vld [vmem:[#allocation4 + $0x160] sm:$0xf]
    %v2182 = vld [vmem:[#allocation4 + $0x164] sm:$0xf]
    %v2183 = vld [vmem:[#allocation4 + $0x168] sm:$0xf]
    %v2184 = vld [vmem:[#allocation4 + $0x16c] sm:$0xf]
    %v2185 = vld [vmem:[#allocation4 + $0x170] sm:$0xf]
    %v2186 = vld [vmem:[#allocation4 + $0x174] sm:$0xf]
    %v2187 = vld [vmem:[#allocation4 + $0x178] sm:$0xf]
    %v2188 = vld [vmem:[#allocation4 + $0x17c] sm:$0xf]
    %v2189 = vld [vmem:[#allocation4 + $0x180] sm:$0xf]
    %v2190 = vld [vmem:[#allocation4 + $0x184] sm:$0xf]
    %v2191 = vld [vmem:[#allocation4 + $0x188] sm:$0xf]
    %v2192 = vld [vmem:[#allocation4 + $0x18c] sm:$0xf]
    %v2193 = vld [vmem:[#allocation4 + $0x190] sm:$0xf]
    %v2194 = vld [vmem:[#allocation4 + $0x194] sm:$0xf]
    %v2195 = vld [vmem:[#allocation4 + $0x198] sm:$0xf]
    %v2196 = vld [vmem:[#allocation4 + $0x19c] sm:$0xf]
    %v2197 = vld [vmem:[#allocation4 + $0x1a0] sm:$0xf]
    %v2198 = vld [vmem:[#allocation4 + $0x1a4] sm:$0xf]
    %v2199 = vld [vmem:[#allocation4 + $0x1a8] sm:$0xf]
    %v2200 = vld [vmem:[#allocation4 + $0x1ac] sm:$0xf]
    %v2201 = vld [vmem:[#allocation4 + $0x1b0] sm:$0xf]
    %v2202 = vld [vmem:[#allocation4 + $0x1b4] sm:$0xf]
    %v2203 = vld [vmem:[#allocation4 + $0x1b8] sm:$0xf]
    %v2204 = vld [vmem:[#allocation4 + $0x1bc] sm:$0xf]
    %v2205 = vld [vmem:[#allocation4 + $0x1c0] sm:$0xf]
    %v2206 = vld [vmem:[#allocation4 + $0x1c4] sm:$0xf]
    %v2207 = vld [vmem:[#allocation4 + $0x1c8] sm:$0xf]
    %v2208 = vld [vmem:[#allocation4 + $0x1cc] sm:$0xf]
    %v2209 = vld [vmem:[#allocation4 + $0x1d0] sm:$0xf]
    %v2210 = vld [vmem:[#allocation4 + $0x1d4] sm:$0xf]
    %v2211 = vld [vmem:[#allocation4 + $0x1d8] sm:$0xf]
    %v2212 = vld [vmem:[#allocation4 + $0x1dc] sm:$0xf]
    %v2213 = vld [vmem:[#allocation4 + $0x1e0] sm:$0xf]
    %v2214 = vld [vmem:[#allocation4 + $0x1e4] sm:$0xf]
    %v2215 = vld [vmem:[#allocation4 + $0x1e8] sm:$0xf]
    %v2216 = vld [vmem:[#allocation4 + $0x1ec] sm:$0xf]
    %v2217 = vld [vmem:[#allocation4 + $0x1f0] sm:$0xf]
    %v2218 = vld [vmem:[#allocation4 + $0x1f4] sm:$0xf]
    %v2219 = vld [vmem:[#allocation4 + $0x1f8] sm:$0xf]
    %v2220 = vld [vmem:[#allocation4 + $0x1fc] sm:$0xf]
    %v2221 = vld [vmem:[#allocation4 + $0x200] sm:$0xf]
    %v2222 = vld [vmem:[#allocation4 + $0x204] sm:$0xf]
    %v2223 = vld [vmem:[#allocation4 + $0x208] sm:$0xf]
    %v2224 = vld [vmem:[#allocation4 + $0x20c] sm:$0xf]
    %v2225 = vld [vmem:[#allocation4 + $0x210] sm:$0xf]
    %v2226 = vld [vmem:[#allocation4 + $0x214] sm:$0xf]
    %v2227 = vld [vmem:[#allocation4 + $0x218] sm:$0xf]
    %v2228 = vld [vmem:[#allocation4 + $0x21c] sm:$0xf]
    %v2229 = vld [vmem:[#allocation4 + $0x220] sm:$0xf]
    %v2230 = vld [vmem:[#allocation4 + $0x224] sm:$0xf]
    %v2231 = vld [vmem:[#allocation4 + $0x228] sm:$0xf]
    %v2232 = vld [vmem:[#allocation4 + $0x22c] sm:$0xf]
    %v2233 = vld [vmem:[#allocation4 + $0x230] sm:$0xf]
    %v2234 = vld [vmem:[#allocation4 + $0x234] sm:$0xf]
    %v2235 = vld [vmem:[#allocation4 + $0x238] sm:$0xf]
    %v2236 = vld [vmem:[#allocation4 + $0x23c] sm:$0xf]
    %v2381 = vunpack.c.l.b16 %v2093
    %v2382 = vunpack.c.l.b16 %v2094
    %v2383 = vunpack.c.l.b16 %v2095
    %v2384 = vunpack.c.l.b16 %v2096
    %v2385 = vunpack.c.l.b16 %v2097
    %v2386 = vunpack.c.l.b16 %v2098
    %v2387 = vunpack.c.l.b16 %v2099
    %v2388 = vunpack.c.l.b16 %v2100
    %v2389 = vunpack.c.l.b16 %v2101
    %v2390 = vunpack.c.l.b16 %v2102
    %v2391 = vunpack.c.l.b16 %v2103
    %v2392 = vunpack.c.l.b16 %v2104
    %v2393 = vunpack.c.l.b16 %v2105
    %v2394 = vunpack.c.l.b16 %v2106
    %v2395 = vunpack.c.l.b16 %v2107
    %v2396 = vunpack.c.l.b16 %v2108
    %v2397 = vunpack.c.l.b16 %v2109
    %v2398 = vunpack.c.l.b16 %v2110
    %v2399 = vunpack.c.l.b16 %v2111
    %v2400 = vunpack.c.l.b16 %v2112
    %v2401 = vunpack.c.l.b16 %v2113
    %v2402 = vunpack.c.l.b16 %v2114
    %v2403 = vunpack.c.l.b16 %v2115
    %v2404 = vunpack.c.l.b16 %v2116
    %v2405 = vunpack.c.l.b16 %v2117
    %v2406 = vunpack.c.l.b16 %v2118
    %v2407 = vunpack.c.l.b16 %v2119
    %v2408 = vunpack.c.l.b16 %v2120
    %v2409 = vunpack.c.l.b16 %v2121
    %v2410 = vunpack.c.l.b16 %v2122
    %v2411 = vunpack.c.l.b16 %v2123
    %v2412 = vunpack.c.l.b16 %v2124
    %v2413 = vunpack.c.l.b16 %v2125
    %v2414 = vunpack.c.l.b16 %v2126
    %v2415 = vunpack.c.l.b16 %v2127
    %v2416 = vunpack.c.l.b16 %v2128
    %v2417 = vunpack.c.l.b16 %v2129
    %v2418 = vunpack.c.l.b16 %v2130
    %v2419 = vunpack.c.l.b16 %v2131
    %v2420 = vunpack.c.l.b16 %v2132
    %v2421 = vunpack.c.l.b16 %v2133
    %v2422 = vunpack.c.l.b16 %v2134
    %v2423 = vunpack.c.l.b16 %v2135
    %v2424 = vunpack.c.l.b16 %v2136
    %v2425 = vunpack.c.l.b16 %v2137
    %v2426 = vunpack.c.l.b16 %v2138
    %v2427 = vunpack.c.l.b16 %v2139
    %v2428 = vunpack.c.l.b16 %v2140
    %v2429 = vunpack.c.l.b16 %v2141
    %v2430 = vunpack.c.l.b16 %v2142
    %v2431 = vunpack.c.l.b16 %v2143
    %v2432 = vunpack.c.l.b16 %v2144
    %v2433 = vunpack.c.l.b16 %v2145
    %v2434 = vunpack.c.l.b16 %v2146
    %v2435 = vunpack.c.l.b16 %v2147
    %v2436 = vunpack.c.l.b16 %v2148
    %v2437 = vunpack.c.l.b16 %v2149
    %v2438 = vunpack.c.l.b16 %v2150
    %v2439 = vunpack.c.l.b16 %v2151
    %v2440 = vunpack.c.l.b16 %v2152
    %v2441 = vunpack.c.l.b16 %v2153
    %v2442 = vunpack.c.l.b16 %v2154
    %v2443 = vunpack.c.l.b16 %v2155
    %v2444 = vunpack.c.l.b16 %v2156
    %v2445 = vunpack.c.l.b16 %v2157
    %v2446 = vunpack.c.l.b16 %v2158
    %v2447 = vunpack.c.l.b16 %v2159
    %v2448 = vunpack.c.l.b16 %v2160
    %v2449 = vunpack.c.l.b16 %v2161
    %v2450 = vunpack.c.l.b16 %v2162
    %v2451 = vunpack.c.l.b16 %v2163
    %v2452 = vunpack.c.l.b16 %v2164
    %v2453 = vunpack.c.l.b16 %v2165
    %v2454 = vunpack.c.l.b16 %v2166
    %v2455 = vunpack.c.l.b16 %v2167
    %v2456 = vunpack.c.l.b16 %v2168
    %v2457 = vunpack.c.l.b16 %v2169
    %v2458 = vunpack.c.l.b16 %v2170
    %v2459 = vunpack.c.l.b16 %v2171
    %v2460 = vunpack.c.l.b16 %v2172
    %v2461 = vunpack.c.l.b16 %v2173
    %v2462 = vunpack.c.l.b16 %v2174
    %v2463 = vunpack.c.l.b16 %v2175
    %v2464 = vunpack.c.l.b16 %v2176
    %v2465 = vunpack.c.l.b16 %v2177
    %v2466 = vunpack.c.l.b16 %v2178
    %v2467 = vunpack.c.l.b16 %v2179
    %v2468 = vunpack.c.l.b16 %v2180
    %v2469 = vunpack.c.l.b16 %v2181
    %v2470 = vunpack.c.l.b16 %v2182
    %v2471 = vunpack.c.l.b16 %v2183
    %v2472 = vunpack.c.l.b16 %v2184
    %v2473 = vunpack.c.l.b16 %v2185
    %v2474 = vunpack.c.l.b16 %v2186
    %v2475 = vunpack.c.l.b16 %v2187
    %v2476 = vunpack.c.l.b16 %v2188
    %v2477 = vunpack.c.l.b16 %v2189
    %v2478 = vunpack.c.l.b16 %v2190
    %v2479 = vunpack.c.l.b16 %v2191
    %v2480 = vunpack.c.l.b16 %v2192
    %v2481 = vunpack.c.l.b16 %v2193
    %v2482 = vunpack.c.l.b16 %v2194
    %v2483 = vunpack.c.l.b16 %v2195
    %v2484 = vunpack.c.l.b16 %v2196
    %v2485 = vunpack.c.l.b16 %v2197
    %v2486 = vunpack.c.l.b16 %v2198
    %v2487 = vunpack.c.l.b16 %v2199
    %v2488 = vunpack.c.l.b16 %v2200
    %v2489 = vunpack.c.l.b16 %v2201
    %v2490 = vunpack.c.l.b16 %v2202
    %v2491 = vunpack.c.l.b16 %v2203
    %v2492 = vunpack.c.l.b16 %v2204
    %v2493 = vunpack.c.l.b16 %v2205
    %v2494 = vunpack.c.l.b16 %v2206
    %v2495 = vunpack.c.l.b16 %v2207
    %v2496 = vunpack.c.l.b16 %v2208
    %v2497 = vunpack.c.l.b16 %v2209
    %v2498 = vunpack.c.l.b16 %v2210
    %v2499 = vunpack.c.l.b16 %v2211
    %v2500 = vunpack.c.l.b16 %v2212
    %v2501 = vunpack.c.l.b16 %v2213
    %v2502 = vunpack.c.l.b16 %v2214
    %v2503 = vunpack.c.l.b16 %v2215
    %v2504 = vunpack.c.l.b16 %v2216
    %v2505 = vunpack.c.l.b16 %v2217
    %v2506 = vunpack.c.l.b16 %v2218
    %v2507 = vunpack.c.l.b16 %v2219
    %v2508 = vunpack.c.l.b16 %v2220
    %v2509 = vunpack.c.l.b16 %v2221
    %v2510 = vunpack.c.l.b16 %v2222
    %v2511 = vunpack.c.l.b16 %v2223
    %v2512 = vunpack.c.l.b16 %v2224
    %v2513 = vunpack.c.l.b16 %v2225
    %v2514 = vunpack.c.l.b16 %v2226
    %v2515 = vunpack.c.l.b16 %v2227
    %v2516 = vunpack.c.l.b16 %v2228
    %v2517 = vunpack.c.l.b16 %v2229
    %v2518 = vunpack.c.l.b16 %v2230
    %v2519 = vunpack.c.l.b16 %v2231
    %v2520 = vunpack.c.l.b16 %v2232
    %v2521 = vunpack.c.l.b16 %v2233
    %v2522 = vunpack.c.l.b16 %v2234
    %v2523 = vunpack.c.l.b16 %v2235
    %v2524 = vunpack.c.l.b16 %v2236
    %v2525 = vpack.c.b16 %v2382, %v2381
    %v2526 = vpack.c.b16 %v2384, %v2383
    %v2527 = vpack.c.b16 %v2386, %v2385
    %v2528 = vpack.c.b16 %v2388, %v2387
    %v2529 = vpack.c.b16 %v2390, %v2389
    %v2530 = vpack.c.b16 %v2392, %v2391
    %v2531 = vpack.c.b16 %v2394, %v2393
    %v2532 = vpack.c.b16 %v2396, %v2395
    %v2533 = vpack.c.b16 %v2398, %v2397
    %v2534 = vpack.c.b16 %v2400, %v2399
    %v2535 = vpack.c.b16 %v2402, %v2401
    %v2536 = vpack.c.b16 %v2404, %v2403
    %v2537 = vpack.c.b16 %v2406, %v2405
    %v2538 = vpack.c.b16 %v2408, %v2407
    %v2539 = vpack.c.b16 %v2410, %v2409
    %v2540 = vpack.c.b16 %v2412, %v2411
    %v2541 = vpack.c.b16 %v2414, %v2413
    %v2542 = vpack.c.b16 %v2416, %v2415
    %v2543 = vpack.c.b16 %v2418, %v2417
    %v2544 = vpack.c.b16 %v2420, %v2419
    %v2545 = vpack.c.b16 %v2422, %v2421
    %v2546 = vpack.c.b16 %v2424, %v2423
    %v2547 = vpack.c.b16 %v2426, %v2425
    %v2548 = vpack.c.b16 %v2428, %v2427
    %v2549 = vpack.c.b16 %v2430, %v2429
    %v2550 = vpack.c.b16 %v2432, %v2431
    %v2551 = vpack.c.b16 %v2434, %v2433
    %v2552 = vpack.c.b16 %v2436, %v2435
    %v2553 = vpack.c.b16 %v2438, %v2437
    %v2554 = vpack.c.b16 %v2440, %v2439
    %v2555 = vpack.c.b16 %v2442, %v2441
    %v2556 = vpack.c.b16 %v2444, %v2443
    %v2557 = vpack.c.b16 %v2446, %v2445
    %v2558 = vpack.c.b16 %v2448, %v2447
    %v2559 = vpack.c.b16 %v2450, %v2449
    %v2560 = vpack.c.b16 %v2452, %v2451
    %v2561 = vpack.c.b16 %v2454, %v2453
    %v2562 = vpack.c.b16 %v2456, %v2455
    %v2563 = vpack.c.b16 %v2458, %v2457
    %v2564 = vpack.c.b16 %v2460, %v2459
    %v2565 = vpack.c.b16 %v2462, %v2461
    %v2566 = vpack.c.b16 %v2464, %v2463
    %v2567 = vpack.c.b16 %v2466, %v2465
    %v2568 = vpack.c.b16 %v2468, %v2467
    %v2569 = vpack.c.b16 %v2470, %v2469
    %v2570 = vpack.c.b16 %v2472, %v2471
    %v2571 = vpack.c.b16 %v2474, %v2473
    %v2572 = vpack.c.b16 %v2476, %v2475
    %v2573 = vpack.c.b16 %v2478, %v2477
    %v2574 = vpack.c.b16 %v2480, %v2479
    %v2575 = vpack.c.b16 %v2482, %v2481
    %v2576 = vpack.c.b16 %v2484, %v2483
    %v2577 = vpack.c.b16 %v2486, %v2485
    %v2578 = vpack.c.b16 %v2488, %v2487
    %v2579 = vpack.c.b16 %v2490, %v2489
    %v2580 = vpack.c.b16 %v2492, %v2491
    %v2581 = vpack.c.b16 %v2494, %v2493
    %v2582 = vpack.c.b16 %v2496, %v2495
    %v2583 = vpack.c.b16 %v2498, %v2497
    %v2584 = vpack.c.b16 %v2500, %v2499
    %v2585 = vpack.c.b16 %v2502, %v2501
    %v2586 = vpack.c.b16 %v2504, %v2503
    %v2587 = vpack.c.b16 %v2506, %v2505
    %v2588 = vpack.c.b16 %v2508, %v2507
    %v2589 = vpack.c.b16 %v2510, %v2509
    %v2590 = vpack.c.b16 %v2512, %v2511
    %v2591 = vpack.c.b16 %v2514, %v2513
    %v2592 = vpack.c.b16 %v2516, %v2515
    %v2593 = vpack.c.b16 %v2518, %v2517
    %v2594 = vpack.c.b16 %v2520, %v2519
    %v2595 = vpack.c.b16 %v2522, %v2521
    %v2596 = vpack.c.b16 %v2524, %v2523
    %2669 = vmatprep.subr.bf16.mxu0 0
    %2670 = vmatpush1.bf16.msra.mxu0 %v2532
    %2671 = vmatprep.subr.bf16.mxu0 0
    %2672 = vmatpush1.bf16.msra.mxu0 %v2531
    %2673 = vmatprep.subr.bf16.mxu0 0
    %2674 = vmatpush1.bf16.msra.mxu0 %v2530
    %2675 = vmatprep.subr.bf16.mxu0 0
    %2676 = vmatpush1.bf16.msra.mxu0 %v2529
    %2677 = vmatprep.subr.bf16.mxu0 0
    %2678 = vmatpush1.bf16.msra.mxu0 %v2528
    %2679 = vmatprep.subr.bf16.mxu0 0
    %2680 = vmatpush1.bf16.msra.mxu0 %v2527
    %2681 = vmatprep.subr.bf16.mxu0 0
    %2682 = vmatpush1.bf16.msra.mxu0 %v2526
    %2683 = vmatprep.subr.bf16.mxu0 0
    %2684 = vmatpush1.bf16.msra.mxu0 %v2525
    %2685 = vmatprep.subr.bf16.mxu0 0
    %2686 = vmatpush2.bf16.msra.mxu0 %v2540
    %2687 = vmatprep.subr.bf16.mxu0 0
    %2688 = vmatpush2.bf16.msra.mxu0 %v2539
    %2689 = vmatprep.subr.bf16.mxu0 0
    %2690 = vmatpush2.bf16.msra.mxu0 %v2538
    %2691 = vmatprep.subr.bf16.mxu0 0
    %2692 = vmatpush2.bf16.msra.mxu0 %v2537
    %2693 = vmatprep.subr.bf16.mxu0 0
    %2694 = vmatpush2.bf16.msra.mxu0 %v2536
    %2695 = vmatprep.subr.bf16.mxu0 0
    %2696 = vmatpush2.bf16.msra.mxu0 %v2535
    %2697 = vmatprep.subr.bf16.mxu0 0
    %2698 = vmatpush2.bf16.msra.mxu0 %v2534
    %2699 = vmatprep.subr.bf16.mxu0 0
    %2700 = vmatpush2.bf16.msra.mxu0 %v2533
    %2701 = vmatprep.mubr.bf16.mxu0 %v2031
    %2702 = vmatmul.mubr.bf16.gmra.mxu0 %v2030
    %v2703 = vpop.f32.mrf.mxu0
    %v2704 = vadd.f32 0.0, %v2703
    %v2705 = vpop.f32.mrf.mxu0
    %v2706 = vpop.f32.mrf.mxu0
    %v2707 = vadd.f32 0.0, %v2706
    %v2708 = vpop.f32.mrf.mxu0
    %2709 = vmatprep.mubr.bf16.mxu0 %v2040
    %2710 = vmatmul.mubr.bf16.gmra.mxu0 %v2039
    %v2711 = vpop.f32.mrf.mxu0
    %v2712 = vadd.f32 0.0, %v2711
    %v2713 = vpop.f32.mrf.mxu0
    %v2714 = vpop.f32.mrf.mxu0
    %v2715 = vadd.f32 0.0, %v2714
    %v2716 = vpop.f32.mrf.mxu0
    %2717 = vmatprep.mubr.bf16.mxu0 %v2049
    %2718 = vmatmul.mubr.bf16.gmra.mxu0 %v2048
    %v2719 = vpop.f32.mrf.mxu0
    %v2720 = vadd.f32 0.0, %v2719
    %v2721 = vpop.f32.mrf.mxu0
    %v2722 = vpop.f32.mrf.mxu0
    %v2723 = vadd.f32 0.0, %v2722
    %v2724 = vpop.f32.mrf.mxu0
    %2725 = vmatprep.mubr.bf16.mxu0 %v2058
    %2726 = vmatmul.mubr.bf16.gmra.mxu0 %v2057
    %v2727 = vpop.f32.mrf.mxu0
    %v2728 = vadd.f32 0.0, %v2727
    %v2729 = vpop.f32.mrf.mxu0
    %v2730 = vpop.f32.mrf.mxu0
    %v2731 = vadd.f32 0.0, %v2730
    %v2732 = vpop.f32.mrf.mxu0
    %2733 = vmatprep.mubr.bf16.mxu0 %v2067
    %2734 = vmatmul.mubr.bf16.gmra.mxu0 %v2066
    %v2735 = vpop.f32.mrf.mxu0
    %v2736 = vadd.f32 0.0, %v2735
    %v2737 = vpop.f32.mrf.mxu0
    %v2738 = vpop.f32.mrf.mxu0
    %v2739 = vadd.f32 0.0, %v2738
    %v2740 = vpop.f32.mrf.mxu0
    %2741 = vmatprep.mubr.bf16.mxu0 %v2076
    %2742 = vmatmul.mubr.bf16.gmra.mxu0 %v2075
    %v2743 = vpop.f32.mrf.mxu0
    %v2744 = vadd.f32 0.0, %v2743
    %v2745 = vpop.f32.mrf.mxu0
    %v2746 = vpop.f32.mrf.mxu0
    %v2747 = vadd.f32 0.0, %v2746
    %v2748 = vpop.f32.mrf.mxu0
    %2749 = vmatprep.mubr.bf16.mxu0 %v2085
    %2750 = vmatmul.mubr.bf16.gmra.mxu0 %v2084
    %v2751 = vpop.f32.mrf.mxu0
    %v2752 = vadd.f32 0.0, %v2751
    %v2753 = vpop.f32.mrf.mxu0
    %v2754 = vpop.f32.mrf.mxu0
    %v2755 = vadd.f32 0.0, %v2754
    %v2756 = vpop.f32.mrf.mxu0
    %2757 = vdwg.mxu0
    %2758 = vmatprep.subr.bf16.mxu0 0
    %2759 = vmatpush1.bf16.msra.mxu0 %v2548
    %2760 = vmatprep.subr.bf16.mxu0 0
    %2761 = vmatpush1.bf16.msra.mxu0 %v2547
    %2762 = vmatprep.subr.bf16.mxu0 0
    %2763 = vmatpush1.bf16.msra.mxu0 %v2546
    %2764 = vmatprep.subr.bf16.mxu0 0
    %2765 = vmatpush1.bf16.msra.mxu0 %v2545
    %2766 = vmatprep.subr.bf16.mxu0 0
    %2767 = vmatpush1.bf16.msra.mxu0 %v2544
    %2768 = vmatprep.subr.bf16.mxu0 0
    %2769 = vmatpush1.bf16.msra.mxu0 %v2543
    %2770 = vmatprep.subr.bf16.mxu0 0
    %2771 = vmatpush1.bf16.msra.mxu0 %v2542
    %2772 = vmatprep.subr.bf16.mxu0 0
    %2773 = vmatpush1.bf16.msra.mxu0 %v2541
    %2774 = vmatprep.subr.bf16.mxu0 0
    %2775 = vmatpush2.bf16.msra.mxu0 %v2556
    %2776 = vmatprep.subr.bf16.mxu0 0
    %2777 = vmatpush2.bf16.msra.mxu0 %v2555
    %2778 = vmatprep.subr.bf16.mxu0 0
    %2779 = vmatpush2.bf16.msra.mxu0 %v2554
    %2780 = vmatprep.subr.bf16.mxu0 0
    %2781 = vmatpush2.bf16.msra.mxu0 %v2553
    %2782 = vmatprep.subr.bf16.mxu0 0
    %2783 = vmatpush2.bf16.msra.mxu0 %v2552
    %2784 = vmatprep.subr.bf16.mxu0 0
    %2785 = vmatpush2.bf16.msra.mxu0 %v2551
    %2786 = vmatprep.subr.bf16.mxu0 0
    %2787 = vmatpush2.bf16.msra.mxu0 %v2550
    %2788 = vmatprep.subr.bf16.mxu0 0
    %2789 = vmatpush2.bf16.msra.mxu0 %v2549
    %2790 = vmatprep.mubr.bf16.mxu0 %v2033
    %2791 = vmatmul.mubr.bf16.gmra.mxu0 %v2032
    %v2792 = vpop.f32.mrf.mxu0
    %v2793 = vadd.f32 %v2704, %v2792
    %v2794 = vpop.f32.mrf.mxu0
    %v2795 = vpop.f32.mrf.mxu0
    %v2796 = vadd.f32 %v2707, %v2795
    %v2797 = vpop.f32.mrf.mxu0
    %2798 = vmatprep.mubr.bf16.mxu0 %v2042
    %2799 = vmatmul.mubr.bf16.gmra.mxu0 %v2041
    %v2800 = vpop.f32.mrf.mxu0
    %v2801 = vadd.f32 %v2712, %v2800
    %v2802 = vpop.f32.mrf.mxu0
    %v2803 = vpop.f32.mrf.mxu0
    %v2804 = vadd.f32 %v2715, %v2803
    %v2805 = vpop.f32.mrf.mxu0
    %2806 = vmatprep.mubr.bf16.mxu0 %v2051
    %2807 = vmatmul.mubr.bf16.gmra.mxu0 %v2050
    %v2808 = vpop.f32.mrf.mxu0
    %v2809 = vadd.f32 %v2720, %v2808
    %v2810 = vpop.f32.mrf.mxu0
    %v2811 = vpop.f32.mrf.mxu0
    %v2812 = vadd.f32 %v2723, %v2811
    %v2813 = vpop.f32.mrf.mxu0
    %2814 = vmatprep.mubr.bf16.mxu0 %v2060
    %2815 = vmatmul.mubr.bf16.gmra.mxu0 %v2059
    %v2816 = vpop.f32.mrf.mxu0
    %v2817 = vadd.f32 %v2728, %v2816
    %v2818 = vpop.f32.mrf.mxu0
    %v2819 = vpop.f32.mrf.mxu0
    %v2820 = vadd.f32 %v2731, %v2819
    %v2821 = vpop.f32.mrf.mxu0
    %2822 = vmatprep.mubr.bf16.mxu0 %v2069
    %2823 = vmatmul.mubr.bf16.gmra.mxu0 %v2068
    %v2824 = vpop.f32.mrf.mxu0
    %v2825 = vadd.f32 %v2736, %v2824
    %v2826 = vpop.f32.mrf.mxu0
    %v2827 = vpop.f32.mrf.mxu0
    %v2828 = vadd.f32 %v2739, %v2827
    %v2829 = vpop.f32.mrf.mxu0
    %2830 = vmatprep.mubr.bf16.mxu0 %v2078
    %2831 = vmatmul.mubr.bf16.gmra.mxu0 %v2077
    %v2832 = vpop.f32.mrf.mxu0
    %v2833 = vadd.f32 %v2744, %v2832
    %v2834 = vpop.f32.mrf.mxu0
    %v2835 = vpop.f32.mrf.mxu0
    %v2836 = vadd.f32 %v2747, %v2835
    %v2837 = vpop.f32.mrf.mxu0
    %2838 = vmatprep.mubr.bf16.mxu0 %v2087
    %2839 = vmatmul.mubr.bf16.gmra.mxu0 %v2086
    %v2840 = vpop.f32.mrf.mxu0
    %v2841 = vadd.f32 %v2752, %v2840
    %v2842 = vpop.f32.mrf.mxu0
    %v2843 = vpop.f32.mrf.mxu0
    %v2844 = vadd.f32 %v2755, %v2843
    %v2845 = vpop.f32.mrf.mxu0
    %2846 = vdwg.mxu0
    %2847 = vmatprep.subr.bf16.mxu0 0
    %2848 = vmatpush1.bf16.msra.mxu0 %v2564
    %2849 = vmatprep.subr.bf16.mxu0 0
    %2850 = vmatpush1.bf16.msra.mxu0 %v2563
    %2851 = vmatprep.subr.bf16.mxu0 0
    %2852 = vmatpush1.bf16.msra.mxu0 %v2562
    %2853 = vmatprep.subr.bf16.mxu0 0
    %2854 = vmatpush1.bf16.msra.mxu0 %v2561
    %2855 = vmatprep.subr.bf16.mxu0 0
    %2856 = vmatpush1.bf16.msra.mxu0 %v2560
    %2857 = vmatprep.subr.bf16.mxu0 0
    %2858 = vmatpush1.bf16.msra.mxu0 %v2559
    %2859 = vmatprep.subr.bf16.mxu0 0
    %2860 = vmatpush1.bf16.msra.mxu0 %v2558
    %2861 = vmatprep.subr.bf16.mxu0 0
    %2862 = vmatpush1.bf16.msra.mxu0 %v2557
    %2863 = vmatprep.subr.bf16.mxu0 0
    %2864 = vmatpush2.bf16.msra.mxu0 %v2572
    %2865 = vmatprep.subr.bf16.mxu0 0
    %2866 = vmatpush2.bf16.msra.mxu0 %v2571
    %2867 = vmatprep.subr.bf16.mxu0 0
    %2868 = vmatpush2.bf16.msra.mxu0 %v2570
    %2869 = vmatprep.subr.bf16.mxu0 0
    %2870 = vmatpush2.bf16.msra.mxu0 %v2569
    %2871 = vmatprep.subr.bf16.mxu0 0
    %2872 = vmatpush2.bf16.msra.mxu0 %v2568
    %2873 = vmatprep.subr.bf16.mxu0 0
    %2874 = vmatpush2.bf16.msra.mxu0 %v2567
    %2875 = vmatprep.subr.bf16.mxu0 0
    %2876 = vmatpush2.bf16.msra.mxu0 %v2566
    %2877 = vmatprep.subr.bf16.mxu0 0
    %2878 = vmatpush2.bf16.msra.mxu0 %v2565
    %2879 = vmatprep.mubr.bf16.mxu0 %v2035
    %2880 = vmatmul.mubr.bf16.gmra.mxu0 %v2034
    %v2881 = vpop.f32.mrf.mxu0
    %v2882 = vadd.f32 %v2793, %v2881
    %v2883 = vpop.f32.mrf.mxu0
    %v2884 = vpop.f32.mrf.mxu0
    %v2885 = vadd.f32 %v2796, %v2884
    %v2886 = vpop.f32.mrf.mxu0
    %2887 = vmatprep.mubr.bf16.mxu0 %v2044
    %2888 = vmatmul.mubr.bf16.gmra.mxu0 %v2043
    %v2889 = vpop.f32.mrf.mxu0
    %v2890 = vadd.f32 %v2801, %v2889
    %v2891 = vpop.f32.mrf.mxu0
    %v2892 = vpop.f32.mrf.mxu0
    %v2893 = vadd.f32 %v2804, %v2892
    %v2894 = vpop.f32.mrf.mxu0
    %2895 = vmatprep.mubr.bf16.mxu0 %v2053
    %2896 = vmatmul.mubr.bf16.gmra.mxu0 %v2052
    %v2897 = vpop.f32.mrf.mxu0
    %v2898 = vadd.f32 %v2809, %v2897
    %v2899 = vpop.f32.mrf.mxu0
    %v2900 = vpop.f32.mrf.mxu0
    %v2901 = vadd.f32 %v2812, %v2900
    %v2902 = vpop.f32.mrf.mxu0
    %2903 = vmatprep.mubr.bf16.mxu0 %v2062
    %2904 = vmatmul.mubr.bf16.gmra.mxu0 %v2061
    %v2905 = vpop.f32.mrf.mxu0
    %v2906 = vadd.f32 %v2817, %v2905
    %v2907 = vpop.f32.mrf.mxu0
    %v2908 = vpop.f32.mrf.mxu0
    %v2909 = vadd.f32 %v2820, %v2908
    %v2910 = vpop.f32.mrf.mxu0
    %2911 = vmatprep.mubr.bf16.mxu0 %v2071
    %2912 = vmatmul.mubr.bf16.gmra.mxu0 %v2070
    %v2913 = vpop.f32.mrf.mxu0
    %v2914 = vadd.f32 %v2825, %v2913
    %v2915 = vpop.f32.mrf.mxu0
    %v2916 = vpop.f32.mrf.mxu0
    %v2917 = vadd.f32 %v2828, %v2916
    %v2918 = vpop.f32.mrf.mxu0
    %2919 = vmatprep.mubr.bf16.mxu0 %v2080
    %2920 = vmatmul.mubr.bf16.gmra.mxu0 %v2079
    %v2921 = vpop.f32.mrf.mxu0
    %v2922 = vadd.f32 %v2833, %v2921
    %v2923 = vpop.f32.mrf.mxu0
    %v2924 = vpop.f32.mrf.mxu0
    %v2925 = vadd.f32 %v2836, %v2924
    %v2926 = vpop.f32.mrf.mxu0
    %2927 = vmatprep.mubr.bf16.mxu0 %v2089
    %2928 = vmatmul.mubr.bf16.gmra.mxu0 %v2088
    %v2929 = vpop.f32.mrf.mxu0
    %v2930 = vadd.f32 %v2841, %v2929
    %v2931 = vpop.f32.mrf.mxu0
    %v2932 = vpop.f32.mrf.mxu0
    %v2933 = vadd.f32 %v2844, %v2932
    %v2934 = vpop.f32.mrf.mxu0
    %2935 = vdwg.mxu0
    %2936 = vmatprep.subr.bf16.mxu0 0
    %2937 = vmatpush1.bf16.msra.mxu0 %v2580
    %2938 = vmatprep.subr.bf16.mxu0 0
    %2939 = vmatpush1.bf16.msra.mxu0 %v2579
    %2940 = vmatprep.subr.bf16.mxu0 0
    %2941 = vmatpush1.bf16.msra.mxu0 %v2578
    %2942 = vmatprep.subr.bf16.mxu0 0
    %2943 = vmatpush1.bf16.msra.mxu0 %v2577
    %2944 = vmatprep.subr.bf16.mxu0 0
    %2945 = vmatpush1.bf16.msra.mxu0 %v2576
    %2946 = vmatprep.subr.bf16.mxu0 0
    %2947 = vmatpush1.bf16.msra.mxu0 %v2575
    %2948 = vmatprep.subr.bf16.mxu0 0
    %2949 = vmatpush1.bf16.msra.mxu0 %v2574
    %2950 = vmatprep.subr.bf16.mxu0 0
    %2951 = vmatpush1.bf16.msra.mxu0 %v2573
    %2952 = vmatprep.subr.bf16.mxu0 0
    %2953 = vmatpush2.bf16.msra.mxu0 %v2588
    %2954 = vmatprep.subr.bf16.mxu0 0
    %2955 = vmatpush2.bf16.msra.mxu0 %v2587
    %2956 = vmatprep.subr.bf16.mxu0 0
    %2957 = vmatpush2.bf16.msra.mxu0 %v2586
    %2958 = vmatprep.subr.bf16.mxu0 0
    %2959 = vmatpush2.bf16.msra.mxu0 %v2585
    %2960 = vmatprep.subr.bf16.mxu0 0
    %2961 = vmatpush2.bf16.msra.mxu0 %v2584
    %2962 = vmatprep.subr.bf16.mxu0 0
    %2963 = vmatpush2.bf16.msra.mxu0 %v2583
    %2964 = vmatprep.subr.bf16.mxu0 0
    %2965 = vmatpush2.bf16.msra.mxu0 %v2582
    %2966 = vmatprep.subr.bf16.mxu0 0
    %2967 = vmatpush2.bf16.msra.mxu0 %v2581
    %2968 = vmatprep.mubr.bf16.mxu0 %v2037
    %2969 = vmatmul.mubr.bf16.gmra.mxu0 %v2036
    %v2970 = vpop.f32.mrf.mxu0
    %v2971 = vadd.f32 %v2882, %v2970
    %v2972 = vpop.f32.mrf.mxu0
    %v2973 = vpop.f32.mrf.mxu0
    %v2974 = vadd.f32 %v2885, %v2973
    %v2975 = vpop.f32.mrf.mxu0
    %2976 = vmatprep.mubr.bf16.mxu0 %v2046
    %2977 = vmatmul.mubr.bf16.gmra.mxu0 %v2045
    %v2978 = vpop.f32.mrf.mxu0
    %v2979 = vadd.f32 %v2890, %v2978
    %v2980 = vpop.f32.mrf.mxu0
    %v2981 = vpop.f32.mrf.mxu0
    %v2982 = vadd.f32 %v2893, %v2981
    %v2983 = vpop.f32.mrf.mxu0
    %2984 = vmatprep.mubr.bf16.mxu0 %v2055
    %2985 = vmatmul.mubr.bf16.gmra.mxu0 %v2054
    %v2986 = vpop.f32.mrf.mxu0
    %v2987 = vadd.f32 %v2898, %v2986
    %v2988 = vpop.f32.mrf.mxu0
    %v2989 = vpop.f32.mrf.mxu0
    %v2990 = vadd.f32 %v2901, %v2989
    %v2991 = vpop.f32.mrf.mxu0
    %2992 = vmatprep.mubr.bf16.mxu0 %v2064
    %2993 = vmatmul.mubr.bf16.gmra.mxu0 %v2063
    %v2994 = vpop.f32.mrf.mxu0
    %v2995 = vadd.f32 %v2906, %v2994
    %v2996 = vpop.f32.mrf.mxu0
    %v2997 = vpop.f32.mrf.mxu0
    %v2998 = vadd.f32 %v2909, %v2997
    %v2999 = vpop.f32.mrf.mxu0
    %3000 = vmatprep.mubr.bf16.mxu0 %v2073
    %3001 = vmatmul.mubr.bf16.gmra.mxu0 %v2072
    %v3002 = vpop.f32.mrf.mxu0
    %v3003 = vadd.f32 %v2914, %v3002
    %v3004 = vpop.f32.mrf.mxu0
    %v3005 = vpop.f32.mrf.mxu0
    %v3006 = vadd.f32 %v2917, %v3005
    %v3007 = vpop.f32.mrf.mxu0
    %3008 = vmatprep.mubr.bf16.mxu0 %v2082
    %3009 = vmatmul.mubr.bf16.gmra.mxu0 %v2081
    %v3010 = vpop.f32.mrf.mxu0
    %v3011 = vadd.f32 %v2922, %v3010
    %v3012 = vpop.f32.mrf.mxu0
    %v3013 = vpop.f32.mrf.mxu0
    %v3014 = vadd.f32 %v2925, %v3013
    %v3015 = vpop.f32.mrf.mxu0
    %3016 = vmatprep.mubr.bf16.mxu0 %v2091
    %3017 = vmatmul.mubr.bf16.gmra.mxu0 %v2090
    %v3018 = vpop.f32.mrf.mxu0
    %v3019 = vadd.f32 %v2930, %v3018
    %v3020 = vpop.f32.mrf.mxu0
    %v3021 = vpop.f32.mrf.mxu0
    %v3022 = vadd.f32 %v2933, %v3021
    %v3023 = vpop.f32.mrf.mxu0
    %3024 = vdwg.mxu0
    %3025 = vmatprep.subr.bf16.mxu0 0
    %3026 = vmatpush1.bf16.msra.mxu0 %v2596
    %3027 = vmatprep.subr.bf16.mxu0 0
    %3028 = vmatpush1.bf16.msra.mxu0 %v2595
    %3029 = vmatprep.subr.bf16.mxu0 0
    %3030 = vmatpush1.bf16.msra.mxu0 %v2594
    %3031 = vmatprep.subr.bf16.mxu0 0
    %3032 = vmatpush1.bf16.msra.mxu0 %v2593
    %3033 = vmatprep.subr.bf16.mxu0 0
    %3034 = vmatpush1.bf16.msra.mxu0 %v2592
    %3035 = vmatprep.subr.bf16.mxu0 0
    %3036 = vmatpush1.bf16.msra.mxu0 %v2591
    %3037 = vmatprep.subr.bf16.mxu0 0
    %3038 = vmatpush1.bf16.msra.mxu0 %v2590
    %3039 = vmatprep.subr.bf16.mxu0 0
    %3040 = vmatpush1.bf16.msra.mxu0 %v2589
    %3041 = vmatprep.subr.bf16.mxu0 0
    %3042 = vmatpush2.bf16.msra.mxu0 0
    %3043 = vmatprep.subr.bf16.mxu0 0
    %3044 = vmatpush2.bf16.msra.mxu0 0
    %3045 = vmatprep.subr.bf16.mxu0 0
    %3046 = vmatpush2.bf16.msra.mxu0 0
    %3047 = vmatprep.subr.bf16.mxu0 0
    %3048 = vmatpush2.bf16.msra.mxu0 0
    %3049 = vmatprep.subr.bf16.mxu0 0
    %3050 = vmatpush2.bf16.msra.mxu0 0
    %3051 = vmatprep.subr.bf16.mxu0 0
    %3052 = vmatpush2.bf16.msra.mxu0 0
    %3053 = vmatprep.subr.bf16.mxu0 0
    %3054 = vmatpush2.bf16.msra.mxu0 0
    %3055 = vmatprep.subr.bf16.mxu0 0
    %3056 = vmatpush2.bf16.msra.mxu0 0
    %3057 = vmatprep.mubr.bf16.mxu0 0
    %3058 = vmatmul.mubr.bf16.gmra.mxu0 %v2038
    %v3059 = vpop.f32.mrf.mxu0
    %v3060 = vadd.f32 %v2971, %v3059
    %v3061 = vpop.f32.mrf.mxu0
    %v3062 = vpop.f32.mrf.mxu0
    %v3063 = vadd.f32 %v2974, %v3062
    %v3064 = vpop.f32.mrf.mxu0
    %3065 = vmatprep.mubr.bf16.mxu0 0
    %3066 = vmatmul.mubr.bf16.gmra.mxu0 %v2047
    %v3067 = vpop.f32.mrf.mxu0
    %v3068 = vadd.f32 %v2979, %v3067
    %v3069 = vpop.f32.mrf.mxu0
    %v3070 = vpop.f32.mrf.mxu0
    %v3071 = vadd.f32 %v2982, %v3070
    %v3072 = vpop.f32.mrf.mxu0
    %3073 = vmatprep.mubr.bf16.mxu0 0
    %3074 = vmatmul.mubr.bf16.gmra.mxu0 %v2056
    %v3075 = vpop.f32.mrf.mxu0
    %v3076 = vadd.f32 %v2987, %v3075
    %v3077 = vpop.f32.mrf.mxu0
    %v3078 = vpop.f32.mrf.mxu0
    %v3079 = vadd.f32 %v2990, %v3078
    %v3080 = vpop.f32.mrf.mxu0
    %3081 = vmatprep.mubr.bf16.mxu0 0
    %3082 = vmatmul.mubr.bf16.gmra.mxu0 %v2065
    %v3083 = vpop.f32.mrf.mxu0
    %v3084 = vadd.f32 %v2995, %v3083
    %v3085 = vpop.f32.mrf.mxu0
    %v3086 = vpop.f32.mrf.mxu0
    %v3087 = vadd.f32 %v2998, %v3086
    %v3088 = vpop.f32.mrf.mxu0
    %3089 = vmatprep.mubr.bf16.mxu0 0
    %3090 = vmatmul.mubr.bf16.gmra.mxu0 %v2074
    %v3091 = vpop.f32.mrf.mxu0
    %v3092 = vadd.f32 %v3003, %v3091
    %v3093 = vpop.f32.mrf.mxu0
    %v3094 = vpop.f32.mrf.mxu0
    %v3095 = vadd.f32 %v3006, %v3094
    %v3096 = vpop.f32.mrf.mxu0
    %3097 = vmatprep.mubr.bf16.mxu0 0
    %3098 = vmatmul.mubr.bf16.gmra.mxu0 %v2083
    %v3099 = vpop.f32.mrf.mxu0
    %v3100 = vadd.f32 %v3011, %v3099
    %v3101 = vpop.f32.mrf.mxu0
    %v3102 = vpop.f32.mrf.mxu0
    %v3103 = vadd.f32 %v3014, %v3102
    %v3104 = vpop.f32.mrf.mxu0
    %3105 = vmatprep.mubr.bf16.mxu0 0
    %3106 = vmatmul.mubr.bf16.gmra.mxu0 %v2092
    %v3107 = vpop.f32.mrf.mxu0
    %v3108 = vadd.f32 %v3019, %v3107
    %v3109 = vpop.f32.mrf.mxu0
    %v3110 = vpop.f32.mrf.mxu0
    %v3111 = vadd.f32 %v3022, %v3110
    %v3112 = vpop.f32.mrf.mxu0
    %3113 = vdwg.mxu0
    %v3114 = vld [vmem:[%s4] sm:$0x1]
    %v3115 = vlaneseq
    %v3116 = vshrl.u32 %v3115, 7
    %v3117 = vsub.s32 0, %v3116
    %v3118 = vrot.slane %v3114, %v3117
    %v3119 = vmul.f32 %v3060, %v3118
    %v3120 = vmul.f32 %v3063, %v3118
    %v3121 = vmul.f32 %v3068, %v3118
    %v3122 = vmul.f32 %v3071, %v3118
    %v3123 = vmul.f32 %v3076, %v3118
    %v3124 = vmul.f32 %v3079, %v3118
    %v3125 = vmul.f32 %v3084, %v3118
    %v3126 = vmul.f32 %v3087, %v3118
    %v3127 = vmul.f32 %v3092, %v3118
    %v3128 = vmul.f32 %v3095, %v3118
    %v3129 = vmul.f32 %v3100, %v3118
    %v3130 = vmul.f32 %v3103, %v3118
    %v3131 = vmul.f32 %v3108, %v3118
    %v3132 = vmul.f32 %v3111, %v3118
    %v3133 = vld [vmem:[%s4 + $0x1] sm:$0x1]
    %v3134 = vlaneseq
    %v3135 = vshrl.u32 %v3134, 7
    %v3136 = vsub.s32 0, %v3135
    %v3137 = vrot.slane %v3133, %v3136
    %v3138 = vadd.f32 %v3119, %v3137
    %v3139 = vadd.f32 %v3120, %v3137
    %v3140 = vadd.f32 %v3121, %v3137
    %v3141 = vadd.f32 %v3122, %v3137
    %v3142 = vadd.f32 %v3123, %v3137
    %v3143 = vadd.f32 %v3124, %v3137
    %v3144 = vadd.f32 %v3125, %v3137
    %v3145 = vadd.f32 %v3126, %v3137
    %v3146 = vadd.f32 %v3127, %v3137
    %v3147 = vadd.f32 %v3128, %v3137
    %v3148 = vadd.f32 %v3129, %v3137
    %v3149 = vadd.f32 %v3130, %v3137
    %v3150 = vadd.f32 %v3131, %v3137
    %v3151 = vadd.f32 %v3132, %v3137
    %v3152 = vmax.f32 %v3138, 0.0
    %v3153 = vmax.f32 %v3139, 0.0
    %v3154 = vmax.f32 %v3140, 0.0
    %v3155 = vmax.f32 %v3141, 0.0
    %v3156 = vmax.f32 %v3142, 0.0
    %v3157 = vmax.f32 %v3143, 0.0
    %v3158 = vmax.f32 %v3144, 0.0
    %v3159 = vmax.f32 %v3145, 0.0
    %v3160 = vmax.f32 %v3146, 0.0
    %v3161 = vmax.f32 %v3147, 0.0
    %v3162 = vmax.f32 %v3148, 0.0
    %v3163 = vmax.f32 %v3149, 0.0
    %v3164 = vmax.f32 %v3150, 0.0
    %v3165 = vmax.f32 %v3151, 0.0
    %3166 = vst [vmem:[#allocation2] sm:$0xff] 0.0
    %3167 = vst [vmem:[#allocation2 + $0x8] sm:$0x3] 0.0
    %3168 = vst [vmem:[#allocation2 + $0x10] sm:$0xff] 0.0
    %3169 = vst [vmem:[#allocation2 + $0x18] sm:$0x3] 0.0
    %3170 = vst [vmem:[#allocation2 + $0x20] sm:$0xff] 0.0
    %3171 = vst [vmem:[#allocation2 + $0x28] sm:$0x3] 0.0
    %3172 = vst [vmem:[#allocation2 + $0x30] sm:$0xff] 0.0
    %3173 = vst [vmem:[#allocation2 + $0x38] sm:$0x3] 0.0
    %3174 = vst [vmem:[#allocation2 + $0x40] sm:$0xff] 0.0
    %3175 = vst [vmem:[#allocation2 + $0x48] sm:$0x3] 0.0
    %3176 = vst [vmem:[#allocation2 + $0x50] sm:$0xff] 0.0
    %3177 = vst [vmem:[#allocation2 + $0x58] sm:$0x3] 0.0
    %3178 = vst [vmem:[#allocation2 + $0x60] sm:$0xff] 0.0
    %3179 = vst [vmem:[#allocation2 + $0x68] sm:$0x3] 0.0
    %3180 = vst [vmem:[#allocation2 + $0x70] sm:$0xff] 0.0
    %3181 = vst [vmem:[#allocation2 + $0x78] sm:$0x3] 0.0
    %3182 = vst [vmem:[#allocation2 + $0x80] sm:$0xff] 0.0
    %3183 = vst [vmem:[#allocation2 + $0x88] sm:$0x3] 0.0
    %3184 = vst [vmem:[#allocation2 + $0x90] sm:$0xff] 0.0
    %3185 = vst [vmem:[#allocation2 + $0x98] sm:$0x3] 0.0
    %3186 = vst [vmem:[#allocation2 + $0xa0] sm:$0xff] 0.0
    %3187 = vst [vmem:[#allocation2 + $0xa8] sm:$0x3] 0.0
    %3188 = vst [vmem:[#allocation2 + $0xb0] sm:$0xff] 0.0
    %3189 = vst [vmem:[#allocation2 + $0xb8] sm:$0x3] 0.0
    %3190 = vst [vmem:[#allocation2 + $0xc0] sm:$0xff] 0.0
    %3191 = vst [vmem:[#allocation2 + $0xc8] sm:$0x3] 0.0
    %3192 = vst [vmem:[#allocation2 + $0xd0] sm:$0xff] 0.0
    %3193 = vst [vmem:[#allocation2 + $0xd8] sm:$0x3] 0.0
    %3194 = vst [vmem:[#allocation2 + $0xe0] sm:$0xff] 0.0
    %3195 = vst [vmem:[#allocation2 + $0xe8] sm:$0x3] 0.0
    %3196 = vst [vmem:[#allocation2 + $0xf0] sm:$0xff] 0.0
    %3197 = vst [vmem:[#allocation2 + $0xf8] sm:$0x3] 0.0
    %3198 = vst [vmem:[#allocation2 + $0x100] sm:$0xff] 0.0
    %3199 = vst [vmem:[#allocation2 + $0x108] sm:$0x3] 0.0
    %3200 = vst [vmem:[#allocation2 + $0x110] sm:$0xff] 0.0
    %3201 = vst [vmem:[#allocation2 + $0x118] sm:$0x3] 0.0
    %3202 = vst [vmem:[%s1636 + $0x1] sm:$0xff] %v3152
    %3203 = vst [vmem:[%s1636 + $0x11] sm:$0xff] %v3153
    %3204 = vst [vmem:[%s1636 + $0x21] sm:$0xff] %v3154
    %3205 = vst [vmem:[%s1636 + $0x31] sm:$0xff] %v3155
    %3206 = vst [vmem:[%s1636 + $0x41] sm:$0xff] %v3156
    %3207 = vst [vmem:[%s1636 + $0x51] sm:$0xff] %v3157
    %3208 = vst [vmem:[%s1636 + $0x61] sm:$0xff] %v3158
    %3209 = vst [vmem:[%s1636 + $0x91] sm:$0xff] %v3159
    %3210 = vst [vmem:[%s1636 + $0xa1] sm:$0xff] %v3160
    %3211 = vst [vmem:[%s1636 + $0xb1] sm:$0xff] %v3161
    %3212 = vst [vmem:[%s1636 + $0xc1] sm:$0xff] %v3162
    %3213 = vst [vmem:[%s1636 + $0xd1] sm:$0xff] %v3163
    %3214 = vst [vmem:[%s1636 + $0xe1] sm:$0xff] %v3164
    %3215 = vst [vmem:[%s1636 + $0xf1] sm:$0xff] %v3165
    %v3216 = vld [vmem:[#allocation2] sm:$0xff]
    %v3217 = vld [vmem:[#allocation2 + $0x10] sm:$0xff]
    %v3218 = vld [vmem:[#allocation2 + $0x20] sm:$0xff]
    %v3219 = vld [vmem:[#allocation2 + $0x30] sm:$0xff]
    %v3220 = vld [vmem:[#allocation2 + $0x40] sm:$0xff]
    %v3221 = vld [vmem:[#allocation2 + $0x50] sm:$0xff]
    %v3222 = vld [vmem:[#allocation2 + $0x60] sm:$0xff]
    %v3223 = vld [vmem:[#allocation2 + $0x90] sm:$0xff]
    %v3224 = vld [vmem:[#allocation2 + $0xa0] sm:$0xff]
    %v3225 = vld [vmem:[#allocation2 + $0xb0] sm:$0xff]
    %v3226 = vld [vmem:[#allocation2 + $0xc0] sm:$0xff]
    %v3227 = vld [vmem:[#allocation2 + $0xd0] sm:$0xff]
    %v3228 = vld [vmem:[#allocation2 + $0xe0] sm:$0xff]
    %v3229 = vld [vmem:[#allocation2 + $0xf0] sm:$0xff]
    %3230 = vst [vmem:[#allocation3] sm:$0xff] %v3216
    %3231 = vst [vmem:[#allocation3 + $0x48] sm:$0xff] %v3217
    %3232 = vst [vmem:[#allocation3 + $0x90] sm:$0xff] %v3218
    %3233 = vst [vmem:[#allocation3 + $0xd8] sm:$0xff] %v3219
    %3234 = vst [vmem:[#allocation3 + $0x120] sm:$0xff] %v3220
    %3235 = vst [vmem:[#allocation3 + $0x168] sm:$0xff] %v3221
    %3236 = vst [vmem:[#allocation3 + $0x1b0] sm:$0xff] %v3222
    %3237 = vst [vmem:[#allocation3 + $0x1f8] sm:$0xff] %v3223
    %3238 = vst [vmem:[#allocation3 + $0x240] sm:$0xff] %v3224
    %3239 = vst [vmem:[#allocation3 + $0x288] sm:$0xff] %v3225
    %3240 = vst [vmem:[#allocation3 + $0x2d0] sm:$0xff] %v3226
    %3241 = vst [vmem:[#allocation3 + $0x318] sm:$0xff] %v3227
    %3242 = vst [vmem:[#allocation3 + $0x360] sm:$0xff] %v3228
    %3243 = vst [vmem:[#allocation3 + $0x3a8] sm:$0xff] %v3229
    %v3244 = vld [vmem:[#allocation2 + $0x1] sm:$0xff]
    %v3245 = vld [vmem:[#allocation2 + $0x11] sm:$0xff]
    %v3246 = vld [vmem:[#allocation2 + $0x21] sm:$0xff]
    %v3247 = vld [vmem:[#allocation2 + $0x31] sm:$0xff]
    %v3248 = vld [vmem:[#allocation2 + $0x41] sm:$0xff]
    %v3249 = vld [vmem:[#allocation2 + $0x51] sm:$0xff]
    %v3250 = vld [vmem:[#allocation2 + $0x61] sm:$0xff]
    %v3251 = vld [vmem:[#allocation2 + $0x91] sm:$0xff]
    %v3252 = vld [vmem:[#allocation2 + $0xa1] sm:$0xff]
    %v3253 = vld [vmem:[#allocation2 + $0xb1] sm:$0xff]
    %v3254 = vld [vmem:[#allocation2 + $0xc1] sm:$0xff]
    %v3255 = vld [vmem:[#allocation2 + $0xd1] sm:$0xff]
    %v3256 = vld [vmem:[#allocation2 + $0xe1] sm:$0xff]
    %v3257 = vld [vmem:[#allocation2 + $0xf1] sm:$0xff]
    %3258 = vst [vmem:[#allocation3 + $0x8] sm:$0xff] %v3244
    %3259 = vst [vmem:[#allocation3 + $0x50] sm:$0xff] %v3245
    %3260 = vst [vmem:[#allocation3 + $0x98] sm:$0xff] %v3246
    %3261 = vst [vmem:[#allocation3 + $0xe0] sm:$0xff] %v3247
    %3262 = vst [vmem:[#allocation3 + $0x128] sm:$0xff] %v3248
    %3263 = vst [vmem:[#allocation3 + $0x170] sm:$0xff] %v3249
    %3264 = vst [vmem:[#allocation3 + $0x1b8] sm:$0xff] %v3250
    %3265 = vst [vmem:[#allocation3 + $0x200] sm:$0xff] %v3251
    %3266 = vst [vmem:[#allocation3 + $0x248] sm:$0xff] %v3252
    %3267 = vst [vmem:[#allocation3 + $0x290] sm:$0xff] %v3253
    %3268 = vst [vmem:[#allocation3 + $0x2d8] sm:$0xff] %v3254
    %3269 = vst [vmem:[#allocation3 + $0x320] sm:$0xff] %v3255
    %3270 = vst [vmem:[#allocation3 + $0x368] sm:$0xff] %v3256
    %3271 = vst [vmem:[#allocation3 + $0x3b0] sm:$0xff] %v3257
    %v3272 = vld [vmem:[#allocation2 + $0x2] sm:$0xff]
    %v3273 = vld [vmem:[#allocation2 + $0x12] sm:$0xff]
    %v3274 = vld [vmem:[#allocation2 + $0x22] sm:$0xff]
    %v3275 = vld [vmem:[#allocation2 + $0x32] sm:$0xff]
    %v3276 = vld [vmem:[#allocation2 + $0x42] sm:$0xff]
    %v3277 = vld [vmem:[#allocation2 + $0x52] sm:$0xff]
    %v3278 = vld [vmem:[#allocation2 + $0x62] sm:$0xff]
    %v3279 = vld [vmem:[#allocation2 + $0x92] sm:$0xff]
    %v3280 = vld [vmem:[#allocation2 + $0xa2] sm:$0xff]
    %v3281 = vld [vmem:[#allocation2 + $0xb2] sm:$0xff]
    %v3282 = vld [vmem:[#allocation2 + $0xc2] sm:$0xff]
    %v3283 = vld [vmem:[#allocation2 + $0xd2] sm:$0xff]
    %v3284 = vld [vmem:[#allocation2 + $0xe2] sm:$0xff]
    %v3285 = vld [vmem:[#allocation2 + $0xf2] sm:$0xff]
    %3286 = vst [vmem:[#allocation3 + $0x10] sm:$0xff] %v3272
    %3287 = vst [vmem:[#allocation3 + $0x58] sm:$0xff] %v3273
    %3288 = vst [vmem:[#allocation3 + $0xa0] sm:$0xff] %v3274
    %3289 = vst [vmem:[#allocation3 + $0xe8] sm:$0xff] %v3275
    %3290 = vst [vmem:[#allocation3 + $0x130] sm:$0xff] %v3276
    %3291 = vst [vmem:[#allocation3 + $0x178] sm:$0xff] %v3277
    %3292 = vst [vmem:[#allocation3 + $0x1c0] sm:$0xff] %v3278
    %3293 = vst [vmem:[#allocation3 + $0x208] sm:$0xff] %v3279
    %3294 = vst [vmem:[#allocation3 + $0x250] sm:$0xff] %v3280
    %3295 = vst [vmem:[#allocation3 + $0x298] sm:$0xff] %v3281
    %3296 = vst [vmem:[#allocation3 + $0x2e0] sm:$0xff] %v3282
    %3297 = vst [vmem:[#allocation3 + $0x328] sm:$0xff] %v3283
    %3298 = vst [vmem:[#allocation3 + $0x370] sm:$0xff] %v3284
    %3299 = vst [vmem:[#allocation3 + $0x3b8] sm:$0xff] %v3285
    %v3300 = vld [vmem:[%s1636] sm:$0xff]
    %v3301 = vld [vmem:[%s1636 + $0x10] sm:$0xff]
    %v3302 = vld [vmem:[%s1636 + $0x20] sm:$0xff]
    %v3303 = vld [vmem:[%s1636 + $0x30] sm:$0xff]
    %v3304 = vld [vmem:[%s1636 + $0x40] sm:$0xff]
    %v3305 = vld [vmem:[%s1636 + $0x50] sm:$0xff]
    %v3306 = vld [vmem:[%s1636 + $0x60] sm:$0xff]
    %v3307 = vld [vmem:[%s1636 + $0x90] sm:$0xff]
    %v3308 = vld [vmem:[%s1636 + $0xa0] sm:$0xff]
    %v3309 = vld [vmem:[%s1636 + $0xb0] sm:$0xff]
    %v3310 = vld [vmem:[%s1636 + $0xc0] sm:$0xff]
    %v3311 = vld [vmem:[%s1636 + $0xd0] sm:$0xff]
    %v3312 = vld [vmem:[%s1636 + $0xe0] sm:$0xff]
    %v3313 = vld [vmem:[%s1636 + $0xf0] sm:$0xff]
    %3314 = vst [vmem:[#allocation3 + $0x18] sm:$0xff] %v3300
    %3315 = vst [vmem:[#allocation3 + $0x60] sm:$0xff] %v3301
    %3316 = vst [vmem:[#allocation3 + $0xa8] sm:$0xff] %v3302
    %3317 = vst [vmem:[#allocation3 + $0xf0] sm:$0xff] %v3303
    %3318 = vst [vmem:[#allocation3 + $0x138] sm:$0xff] %v3304
    %3319 = vst [vmem:[#allocation3 + $0x180] sm:$0xff] %v3305
    %3320 = vst [vmem:[#allocation3 + $0x1c8] sm:$0xff] %v3306
    %3321 = vst [vmem:[#allocation3 + $0x210] sm:$0xff] %v3307
    %3322 = vst [vmem:[#allocation3 + $0x258] sm:$0xff] %v3308
    %3323 = vst [vmem:[#allocation3 + $0x2a0] sm:$0xff] %v3309
    %3324 = vst [vmem:[#allocation3 + $0x2e8] sm:$0xff] %v3310
    %3325 = vst [vmem:[#allocation3 + $0x330] sm:$0xff] %v3311
    %3326 = vst [vmem:[#allocation3 + $0x378] sm:$0xff] %v3312
    %3327 = vst [vmem:[#allocation3 + $0x3c0] sm:$0xff] %v3313
    %v3328 = vld [vmem:[%s1636 + $0x1] sm:$0xff]
    %v3329 = vld [vmem:[%s1636 + $0x11] sm:$0xff]
    %v3330 = vld [vmem:[%s1636 + $0x21] sm:$0xff]
    %v3331 = vld [vmem:[%s1636 + $0x31] sm:$0xff]
    %v3332 = vld [vmem:[%s1636 + $0x41] sm:$0xff]
    %v3333 = vld [vmem:[%s1636 + $0x51] sm:$0xff]
    %v3334 = vld [vmem:[%s1636 + $0x61] sm:$0xff]
    %v3335 = vld [vmem:[%s1636 + $0x91] sm:$0xff]
    %v3336 = vld [vmem:[%s1636 + $0xa1] sm:$0xff]
    %v3337 = vld [vmem:[%s1636 + $0xb1] sm:$0xff]
    %v3338 = vld [vmem:[%s1636 + $0xc1] sm:$0xff]
    %v3339 = vld [vmem:[%s1636 + $0xd1] sm:$0xff]
    %v3340 = vld [vmem:[%s1636 + $0xe1] sm:$0xff]
    %v3341 = vld [vmem:[%s1636 + $0xf1] sm:$0xff]
    %3342 = vst [vmem:[#allocation3 + $0x20] sm:$0xff] %v3328
    %3343 = vst [vmem:[#allocation3 + $0x68] sm:$0xff] %v3329
    %3344 = vst [vmem:[#allocation3 + $0xb0] sm:$0xff] %v3330
    %3345 = vst [vmem:[#allocation3 + $0xf8] sm:$0xff] %v3331
    %3346 = vst [vmem:[#allocation3 + $0x140] sm:$0xff] %v3332
    %3347 = vst [vmem:[#allocation3 + $0x188] sm:$0xff] %v3333
    %3348 = vst [vmem:[#allocation3 + $0x1d0] sm:$0xff] %v3334
    %3349 = vst [vmem:[#allocation3 + $0x218] sm:$0xff] %v3335
    %3350 = vst [vmem:[#allocation3 + $0x260] sm:$0xff] %v3336
    %3351 = vst [vmem:[#allocation3 + $0x2a8] sm:$0xff] %v3337
    %3352 = vst [vmem:[#allocation3 + $0x2f0] sm:$0xff] %v3338
    %3353 = vst [vmem:[#allocation3 + $0x338] sm:$0xff] %v3339
    %3354 = vst [vmem:[#allocation3 + $0x380] sm:$0xff] %v3340
    %3355 = vst [vmem:[#allocation3 + $0x3c8] sm:$0xff] %v3341
    %v3356 = vld [vmem:[%s1636 + $0x2] sm:$0xff]
    %v3357 = vld [vmem:[%s1636 + $0x12] sm:$0xff]
    %v3358 = vld [vmem:[%s1636 + $0x22] sm:$0xff]
    %v3359 = vld [vmem:[%s1636 + $0x32] sm:$0xff]
    %v3360 = vld [vmem:[%s1636 + $0x42] sm:$0xff]
    %v3361 = vld [vmem:[%s1636 + $0x52] sm:$0xff]
    %v3362 = vld [vmem:[%s1636 + $0x62] sm:$0xff]
    %v3363 = vld [vmem:[%s1636 + $0x92] sm:$0xff]
    %v3364 = vld [vmem:[%s1636 + $0xa2] sm:$0xff]
    %v3365 = vld [vmem:[%s1636 + $0xb2] sm:$0xff]
    %v3366 = vld [vmem:[%s1636 + $0xc2] sm:$0xff]
    %v3367 = vld [vmem:[%s1636 + $0xd2] sm:$0xff]
    %v3368 = vld [vmem:[%s1636 + $0xe2] sm:$0xff]
    %v3369 = vld [vmem:[%s1636 + $0xf2] sm:$0xff]
    %3370 = vst [vmem:[#allocation3 + $0x28] sm:$0xff] %v3356
    %3371 = vst [vmem:[#allocation3 + $0x70] sm:$0xff] %v3357
    %3372 = vst [vmem:[#allocation3 + $0xb8] sm:$0xff] %v3358
    %3373 = vst [vmem:[#allocation3 + $0x100] sm:$0xff] %v3359
    %3374 = vst [vmem:[#allocation3 + $0x148] sm:$0xff] %v3360
    %3375 = vst [vmem:[#allocation3 + $0x190] sm:$0xff] %v3361
    %3376 = vst [vmem:[#allocation3 + $0x1d8] sm:$0xff] %v3362
    %3377 = vst [vmem:[#allocation3 + $0x220] sm:$0xff] %v3363
    %3378 = vst [vmem:[#allocation3 + $0x268] sm:$0xff] %v3364
    %3379 = vst [vmem:[#allocation3 + $0x2b0] sm:$0xff] %v3365
    %3380 = vst [vmem:[#allocation3 + $0x2f8] sm:$0xff] %v3366
    %3381 = vst [vmem:[#allocation3 + $0x340] sm:$0xff] %v3367
    %3382 = vst [vmem:[#allocation3 + $0x388] sm:$0xff] %v3368
    %3383 = vst [vmem:[#allocation3 + $0x3d0] sm:$0xff] %v3369
    %v3384 = vld [vmem:[%s1819] sm:$0xff]
    %v3385 = vld [vmem:[%s1819 + $0x10] sm:$0xff]
    %v3386 = vld [vmem:[%s1819 + $0x20] sm:$0xff]
    %v3387 = vld [vmem:[%s1819 + $0x30] sm:$0xff]
    %v3388 = vld [vmem:[%s1819 + $0x40] sm:$0xff]
    %v3389 = vld [vmem:[%s1819 + $0x50] sm:$0xff]
    %v3390 = vld [vmem:[%s1819 + $0x60] sm:$0xff]
    %v3391 = vld [vmem:[%s1819 + $0x90] sm:$0xff]
    %v3392 = vld [vmem:[%s1819 + $0xa0] sm:$0xff]
    %v3393 = vld [vmem:[%s1819 + $0xb0] sm:$0xff]
    %v3394 = vld [vmem:[%s1819 + $0xc0] sm:$0xff]
    %v3395 = vld [vmem:[%s1819 + $0xd0] sm:$0xff]
    %v3396 = vld [vmem:[%s1819 + $0xe0] sm:$0xff]
    %v3397 = vld [vmem:[%s1819 + $0xf0] sm:$0xff]
    %3398 = vst [vmem:[#allocation3 + $0x30] sm:$0xff] %v3384
    %3399 = vst [vmem:[#allocation3 + $0x78] sm:$0xff] %v3385
    %3400 = vst [vmem:[#allocation3 + $0xc0] sm:$0xff] %v3386
    %3401 = vst [vmem:[#allocation3 + $0x108] sm:$0xff] %v3387
    %3402 = vst [vmem:[#allocation3 + $0x150] sm:$0xff] %v3388
    %3403 = vst [vmem:[#allocation3 + $0x198] sm:$0xff] %v3389
    %3404 = vst [vmem:[#allocation3 + $0x1e0] sm:$0xff] %v3390
    %3405 = vst [vmem:[#allocation3 + $0x228] sm:$0xff] %v3391
    %3406 = vst [vmem:[#allocation3 + $0x270] sm:$0xff] %v3392
    %3407 = vst [vmem:[#allocation3 + $0x2b8] sm:$0xff] %v3393
    %3408 = vst [vmem:[#allocation3 + $0x300] sm:$0xff] %v3394
    %3409 = vst [vmem:[#allocation3 + $0x348] sm:$0xff] %v3395
    %3410 = vst [vmem:[#allocation3 + $0x390] sm:$0xff] %v3396
    %3411 = vst [vmem:[#allocation3 + $0x3d8] sm:$0xff] %v3397
    %v3412 = vld [vmem:[%s1819 + $0x1] sm:$0xff]
    %v3413 = vld [vmem:[%s1819 + $0x11] sm:$0xff]
    %v3414 = vld [vmem:[%s1819 + $0x21] sm:$0xff]
    %v3415 = vld [vmem:[%s1819 + $0x31] sm:$0xff]
    %v3416 = vld [vmem:[%s1819 + $0x41] sm:$0xff]
    %v3417 = vld [vmem:[%s1819 + $0x51] sm:$0xff]
    %v3418 = vld [vmem:[%s1819 + $0x61] sm:$0xff]
    %v3419 = vld [vmem:[%s1819 + $0x91] sm:$0xff]
    %v3420 = vld [vmem:[%s1819 + $0xa1] sm:$0xff]
    %v3421 = vld [vmem:[%s1819 + $0xb1] sm:$0xff]
    %v3422 = vld [vmem:[%s1819 + $0xc1] sm:$0xff]
    %v3423 = vld [vmem:[%s1819 + $0xd1] sm:$0xff]
    %v3424 = vld [vmem:[%s1819 + $0xe1] sm:$0xff]
    %v3425 = vld [vmem:[%s1819 + $0xf1] sm:$0xff]
    %3426 = vst [vmem:[#allocation3 + $0x38] sm:$0xff] %v3412
    %3427 = vst [vmem:[#allocation3 + $0x80] sm:$0xff] %v3413
    %3428 = vst [vmem:[#allocation3 + $0xc8] sm:$0xff] %v3414
    %3429 = vst [vmem:[#allocation3 + $0x110] sm:$0xff] %v3415
    %3430 = vst [vmem:[#allocation3 + $0x158] sm:$0xff] %v3416
    %3431 = vst [vmem:[#allocation3 + $0x1a0] sm:$0xff] %v3417
    %3432 = vst [vmem:[#allocation3 + $0x1e8] sm:$0xff] %v3418
    %3433 = vst [vmem:[#allocation3 + $0x230] sm:$0xff] %v3419
    %3434 = vst [vmem:[#allocation3 + $0x278] sm:$0xff] %v3420
    %3435 = vst [vmem:[#allocation3 + $0x2c0] sm:$0xff] %v3421
    %3436 = vst [vmem:[#allocation3 + $0x308] sm:$0xff] %v3422
    %3437 = vst [vmem:[#allocation3 + $0x350] sm:$0xff] %v3423
    %3438 = vst [vmem:[#allocation3 + $0x398] sm:$0xff] %v3424
    %3439 = vst [vmem:[#allocation3 + $0x3e0] sm:$0xff] %v3425
    %v3440 = vld [vmem:[%s1819 + $0x2] sm:$0xff]
    %v3441 = vld [vmem:[%s1819 + $0x12] sm:$0xff]
    %v3442 = vld [vmem:[%s1819 + $0x22] sm:$0xff]
    %v3443 = vld [vmem:[%s1819 + $0x32] sm:$0xff]
    %v3444 = vld [vmem:[%s1819 + $0x42] sm:$0xff]
    %v3445 = vld [vmem:[%s1819 + $0x52] sm:$0xff]
    %v3446 = vld [vmem:[%s1819 + $0x62] sm:$0xff]
    %v3447 = vld [vmem:[%s1819 + $0x92] sm:$0xff]
    %v3448 = vld [vmem:[%s1819 + $0xa2] sm:$0xff]
    %v3449 = vld [vmem:[%s1819 + $0xb2] sm:$0xff]
    %v3450 = vld [vmem:[%s1819 + $0xc2] sm:$0xff]
    %v3451 = vld [vmem:[%s1819 + $0xd2] sm:$0xff]
    %v3452 = vld [vmem:[%s1819 + $0xe2] sm:$0xff]
    %v3453 = vld [vmem:[%s1819 + $0xf2] sm:$0xff]
    %3454 = vst [vmem:[#allocation3 + $0x40] sm:$0xff] %v3440
    %3455 = vst [vmem:[#allocation3 + $0x88] sm:$0xff] %v3441
    %3456 = vst [vmem:[#allocation3 + $0xd0] sm:$0xff] %v3442
    %3457 = vst [vmem:[#allocation3 + $0x118] sm:$0xff] %v3443
    %3458 = vst [vmem:[#allocation3 + $0x160] sm:$0xff] %v3444
    %3459 = vst [vmem:[#allocation3 + $0x1a8] sm:$0xff] %v3445
    %3460 = vst [vmem:[#allocation3 + $0x1f0] sm:$0xff] %v3446
    %3461 = vst [vmem:[#allocation3 + $0x238] sm:$0xff] %v3447
    %3462 = vst [vmem:[#allocation3 + $0x280] sm:$0xff] %v3448
    %3463 = vst [vmem:[#allocation3 + $0x2c8] sm:$0xff] %v3449
    %3464 = vst [vmem:[#allocation3 + $0x310] sm:$0xff] %v3450
    %3465 = vst [vmem:[#allocation3 + $0x358] sm:$0xff] %v3451
    %3466 = vst [vmem:[#allocation3 + $0x3a0] sm:$0xff] %v3452
    %3467 = vst [vmem:[#allocation3 + $0x3e8] sm:$0xff] %v3453
    %v3468 = vld [vmem:[#allocation3] sm:$0xff]
    %v3469 = vld [vmem:[#allocation3 + $0x8] sm:$0xff]
    %v3470 = vld [vmem:[#allocation3 + $0x10] sm:$0xff]
    %v3471 = vld [vmem:[#allocation3 + $0x18] sm:$0xff]
    %v3472 = vld [vmem:[#allocation3 + $0x20] sm:$0xff]
    %v3473 = vld [vmem:[#allocation3 + $0x28] sm:$0xff]
    %v3474 = vld [vmem:[#allocation3 + $0x30] sm:$0xff]
    %v3475 = vld [vmem:[#allocation3 + $0x38] sm:$0xff]
    %v3476 = vld [vmem:[#allocation3 + $0x40] sm:$0xff]
    %v3477 = vld [vmem:[#allocation3 + $0x48] sm:$0xff]
    %v3478 = vld [vmem:[#allocation3 + $0x50] sm:$0xff]
    %v3479 = vld [vmem:[#allocation3 + $0x58] sm:$0xff]
    %v3480 = vld [vmem:[#allocation3 + $0x60] sm:$0xff]
    %v3481 = vld [vmem:[#allocation3 + $0x68] sm:$0xff]
    %v3482 = vld [vmem:[#allocation3 + $0x70] sm:$0xff]
    %v3483 = vld [vmem:[#allocation3 + $0x78] sm:$0xff]
    %v3484 = vld [vmem:[#allocation3 + $0x80] sm:$0xff]
    %v3485 = vld [vmem:[#allocation3 + $0x88] sm:$0xff]
    %v3486 = vld [vmem:[#allocation3 + $0x90] sm:$0xff]
    %v3487 = vld [vmem:[#allocation3 + $0x98] sm:$0xff]
    %v3488 = vld [vmem:[#allocation3 + $0xa0] sm:$0xff]
    %v3489 = vld [vmem:[#allocation3 + $0xa8] sm:$0xff]
    %v3490 = vld [vmem:[#allocation3 + $0xb0] sm:$0xff]
    %v3491 = vld [vmem:[#allocation3 + $0xb8] sm:$0xff]
    %v3492 = vld [vmem:[#allocation3 + $0xc0] sm:$0xff]
    %v3493 = vld [vmem:[#allocation3 + $0xc8] sm:$0xff]
    %v3494 = vld [vmem:[#allocation3 + $0xd0] sm:$0xff]
    %v3495 = vld [vmem:[#allocation3 + $0xd8] sm:$0xff]
    %v3496 = vld [vmem:[#allocation3 + $0xe0] sm:$0xff]
    %v3497 = vld [vmem:[#allocation3 + $0xe8] sm:$0xff]
    %v3498 = vld [vmem:[#allocation3 + $0xf0] sm:$0xff]
    %v3499 = vld [vmem:[#allocation3 + $0xf8] sm:$0xff]
    %v3500 = vld [vmem:[#allocation3 + $0x100] sm:$0xff]
    %v3501 = vld [vmem:[#allocation3 + $0x108] sm:$0xff]
    %v3502 = vld [vmem:[#allocation3 + $0x110] sm:$0xff]
    %v3503 = vld [vmem:[#allocation3 + $0x118] sm:$0xff]
    %v3504 = vld [vmem:[#allocation3 + $0x120] sm:$0xff]
    %v3505 = vld [vmem:[#allocation3 + $0x128] sm:$0xff]
    %v3506 = vld [vmem:[#allocation3 + $0x130] sm:$0xff]
    %v3507 = vld [vmem:[#allocation3 + $0x138] sm:$0xff]
    %v3508 = vld [vmem:[#allocation3 + $0x140] sm:$0xff]
    %v3509 = vld [vmem:[#allocation3 + $0x148] sm:$0xff]
    %v3510 = vld [vmem:[#allocation3 + $0x150] sm:$0xff]
    %v3511 = vld [vmem:[#allocation3 + $0x158] sm:$0xff]
    %v3512 = vld [vmem:[#allocation3 + $0x160] sm:$0xff]
    %v3513 = vld [vmem:[#allocation3 + $0x168] sm:$0xff]
    %v3514 = vld [vmem:[#allocation3 + $0x170] sm:$0xff]
    %v3515 = vld [vmem:[#allocation3 + $0x178] sm:$0xff]
    %v3516 = vld [vmem:[#allocation3 + $0x180] sm:$0xff]
    %v3517 = vld [vmem:[#allocation3 + $0x188] sm:$0xff]
    %v3518 = vld [vmem:[#allocation3 + $0x190] sm:$0xff]
    %v3519 = vld [vmem:[#allocation3 + $0x198] sm:$0xff]
    %v3520 = vld [vmem:[#allocation3 + $0x1a0] sm:$0xff]
    %v3521 = vld [vmem:[#allocation3 + $0x1a8] sm:$0xff]
    %v3522 = vld [vmem:[#allocation3 + $0x1b0] sm:$0xff]
    %v3523 = vld [vmem:[#allocation3 + $0x1b8] sm:$0xff]
    %v3524 = vld [vmem:[#allocation3 + $0x1c0] sm:$0xff]
    %v3525 = vld [vmem:[#allocation3 + $0x1c8] sm:$0xff]
    %v3526 = vld [vmem:[#allocation3 + $0x1d0] sm:$0xff]
    %v3527 = vld [vmem:[#allocation3 + $0x1d8] sm:$0xff]
    %v3528 = vld [vmem:[#allocation3 + $0x1e0] sm:$0xff]
    %v3529 = vld [vmem:[#allocation3 + $0x1e8] sm:$0xff]
    %v3530 = vld [vmem:[#allocation3 + $0x1f0] sm:$0xff]
    %v3531 = vld [vmem:[#allocation3 + $0x1f8] sm:$0xff]
    %v3532 = vld [vmem:[#allocation3 + $0x200] sm:$0xff]
    %v3533 = vld [vmem:[#allocation3 + $0x208] sm:$0xff]
    %v3534 = vld [vmem:[#allocation3 + $0x210] sm:$0xff]
    %v3535 = vld [vmem:[#allocation3 + $0x218] sm:$0xff]
    %v3536 = vld [vmem:[#allocation3 + $0x220] sm:$0xff]
    %v3537 = vld [vmem:[#allocation3 + $0x228] sm:$0xff]
    %v3538 = vld [vmem:[#allocation3 + $0x230] sm:$0xff]
    %v3539 = vld [vmem:[#allocation3 + $0x238] sm:$0xff]
    %v3540 = vld [vmem:[#allocation3 + $0x240] sm:$0xff]
    %v3541 = vld [vmem:[#allocation3 + $0x248] sm:$0xff]
    %v3542 = vld [vmem:[#allocation3 + $0x250] sm:$0xff]
    %v3543 = vld [vmem:[#allocation3 + $0x258] sm:$0xff]
    %v3544 = vld [vmem:[#allocation3 + $0x260] sm:$0xff]
    %v3545 = vld [vmem:[#allocation3 + $0x268] sm:$0xff]
    %v3546 = vld [vmem:[#allocation3 + $0x270] sm:$0xff]
    %v3547 = vld [vmem:[#allocation3 + $0x278] sm:$0xff]
    %v3548 = vld [vmem:[#allocation3 + $0x280] sm:$0xff]
    %v3549 = vld [vmem:[#allocation3 + $0x288] sm:$0xff]
    %v3550 = vld [vmem:[#allocation3 + $0x290] sm:$0xff]
    %v3551 = vld [vmem:[#allocation3 + $0x298] sm:$0xff]
    %v3552 = vld [vmem:[#allocation3 + $0x2a0] sm:$0xff]
    %v3553 = vld [vmem:[#allocation3 + $0x2a8] sm:$0xff]
    %v3554 = vld [vmem:[#allocation3 + $0x2b0] sm:$0xff]
    %v3555 = vld [vmem:[#allocation3 + $0x2b8] sm:$0xff]
    %v3556 = vld [vmem:[#allocation3 + $0x2c0] sm:$0xff]
    %v3557 = vld [vmem:[#allocation3 + $0x2c8] sm:$0xff]
    %v3558 = vld [vmem:[#allocation3 + $0x2d0] sm:$0xff]
    %v3559 = vld [vmem:[#allocation3 + $0x2d8] sm:$0xff]
    %v3560 = vld [vmem:[#allocation3 + $0x2e0] sm:$0xff]
    %v3561 = vld [vmem:[#allocation3 + $0x2e8] sm:$0xff]
    %v3562 = vld [vmem:[#allocation3 + $0x2f0] sm:$0xff]
    %v3563 = vld [vmem:[#allocation3 + $0x2f8] sm:$0xff]
    %v3564 = vld [vmem:[#allocation3 + $0x300] sm:$0xff]
    %v3565 = vld [vmem:[#allocation3 + $0x308] sm:$0xff]
    %v3566 = vld [vmem:[#allocation3 + $0x310] sm:$0xff]
    %v3567 = vld [vmem:[#allocation3 + $0x318] sm:$0xff]
    %v3568 = vld [vmem:[#allocation3 + $0x320] sm:$0xff]
    %v3569 = vld [vmem:[#allocation3 + $0x328] sm:$0xff]
    %v3570 = vld [vmem:[#allocation3 + $0x330] sm:$0xff]
    %v3571 = vld [vmem:[#allocation3 + $0x338] sm:$0xff]
    %v3572 = vld [vmem:[#allocation3 + $0x340] sm:$0xff]
    %v3573 = vld [vmem:[#allocation3 + $0x348] sm:$0xff]
    %v3574 = vld [vmem:[#allocation3 + $0x350] sm:$0xff]
    %v3575 = vld [vmem:[#allocation3 + $0x358] sm:$0xff]
    %v3576 = vld [vmem:[#allocation3 + $0x360] sm:$0xff]
    %v3577 = vld [vmem:[#allocation3 + $0x368] sm:$0xff]
    %v3578 = vld [vmem:[#allocation3 + $0x370] sm:$0xff]
    %v3579 = vld [vmem:[#allocation3 + $0x378] sm:$0xff]
    %v3580 = vld [vmem:[#allocation3 + $0x380] sm:$0xff]
    %v3581 = vld [vmem:[#allocation3 + $0x388] sm:$0xff]
    %v3582 = vld [vmem:[#allocation3 + $0x390] sm:$0xff]
    %v3583 = vld [vmem:[#allocation3 + $0x398] sm:$0xff]
    %v3584 = vld [vmem:[#allocation3 + $0x3a0] sm:$0xff]
    %v3585 = vld [vmem:[#allocation3 + $0x3a8] sm:$0xff]
    %v3586 = vld [vmem:[#allocation3 + $0x3b0] sm:$0xff]
    %v3587 = vld [vmem:[#allocation3 + $0x3b8] sm:$0xff]
    %v3588 = vld [vmem:[#allocation3 + $0x3c0] sm:$0xff]
    %v3589 = vld [vmem:[#allocation3 + $0x3c8] sm:$0xff]
    %v3590 = vld [vmem:[#allocation3 + $0x3d0] sm:$0xff]
    %v3591 = vld [vmem:[#allocation3 + $0x3d8] sm:$0xff]
    %v3592 = vld [vmem:[#allocation3 + $0x3e0] sm:$0xff]
    %v3593 = vld [vmem:[#allocation3 + $0x3e8] sm:$0xff]
    %v3594 = vpack.c.bf16 %v3477, %v3468
    %v3595 = vpack.c.bf16 %v3478, %v3469
    %v3596 = vpack.c.bf16 %v3479, %v3470
    %v3597 = vpack.c.bf16 %v3480, %v3471
    %v3598 = vpack.c.bf16 %v3481, %v3472
    %v3599 = vpack.c.bf16 %v3482, %v3473
    %v3600 = vpack.c.bf16 %v3483, %v3474
    %v3601 = vpack.c.bf16 %v3484, %v3475
    %v3602 = vpack.c.bf16 %v3485, %v3476
    %v3603 = vpack.c.bf16 %v3495, %v3486
    %v3604 = vpack.c.bf16 %v3496, %v3487
    %v3605 = vpack.c.bf16 %v3497, %v3488
    %v3606 = vpack.c.bf16 %v3498, %v3489
    %v3607 = vpack.c.bf16 %v3499, %v3490
    %v3608 = vpack.c.bf16 %v3500, %v3491
    %v3609 = vpack.c.bf16 %v3501, %v3492
    %v3610 = vpack.c.bf16 %v3502, %v3493
    %v3611 = vpack.c.bf16 %v3503, %v3494
    %v3612 = vpack.c.bf16 %v3513, %v3504
    %v3613 = vpack.c.bf16 %v3514, %v3505
    %v3614 = vpack.c.bf16 %v3515, %v3506
    %v3615 = vpack.c.bf16 %v3516, %v3507
    %v3616 = vpack.c.bf16 %v3517, %v3508
    %v3617 = vpack.c.bf16 %v3518, %v3509
    %v3618 = vpack.c.bf16 %v3519, %v3510
    %v3619 = vpack.c.bf16 %v3520, %v3511
    %v3620 = vpack.c.bf16 %v3521, %v3512
    %v3621 = vpack.c.bf16 %v3531, %v3522
    %v3622 = vpack.c.bf16 %v3532, %v3523
    %v3623 = vpack.c.bf16 %v3533, %v3524
    %v3624 = vpack.c.bf16 %v3534, %v3525
    %v3625 = vpack.c.bf16 %v3535, %v3526
    %v3626 = vpack.c.bf16 %v3536, %v3527
    %v3627 = vpack.c.bf16 %v3537, %v3528
    %v3628 = vpack.c.bf16 %v3538, %v3529
    %v3629 = vpack.c.bf16 %v3539, %v3530
    %v3630 = vpack.c.bf16 %v3549, %v3540
    %v3631 = vpack.c.bf16 %v3550, %v3541
    %v3632 = vpack.c.bf16 %v3551, %v3542
    %v3633 = vpack.c.bf16 %v3552, %v3543
    %v3634 = vpack.c.bf16 %v3553, %v3544
    %v3635 = vpack.c.bf16 %v3554, %v3545
    %v3636 = vpack.c.bf16 %v3555, %v3546
    %v3637 = vpack.c.bf16 %v3556, %v3547
    %v3638 = vpack.c.bf16 %v3557, %v3548
    %v3639 = vpack.c.bf16 %v3567, %v3558
    %v3640 = vpack.c.bf16 %v3568, %v3559
    %v3641 = vpack.c.bf16 %v3569, %v3560
    %v3642 = vpack.c.bf16 %v3570, %v3561
    %v3643 = vpack.c.bf16 %v3571, %v3562
    %v3644 = vpack.c.bf16 %v3572, %v3563
    %v3645 = vpack.c.bf16 %v3573, %v3564
    %v3646 = vpack.c.bf16 %v3574, %v3565
    %v3647 = vpack.c.bf16 %v3575, %v3566
    %v3648 = vpack.c.bf16 %v3585, %v3576
    %v3649 = vpack.c.bf16 %v3586, %v3577
    %v3650 = vpack.c.bf16 %v3587, %v3578
    %v3651 = vpack.c.bf16 %v3588, %v3579
    %v3652 = vpack.c.bf16 %v3589, %v3580
    %v3653 = vpack.c.bf16 %v3590, %v3581
    %v3654 = vpack.c.bf16 %v3591, %v3582
    %v3655 = vpack.c.bf16 %v3592, %v3583
    %v3656 = vpack.c.bf16 %v3593, %v3584
    %v3657 = vld [vmem:[#allocation6] sm:$0xf]
    %v3658 = vld [vmem:[#allocation6 + $0x4] sm:$0xf]
    %v3659 = vld [vmem:[#allocation6 + $0x8] sm:$0xf]
    %v3660 = vld [vmem:[#allocation6 + $0xc] sm:$0xf]
    %v3661 = vld [vmem:[#allocation6 + $0x10] sm:$0xf]
    %v3662 = vld [vmem:[#allocation6 + $0x14] sm:$0xf]
    %v3663 = vld [vmem:[#allocation6 + $0x18] sm:$0xf]
    %v3664 = vld [vmem:[#allocation6 + $0x1c] sm:$0xf]
    %v3665 = vld [vmem:[#allocation6 + $0x20] sm:$0xf]
    %v3666 = vld [vmem:[#allocation6 + $0x24] sm:$0xf]
    %v3667 = vld [vmem:[#allocation6 + $0x28] sm:$0xf]
    %v3668 = vld [vmem:[#allocation6 + $0x2c] sm:$0xf]
    %v3669 = vld [vmem:[#allocation6 + $0x30] sm:$0xf]
    %v3670 = vld [vmem:[#allocation6 + $0x34] sm:$0xf]
    %v3671 = vld [vmem:[#allocation6 + $0x38] sm:$0xf]
    %v3672 = vld [vmem:[#allocation6 + $0x3c] sm:$0xf]
    %v3673 = vld [vmem:[#allocation6 + $0x40] sm:$0xf]
    %v3674 = vld [vmem:[#allocation6 + $0x44] sm:$0xf]
    %v3675 = vld [vmem:[#allocation6 + $0x48] sm:$0xf]
    %v3676 = vld [vmem:[#allocation6 + $0x4c] sm:$0xf]
    %v3677 = vld [vmem:[#allocation6 + $0x50] sm:$0xf]
    %v3678 = vld [vmem:[#allocation6 + $0x54] sm:$0xf]
    %v3679 = vld [vmem:[#allocation6 + $0x58] sm:$0xf]
    %v3680 = vld [vmem:[#allocation6 + $0x5c] sm:$0xf]
    %v3681 = vld [vmem:[#allocation6 + $0x60] sm:$0xf]
    %v3682 = vld [vmem:[#allocation6 + $0x64] sm:$0xf]
    %v3683 = vld [vmem:[#allocation6 + $0x68] sm:$0xf]
    %v3684 = vld [vmem:[#allocation6 + $0x6c] sm:$0xf]
    %v3685 = vld [vmem:[#allocation6 + $0x70] sm:$0xf]
    %v3686 = vld [vmem:[#allocation6 + $0x74] sm:$0xf]
    %v3687 = vld [vmem:[#allocation6 + $0x78] sm:$0xf]
    %v3688 = vld [vmem:[#allocation6 + $0x7c] sm:$0xf]
    %v3689 = vld [vmem:[#allocation6 + $0x80] sm:$0xf]
    %v3690 = vld [vmem:[#allocation6 + $0x84] sm:$0xf]
    %v3691 = vld [vmem:[#allocation6 + $0x88] sm:$0xf]
    %v3692 = vld [vmem:[#allocation6 + $0x8c] sm:$0xf]
    %v3693 = vld [vmem:[#allocation6 + $0x90] sm:$0xf]
    %v3694 = vld [vmem:[#allocation6 + $0x94] sm:$0xf]
    %v3695 = vld [vmem:[#allocation6 + $0x98] sm:$0xf]
    %v3696 = vld [vmem:[#allocation6 + $0x9c] sm:$0xf]
    %v3697 = vld [vmem:[#allocation6 + $0xa0] sm:$0xf]
    %v3698 = vld [vmem:[#allocation6 + $0xa4] sm:$0xf]
    %v3699 = vld [vmem:[#allocation6 + $0xa8] sm:$0xf]
    %v3700 = vld [vmem:[#allocation6 + $0xac] sm:$0xf]
    %v3701 = vld [vmem:[#allocation6 + $0xb0] sm:$0xf]
    %v3702 = vld [vmem:[#allocation6 + $0xb4] sm:$0xf]
    %v3703 = vld [vmem:[#allocation6 + $0xb8] sm:$0xf]
    %v3704 = vld [vmem:[#allocation6 + $0xbc] sm:$0xf]
    %v3705 = vld [vmem:[#allocation6 + $0xc0] sm:$0xf]
    %v3706 = vld [vmem:[#allocation6 + $0xc4] sm:$0xf]
    %v3707 = vld [vmem:[#allocation6 + $0xc8] sm:$0xf]
    %v3708 = vld [vmem:[#allocation6 + $0xcc] sm:$0xf]
    %v3709 = vld [vmem:[#allocation6 + $0xd0] sm:$0xf]
    %v3710 = vld [vmem:[#allocation6 + $0xd4] sm:$0xf]
    %v3711 = vld [vmem:[#allocation6 + $0xd8] sm:$0xf]
    %v3712 = vld [vmem:[#allocation6 + $0xdc] sm:$0xf]
    %v3713 = vld [vmem:[#allocation6 + $0xe0] sm:$0xf]
    %v3714 = vld [vmem:[#allocation6 + $0xe4] sm:$0xf]
    %v3715 = vld [vmem:[#allocation6 + $0xe8] sm:$0xf]
    %v3716 = vld [vmem:[#allocation6 + $0xec] sm:$0xf]
    %v3717 = vld [vmem:[#allocation6 + $0xf0] sm:$0xf]
    %v3718 = vld [vmem:[#allocation6 + $0xf4] sm:$0xf]
    %v3719 = vld [vmem:[#allocation6 + $0xf8] sm:$0xf]
    %v3720 = vld [vmem:[#allocation6 + $0xfc] sm:$0xf]
    %v3721 = vld [vmem:[#allocation6 + $0x100] sm:$0xf]
    %v3722 = vld [vmem:[#allocation6 + $0x104] sm:$0xf]
    %v3723 = vld [vmem:[#allocation6 + $0x108] sm:$0xf]
    %v3724 = vld [vmem:[#allocation6 + $0x10c] sm:$0xf]
    %v3725 = vld [vmem:[#allocation6 + $0x110] sm:$0xf]
    %v3726 = vld [vmem:[#allocation6 + $0x114] sm:$0xf]
    %v3727 = vld [vmem:[#allocation6 + $0x118] sm:$0xf]
    %v3728 = vld [vmem:[#allocation6 + $0x11c] sm:$0xf]
    %v3729 = vld [vmem:[#allocation6 + $0x120] sm:$0xf]
    %v3730 = vld [vmem:[#allocation6 + $0x124] sm:$0xf]
    %v3731 = vld [vmem:[#allocation6 + $0x128] sm:$0xf]
    %v3732 = vld [vmem:[#allocation6 + $0x12c] sm:$0xf]
    %v3733 = vld [vmem:[#allocation6 + $0x130] sm:$0xf]
    %v3734 = vld [vmem:[#allocation6 + $0x134] sm:$0xf]
    %v3735 = vld [vmem:[#allocation6 + $0x138] sm:$0xf]
    %v3736 = vld [vmem:[#allocation6 + $0x13c] sm:$0xf]
    %v3737 = vld [vmem:[#allocation6 + $0x140] sm:$0xf]
    %v3738 = vld [vmem:[#allocation6 + $0x144] sm:$0xf]
    %v3739 = vld [vmem:[#allocation6 + $0x148] sm:$0xf]
    %v3740 = vld [vmem:[#allocation6 + $0x14c] sm:$0xf]
    %v3741 = vld [vmem:[#allocation6 + $0x150] sm:$0xf]
    %v3742 = vld [vmem:[#allocation6 + $0x154] sm:$0xf]
    %v3743 = vld [vmem:[#allocation6 + $0x158] sm:$0xf]
    %v3744 = vld [vmem:[#allocation6 + $0x15c] sm:$0xf]
    %v3745 = vld [vmem:[#allocation6 + $0x160] sm:$0xf]
    %v3746 = vld [vmem:[#allocation6 + $0x164] sm:$0xf]
    %v3747 = vld [vmem:[#allocation6 + $0x168] sm:$0xf]
    %v3748 = vld [vmem:[#allocation6 + $0x16c] sm:$0xf]
    %v3749 = vld [vmem:[#allocation6 + $0x170] sm:$0xf]
    %v3750 = vld [vmem:[#allocation6 + $0x174] sm:$0xf]
    %v3751 = vld [vmem:[#allocation6 + $0x178] sm:$0xf]
    %v3752 = vld [vmem:[#allocation6 + $0x17c] sm:$0xf]
    %v3753 = vld [vmem:[#allocation6 + $0x180] sm:$0xf]
    %v3754 = vld [vmem:[#allocation6 + $0x184] sm:$0xf]
    %v3755 = vld [vmem:[#allocation6 + $0x188] sm:$0xf]
    %v3756 = vld [vmem:[#allocation6 + $0x18c] sm:$0xf]
    %v3757 = vld [vmem:[#allocation6 + $0x190] sm:$0xf]
    %v3758 = vld [vmem:[#allocation6 + $0x194] sm:$0xf]
    %v3759 = vld [vmem:[#allocation6 + $0x198] sm:$0xf]
    %v3760 = vld [vmem:[#allocation6 + $0x19c] sm:$0xf]
    %v3761 = vld [vmem:[#allocation6 + $0x1a0] sm:$0xf]
    %v3762 = vld [vmem:[#allocation6 + $0x1a4] sm:$0xf]
    %v3763 = vld [vmem:[#allocation6 + $0x1a8] sm:$0xf]
    %v3764 = vld [vmem:[#allocation6 + $0x1ac] sm:$0xf]
    %v3765 = vld [vmem:[#allocation6 + $0x1b0] sm:$0xf]
    %v3766 = vld [vmem:[#allocation6 + $0x1b4] sm:$0xf]
    %v3767 = vld [vmem:[#allocation6 + $0x1b8] sm:$0xf]
    %v3768 = vld [vmem:[#allocation6 + $0x1bc] sm:$0xf]
    %v3769 = vld [vmem:[#allocation6 + $0x1c0] sm:$0xf]
    %v3770 = vld [vmem:[#allocation6 + $0x1c4] sm:$0xf]
    %v3771 = vld [vmem:[#allocation6 + $0x1c8] sm:$0xf]
    %v3772 = vld [vmem:[#allocation6 + $0x1cc] sm:$0xf]
    %v3773 = vld [vmem:[#allocation6 + $0x1d0] sm:$0xf]
    %v3774 = vld [vmem:[#allocation6 + $0x1d4] sm:$0xf]
    %v3775 = vld [vmem:[#allocation6 + $0x1d8] sm:$0xf]
    %v3776 = vld [vmem:[#allocation6 + $0x1dc] sm:$0xf]
    %v3777 = vld [vmem:[#allocation6 + $0x1e0] sm:$0xf]
    %v3778 = vld [vmem:[#allocation6 + $0x1e4] sm:$0xf]
    %v3779 = vld [vmem:[#allocation6 + $0x1e8] sm:$0xf]
    %v3780 = vld [vmem:[#allocation6 + $0x1ec] sm:$0xf]
    %v3781 = vld [vmem:[#allocation6 + $0x1f0] sm:$0xf]
    %v3782 = vld [vmem:[#allocation6 + $0x1f4] sm:$0xf]
    %v3783 = vld [vmem:[#allocation6 + $0x1f8] sm:$0xf]
    %v3784 = vld [vmem:[#allocation6 + $0x1fc] sm:$0xf]
    %v3785 = vld [vmem:[#allocation6 + $0x200] sm:$0xf]
    %v3786 = vld [vmem:[#allocation6 + $0x204] sm:$0xf]
    %v3787 = vld [vmem:[#allocation6 + $0x208] sm:$0xf]
    %v3788 = vld [vmem:[#allocation6 + $0x20c] sm:$0xf]
    %v3789 = vld [vmem:[#allocation6 + $0x210] sm:$0xf]
    %v3790 = vld [vmem:[#allocation6 + $0x214] sm:$0xf]
    %v3791 = vld [vmem:[#allocation6 + $0x218] sm:$0xf]
    %v3792 = vld [vmem:[#allocation6 + $0x21c] sm:$0xf]
    %v3793 = vld [vmem:[#allocation6 + $0x220] sm:$0xf]
    %v3794 = vld [vmem:[#allocation6 + $0x224] sm:$0xf]
    %v3795 = vld [vmem:[#allocation6 + $0x228] sm:$0xf]
    %v3796 = vld [vmem:[#allocation6 + $0x22c] sm:$0xf]
    %v3797 = vld [vmem:[#allocation6 + $0x230] sm:$0xf]
    %v3798 = vld [vmem:[#allocation6 + $0x234] sm:$0xf]
    %v3799 = vld [vmem:[#allocation6 + $0x238] sm:$0xf]
    %v3800 = vld [vmem:[#allocation6 + $0x23c] sm:$0xf]
    %v3945 = vunpack.c.l.b16 %v3657
    %v3946 = vunpack.c.l.b16 %v3658
    %v3947 = vunpack.c.l.b16 %v3659
    %v3948 = vunpack.c.l.b16 %v3660
    %v3949 = vunpack.c.l.b16 %v3661
    %v3950 = vunpack.c.l.b16 %v3662
    %v3951 = vunpack.c.l.b16 %v3663
    %v3952 = vunpack.c.l.b16 %v3664
    %v3953 = vunpack.c.l.b16 %v3665
    %v3954 = vunpack.c.l.b16 %v3666
    %v3955 = vunpack.c.l.b16 %v3667
    %v3956 = vunpack.c.l.b16 %v3668
    %v3957 = vunpack.c.l.b16 %v3669
    %v3958 = vunpack.c.l.b16 %v3670
    %v3959 = vunpack.c.l.b16 %v3671
    %v3960 = vunpack.c.l.b16 %v3672
    %v3961 = vunpack.c.l.b16 %v3673
    %v3962 = vunpack.c.l.b16 %v3674
    %v3963 = vunpack.c.l.b16 %v3675
    %v3964 = vunpack.c.l.b16 %v3676
    %v3965 = vunpack.c.l.b16 %v3677
    %v3966 = vunpack.c.l.b16 %v3678
    %v3967 = vunpack.c.l.b16 %v3679
    %v3968 = vunpack.c.l.b16 %v3680
    %v3969 = vunpack.c.l.b16 %v3681
    %v3970 = vunpack.c.l.b16 %v3682
    %v3971 = vunpack.c.l.b16 %v3683
    %v3972 = vunpack.c.l.b16 %v3684
    %v3973 = vunpack.c.l.b16 %v3685
    %v3974 = vunpack.c.l.b16 %v3686
    %v3975 = vunpack.c.l.b16 %v3687
    %v3976 = vunpack.c.l.b16 %v3688
    %v3977 = vunpack.c.l.b16 %v3689
    %v3978 = vunpack.c.l.b16 %v3690
    %v3979 = vunpack.c.l.b16 %v3691
    %v3980 = vunpack.c.l.b16 %v3692
    %v3981 = vunpack.c.l.b16 %v3693
    %v3982 = vunpack.c.l.b16 %v3694
    %v3983 = vunpack.c.l.b16 %v3695
    %v3984 = vunpack.c.l.b16 %v3696
    %v3985 = vunpack.c.l.b16 %v3697
    %v3986 = vunpack.c.l.b16 %v3698
    %v3987 = vunpack.c.l.b16 %v3699
    %v3988 = vunpack.c.l.b16 %v3700
    %v3989 = vunpack.c.l.b16 %v3701
    %v3990 = vunpack.c.l.b16 %v3702
    %v3991 = vunpack.c.l.b16 %v3703
    %v3992 = vunpack.c.l.b16 %v3704
    %v3993 = vunpack.c.l.b16 %v3705
    %v3994 = vunpack.c.l.b16 %v3706
    %v3995 = vunpack.c.l.b16 %v3707
    %v3996 = vunpack.c.l.b16 %v3708
    %v3997 = vunpack.c.l.b16 %v3709
    %v3998 = vunpack.c.l.b16 %v3710
    %v3999 = vunpack.c.l.b16 %v3711
    %v4000 = vunpack.c.l.b16 %v3712
    %v4001 = vunpack.c.l.b16 %v3713
    %v4002 = vunpack.c.l.b16 %v3714
    %v4003 = vunpack.c.l.b16 %v3715
    %v4004 = vunpack.c.l.b16 %v3716
    %v4005 = vunpack.c.l.b16 %v3717
    %v4006 = vunpack.c.l.b16 %v3718
    %v4007 = vunpack.c.l.b16 %v3719
    %v4008 = vunpack.c.l.b16 %v3720
    %v4009 = vunpack.c.l.b16 %v3721
    %v4010 = vunpack.c.l.b16 %v3722
    %v4011 = vunpack.c.l.b16 %v3723
    %v4012 = vunpack.c.l.b16 %v3724
    %v4013 = vunpack.c.l.b16 %v3725
    %v4014 = vunpack.c.l.b16 %v3726
    %v4015 = vunpack.c.l.b16 %v3727
    %v4016 = vunpack.c.l.b16 %v3728
    %v4017 = vunpack.c.l.b16 %v3729
    %v4018 = vunpack.c.l.b16 %v3730
    %v4019 = vunpack.c.l.b16 %v3731
    %v4020 = vunpack.c.l.b16 %v3732
    %v4021 = vunpack.c.l.b16 %v3733
    %v4022 = vunpack.c.l.b16 %v3734
    %v4023 = vunpack.c.l.b16 %v3735
    %v4024 = vunpack.c.l.b16 %v3736
    %v4025 = vunpack.c.l.b16 %v3737
    %v4026 = vunpack.c.l.b16 %v3738
    %v4027 = vunpack.c.l.b16 %v3739
    %v4028 = vunpack.c.l.b16 %v3740
    %v4029 = vunpack.c.l.b16 %v3741
    %v4030 = vunpack.c.l.b16 %v3742
    %v4031 = vunpack.c.l.b16 %v3743
    %v4032 = vunpack.c.l.b16 %v3744
    %v4033 = vunpack.c.l.b16 %v3745
    %v4034 = vunpack.c.l.b16 %v3746
    %v4035 = vunpack.c.l.b16 %v3747
    %v4036 = vunpack.c.l.b16 %v3748
    %v4037 = vunpack.c.l.b16 %v3749
    %v4038 = vunpack.c.l.b16 %v3750
    %v4039 = vunpack.c.l.b16 %v3751
    %v4040 = vunpack.c.l.b16 %v3752
    %v4041 = vunpack.c.l.b16 %v3753
    %v4042 = vunpack.c.l.b16 %v3754
    %v4043 = vunpack.c.l.b16 %v3755
    %v4044 = vunpack.c.l.b16 %v3756
    %v4045 = vunpack.c.l.b16 %v3757
    %v4046 = vunpack.c.l.b16 %v3758
    %v4047 = vunpack.c.l.b16 %v3759
    %v4048 = vunpack.c.l.b16 %v3760
    %v4049 = vunpack.c.l.b16 %v3761
    %v4050 = vunpack.c.l.b16 %v3762
    %v4051 = vunpack.c.l.b16 %v3763
    %v4052 = vunpack.c.l.b16 %v3764
    %v4053 = vunpack.c.l.b16 %v3765
    %v4054 = vunpack.c.l.b16 %v3766
    %v4055 = vunpack.c.l.b16 %v3767
    %v4056 = vunpack.c.l.b16 %v3768
    %v4057 = vunpack.c.l.b16 %v3769
    %v4058 = vunpack.c.l.b16 %v3770
    %v4059 = vunpack.c.l.b16 %v3771
    %v4060 = vunpack.c.l.b16 %v3772
    %v4061 = vunpack.c.l.b16 %v3773
    %v4062 = vunpack.c.l.b16 %v3774
    %v4063 = vunpack.c.l.b16 %v3775
    %v4064 = vunpack.c.l.b16 %v3776
    %v4065 = vunpack.c.l.b16 %v3777
    %v4066 = vunpack.c.l.b16 %v3778
    %v4067 = vunpack.c.l.b16 %v3779
    %v4068 = vunpack.c.l.b16 %v3780
    %v4069 = vunpack.c.l.b16 %v3781
    %v4070 = vunpack.c.l.b16 %v3782
    %v4071 = vunpack.c.l.b16 %v3783
    %v4072 = vunpack.c.l.b16 %v3784
    %v4073 = vunpack.c.l.b16 %v3785
    %v4074 = vunpack.c.l.b16 %v3786
    %v4075 = vunpack.c.l.b16 %v3787
    %v4076 = vunpack.c.l.b16 %v3788
    %v4077 = vunpack.c.l.b16 %v3789
    %v4078 = vunpack.c.l.b16 %v3790
    %v4079 = vunpack.c.l.b16 %v3791
    %v4080 = vunpack.c.l.b16 %v3792
    %v4081 = vunpack.c.l.b16 %v3793
    %v4082 = vunpack.c.l.b16 %v3794
    %v4083 = vunpack.c.l.b16 %v3795
    %v4084 = vunpack.c.l.b16 %v3796
    %v4085 = vunpack.c.l.b16 %v3797
    %v4086 = vunpack.c.l.b16 %v3798
    %v4087 = vunpack.c.l.b16 %v3799
    %v4088 = vunpack.c.l.b16 %v3800
    %v4089 = vpack.c.b16 %v3946, %v3945
    %v4090 = vpack.c.b16 %v3948, %v3947
    %v4091 = vpack.c.b16 %v3950, %v3949
    %v4092 = vpack.c.b16 %v3952, %v3951
    %v4093 = vpack.c.b16 %v3954, %v3953
    %v4094 = vpack.c.b16 %v3956, %v3955
    %v4095 = vpack.c.b16 %v3958, %v3957
    %v4096 = vpack.c.b16 %v3960, %v3959
    %v4097 = vpack.c.b16 %v3962, %v3961
    %v4098 = vpack.c.b16 %v3964, %v3963
    %v4099 = vpack.c.b16 %v3966, %v3965
    %v4100 = vpack.c.b16 %v3968, %v3967
    %v4101 = vpack.c.b16 %v3970, %v3969
    %v4102 = vpack.c.b16 %v3972, %v3971
    %v4103 = vpack.c.b16 %v3974, %v3973
    %v4104 = vpack.c.b16 %v3976, %v3975
    %v4105 = vpack.c.b16 %v3978, %v3977
    %v4106 = vpack.c.b16 %v3980, %v3979
    %v4107 = vpack.c.b16 %v3982, %v3981
    %v4108 = vpack.c.b16 %v3984, %v3983
    %v4109 = vpack.c.b16 %v3986, %v3985
    %v4110 = vpack.c.b16 %v3988, %v3987
    %v4111 = vpack.c.b16 %v3990, %v3989
    %v4112 = vpack.c.b16 %v3992, %v3991
    %v4113 = vpack.c.b16 %v3994, %v3993
    %v4114 = vpack.c.b16 %v3996, %v3995
    %v4115 = vpack.c.b16 %v3998, %v3997
    %v4116 = vpack.c.b16 %v4000, %v3999
    %v4117 = vpack.c.b16 %v4002, %v4001
    %v4118 = vpack.c.b16 %v4004, %v4003
    %v4119 = vpack.c.b16 %v4006, %v4005
    %v4120 = vpack.c.b16 %v4008, %v4007
    %v4121 = vpack.c.b16 %v4010, %v4009
    %v4122 = vpack.c.b16 %v4012, %v4011
    %v4123 = vpack.c.b16 %v4014, %v4013
    %v4124 = vpack.c.b16 %v4016, %v4015
    %v4125 = vpack.c.b16 %v4018, %v4017
    %v4126 = vpack.c.b16 %v4020, %v4019
    %v4127 = vpack.c.b16 %v4022, %v4021
    %v4128 = vpack.c.b16 %v4024, %v4023
    %v4129 = vpack.c.b16 %v4026, %v4025
    %v4130 = vpack.c.b16 %v4028, %v4027
    %v4131 = vpack.c.b16 %v4030, %v4029
    %v4132 = vpack.c.b16 %v4032, %v4031
    %v4133 = vpack.c.b16 %v4034, %v4033
    %v4134 = vpack.c.b16 %v4036, %v4035
    %v4135 = vpack.c.b16 %v4038, %v4037
    %v4136 = vpack.c.b16 %v4040, %v4039
    %v4137 = vpack.c.b16 %v4042, %v4041
    %v4138 = vpack.c.b16 %v4044, %v4043
    %v4139 = vpack.c.b16 %v4046, %v4045
    %v4140 = vpack.c.b16 %v4048, %v4047
    %v4141 = vpack.c.b16 %v4050, %v4049
    %v4142 = vpack.c.b16 %v4052, %v4051
    %v4143 = vpack.c.b16 %v4054, %v4053
    %v4144 = vpack.c.b16 %v4056, %v4055
    %v4145 = vpack.c.b16 %v4058, %v4057
    %v4146 = vpack.c.b16 %v4060, %v4059
    %v4147 = vpack.c.b16 %v4062, %v4061
    %v4148 = vpack.c.b16 %v4064, %v4063
    %v4149 = vpack.c.b16 %v4066, %v4065
    %v4150 = vpack.c.b16 %v4068, %v4067
    %v4151 = vpack.c.b16 %v4070, %v4069
    %v4152 = vpack.c.b16 %v4072, %v4071
    %v4153 = vpack.c.b16 %v4074, %v4073
    %v4154 = vpack.c.b16 %v4076, %v4075
    %v4155 = vpack.c.b16 %v4078, %v4077
    %v4156 = vpack.c.b16 %v4080, %v4079
    %v4157 = vpack.c.b16 %v4082, %v4081
    %v4158 = vpack.c.b16 %v4084, %v4083
    %v4159 = vpack.c.b16 %v4086, %v4085
    %v4160 = vpack.c.b16 %v4088, %v4087
    %4233 = vmatprep.subr.bf16.mxu0 0
    %4234 = vmatpush1.bf16.msra.mxu0 %v4096
    %4235 = vmatprep.subr.bf16.mxu0 0
    %4236 = vmatpush1.bf16.msra.mxu0 %v4095
    %4237 = vmatprep.subr.bf16.mxu0 0
    %4238 = vmatpush1.bf16.msra.mxu0 %v4094
    %4239 = vmatprep.subr.bf16.mxu0 0
    %4240 = vmatpush1.bf16.msra.mxu0 %v4093
    %4241 = vmatprep.subr.bf16.mxu0 0
    %4242 = vmatpush1.bf16.msra.mxu0 %v4092
    %4243 = vmatprep.subr.bf16.mxu0 0
    %4244 = vmatpush1.bf16.msra.mxu0 %v4091
    %4245 = vmatprep.subr.bf16.mxu0 0
    %4246 = vmatpush1.bf16.msra.mxu0 %v4090
    %4247 = vmatprep.subr.bf16.mxu0 0
    %4248 = vmatpush1.bf16.msra.mxu0 %v4089
    %4249 = vmatprep.subr.bf16.mxu0 0
    %4250 = vmatpush2.bf16.msra.mxu0 %v4104
    %4251 = vmatprep.subr.bf16.mxu0 0
    %4252 = vmatpush2.bf16.msra.mxu0 %v4103
    %4253 = vmatprep.subr.bf16.mxu0 0
    %4254 = vmatpush2.bf16.msra.mxu0 %v4102
    %4255 = vmatprep.subr.bf16.mxu0 0
    %4256 = vmatpush2.bf16.msra.mxu0 %v4101
    %4257 = vmatprep.subr.bf16.mxu0 0
    %4258 = vmatpush2.bf16.msra.mxu0 %v4100
    %4259 = vmatprep.subr.bf16.mxu0 0
    %4260 = vmatpush2.bf16.msra.mxu0 %v4099
    %4261 = vmatprep.subr.bf16.mxu0 0
    %4262 = vmatpush2.bf16.msra.mxu0 %v4098
    %4263 = vmatprep.subr.bf16.mxu0 0
    %4264 = vmatpush2.bf16.msra.mxu0 %v4097
    %4265 = vmatprep.mubr.bf16.mxu0 %v3595
    %4266 = vmatmul.mubr.bf16.gmra.mxu0 %v3594
    %v4267 = vpop.f32.mrf.mxu0
    %v4268 = vadd.f32 0.0, %v4267
    %v4269 = vpop.f32.mrf.mxu0
    %v4270 = vpop.f32.mrf.mxu0
    %v4271 = vadd.f32 0.0, %v4270
    %v4272 = vpop.f32.mrf.mxu0
    %4273 = vmatprep.mubr.bf16.mxu0 %v3604
    %4274 = vmatmul.mubr.bf16.gmra.mxu0 %v3603
    %v4275 = vpop.f32.mrf.mxu0
    %v4276 = vadd.f32 0.0, %v4275
    %v4277 = vpop.f32.mrf.mxu0
    %v4278 = vpop.f32.mrf.mxu0
    %v4279 = vadd.f32 0.0, %v4278
    %v4280 = vpop.f32.mrf.mxu0
    %4281 = vmatprep.mubr.bf16.mxu0 %v3613
    %4282 = vmatmul.mubr.bf16.gmra.mxu0 %v3612
    %v4283 = vpop.f32.mrf.mxu0
    %v4284 = vadd.f32 0.0, %v4283
    %v4285 = vpop.f32.mrf.mxu0
    %v4286 = vpop.f32.mrf.mxu0
    %v4287 = vadd.f32 0.0, %v4286
    %v4288 = vpop.f32.mrf.mxu0
    %4289 = vmatprep.mubr.bf16.mxu0 %v3622
    %4290 = vmatmul.mubr.bf16.gmra.mxu0 %v3621
    %v4291 = vpop.f32.mrf.mxu0
    %v4292 = vadd.f32 0.0, %v4291
    %v4293 = vpop.f32.mrf.mxu0
    %v4294 = vpop.f32.mrf.mxu0
    %v4295 = vadd.f32 0.0, %v4294
    %v4296 = vpop.f32.mrf.mxu0
    %4297 = vmatprep.mubr.bf16.mxu0 %v3631
    %4298 = vmatmul.mubr.bf16.gmra.mxu0 %v3630
    %v4299 = vpop.f32.mrf.mxu0
    %v4300 = vadd.f32 0.0, %v4299
    %v4301 = vpop.f32.mrf.mxu0
    %v4302 = vpop.f32.mrf.mxu0
    %v4303 = vadd.f32 0.0, %v4302
    %v4304 = vpop.f32.mrf.mxu0
    %4305 = vmatprep.mubr.bf16.mxu0 %v3640
    %4306 = vmatmul.mubr.bf16.gmra.mxu0 %v3639
    %v4307 = vpop.f32.mrf.mxu0
    %v4308 = vadd.f32 0.0, %v4307
    %v4309 = vpop.f32.mrf.mxu0
    %v4310 = vpop.f32.mrf.mxu0
    %v4311 = vadd.f32 0.0, %v4310
    %v4312 = vpop.f32.mrf.mxu0
    %4313 = vmatprep.mubr.bf16.mxu0 %v3649
    %4314 = vmatmul.mubr.bf16.gmra.mxu0 %v3648
    %v4315 = vpop.f32.mrf.mxu0
    %v4316 = vadd.f32 0.0, %v4315
    %v4317 = vpop.f32.mrf.mxu0
    %v4318 = vpop.f32.mrf.mxu0
    %v4319 = vadd.f32 0.0, %v4318
    %v4320 = vpop.f32.mrf.mxu0
    %4321 = vdwg.mxu0
    %4322 = vmatprep.subr.bf16.mxu0 0
    %4323 = vmatpush1.bf16.msra.mxu0 %v4112
    %4324 = vmatprep.subr.bf16.mxu0 0
    %4325 = vmatpush1.bf16.msra.mxu0 %v4111
    %4326 = vmatprep.subr.bf16.mxu0 0
    %4327 = vmatpush1.bf16.msra.mxu0 %v4110
    %4328 = vmatprep.subr.bf16.mxu0 0
    %4329 = vmatpush1.bf16.msra.mxu0 %v4109
    %4330 = vmatprep.subr.bf16.mxu0 0
    %4331 = vmatpush1.bf16.msra.mxu0 %v4108
    %4332 = vmatprep.subr.bf16.mxu0 0
    %4333 = vmatpush1.bf16.msra.mxu0 %v4107
    %4334 = vmatprep.subr.bf16.mxu0 0
    %4335 = vmatpush1.bf16.msra.mxu0 %v4106
    %4336 = vmatprep.subr.bf16.mxu0 0
    %4337 = vmatpush1.bf16.msra.mxu0 %v4105
    %4338 = vmatprep.subr.bf16.mxu0 0
    %4339 = vmatpush2.bf16.msra.mxu0 %v4120
    %4340 = vmatprep.subr.bf16.mxu0 0
    %4341 = vmatpush2.bf16.msra.mxu0 %v4119
    %4342 = vmatprep.subr.bf16.mxu0 0
    %4343 = vmatpush2.bf16.msra.mxu0 %v4118
    %4344 = vmatprep.subr.bf16.mxu0 0
    %4345 = vmatpush2.bf16.msra.mxu0 %v4117
    %4346 = vmatprep.subr.bf16.mxu0 0
    %4347 = vmatpush2.bf16.msra.mxu0 %v4116
    %4348 = vmatprep.subr.bf16.mxu0 0
    %4349 = vmatpush2.bf16.msra.mxu0 %v4115
    %4350 = vmatprep.subr.bf16.mxu0 0
    %4351 = vmatpush2.bf16.msra.mxu0 %v4114
    %4352 = vmatprep.subr.bf16.mxu0 0
    %4353 = vmatpush2.bf16.msra.mxu0 %v4113
    %4354 = vmatprep.mubr.bf16.mxu0 %v3597
    %4355 = vmatmul.mubr.bf16.gmra.mxu0 %v3596
    %v4356 = vpop.f32.mrf.mxu0
    %v4357 = vadd.f32 %v4268, %v4356
    %v4358 = vpop.f32.mrf.mxu0
    %v4359 = vpop.f32.mrf.mxu0
    %v4360 = vadd.f32 %v4271, %v4359
    %v4361 = vpop.f32.mrf.mxu0
    %4362 = vmatprep.mubr.bf16.mxu0 %v3606
    %4363 = vmatmul.mubr.bf16.gmra.mxu0 %v3605
    %v4364 = vpop.f32.mrf.mxu0
    %v4365 = vadd.f32 %v4276, %v4364
    %v4366 = vpop.f32.mrf.mxu0
    %v4367 = vpop.f32.mrf.mxu0
    %v4368 = vadd.f32 %v4279, %v4367
    %v4369 = vpop.f32.mrf.mxu0
    %4370 = vmatprep.mubr.bf16.mxu0 %v3615
    %4371 = vmatmul.mubr.bf16.gmra.mxu0 %v3614
    %v4372 = vpop.f32.mrf.mxu0
    %v4373 = vadd.f32 %v4284, %v4372
    %v4374 = vpop.f32.mrf.mxu0
    %v4375 = vpop.f32.mrf.mxu0
    %v4376 = vadd.f32 %v4287, %v4375
    %v4377 = vpop.f32.mrf.mxu0
    %4378 = vmatprep.mubr.bf16.mxu0 %v3624
    %4379 = vmatmul.mubr.bf16.gmra.mxu0 %v3623
    %v4380 = vpop.f32.mrf.mxu0
    %v4381 = vadd.f32 %v4292, %v4380
    %v4382 = vpop.f32.mrf.mxu0
    %v4383 = vpop.f32.mrf.mxu0
    %v4384 = vadd.f32 %v4295, %v4383
    %v4385 = vpop.f32.mrf.mxu0
    %4386 = vmatprep.mubr.bf16.mxu0 %v3633
    %4387 = vmatmul.mubr.bf16.gmra.mxu0 %v3632
    %v4388 = vpop.f32.mrf.mxu0
    %v4389 = vadd.f32 %v4300, %v4388
    %v4390 = vpop.f32.mrf.mxu0
    %v4391 = vpop.f32.mrf.mxu0
    %v4392 = vadd.f32 %v4303, %v4391
    %v4393 = vpop.f32.mrf.mxu0
    %4394 = vmatprep.mubr.bf16.mxu0 %v3642
    %4395 = vmatmul.mubr.bf16.gmra.mxu0 %v3641
    %v4396 = vpop.f32.mrf.mxu0
    %v4397 = vadd.f32 %v4308, %v4396
    %v4398 = vpop.f32.mrf.mxu0
    %v4399 = vpop.f32.mrf.mxu0
    %v4400 = vadd.f32 %v4311, %v4399
    %v4401 = vpop.f32.mrf.mxu0
    %4402 = vmatprep.mubr.bf16.mxu0 %v3651
    %4403 = vmatmul.mubr.bf16.gmra.mxu0 %v3650
    %v4404 = vpop.f32.mrf.mxu0
    %v4405 = vadd.f32 %v4316, %v4404
    %v4406 = vpop.f32.mrf.mxu0
    %v4407 = vpop.f32.mrf.mxu0
    %v4408 = vadd.f32 %v4319, %v4407
    %v4409 = vpop.f32.mrf.mxu0
    %4410 = vdwg.mxu0
    %4411 = vmatprep.subr.bf16.mxu0 0
    %4412 = vmatpush1.bf16.msra.mxu0 %v4128
    %4413 = vmatprep.subr.bf16.mxu0 0
    %4414 = vmatpush1.bf16.msra.mxu0 %v4127
    %4415 = vmatprep.subr.bf16.mxu0 0
    %4416 = vmatpush1.bf16.msra.mxu0 %v4126
    %4417 = vmatprep.subr.bf16.mxu0 0
    %4418 = vmatpush1.bf16.msra.mxu0 %v4125
    %4419 = vmatprep.subr.bf16.mxu0 0
    %4420 = vmatpush1.bf16.msra.mxu0 %v4124
    %4421 = vmatprep.subr.bf16.mxu0 0
    %4422 = vmatpush1.bf16.msra.mxu0 %v4123
    %4423 = vmatprep.subr.bf16.mxu0 0
    %4424 = vmatpush1.bf16.msra.mxu0 %v4122
    %4425 = vmatprep.subr.bf16.mxu0 0
    %4426 = vmatpush1.bf16.msra.mxu0 %v4121
    %4427 = vmatprep.subr.bf16.mxu0 0
    %4428 = vmatpush2.bf16.msra.mxu0 %v4136
    %4429 = vmatprep.subr.bf16.mxu0 0
    %4430 = vmatpush2.bf16.msra.mxu0 %v4135
    %4431 = vmatprep.subr.bf16.mxu0 0
    %4432 = vmatpush2.bf16.msra.mxu0 %v4134
    %4433 = vmatprep.subr.bf16.mxu0 0
    %4434 = vmatpush2.bf16.msra.mxu0 %v4133
    %4435 = vmatprep.subr.bf16.mxu0 0
    %4436 = vmatpush2.bf16.msra.mxu0 %v4132
    %4437 = vmatprep.subr.bf16.mxu0 0
    %4438 = vmatpush2.bf16.msra.mxu0 %v4131
    %4439 = vmatprep.subr.bf16.mxu0 0
    %4440 = vmatpush2.bf16.msra.mxu0 %v4130
    %4441 = vmatprep.subr.bf16.mxu0 0
    %4442 = vmatpush2.bf16.msra.mxu0 %v4129
    %4443 = vmatprep.mubr.bf16.mxu0 %v3599
    %4444 = vmatmul.mubr.bf16.gmra.mxu0 %v3598
    %v4445 = vpop.f32.mrf.mxu0
    %v4446 = vadd.f32 %v4357, %v4445
    %v4447 = vpop.f32.mrf.mxu0
    %v4448 = vpop.f32.mrf.mxu0
    %v4449 = vadd.f32 %v4360, %v4448
    %v4450 = vpop.f32.mrf.mxu0
    %4451 = vmatprep.mubr.bf16.mxu0 %v3608
    %4452 = vmatmul.mubr.bf16.gmra.mxu0 %v3607
    %v4453 = vpop.f32.mrf.mxu0
    %v4454 = vadd.f32 %v4365, %v4453
    %v4455 = vpop.f32.mrf.mxu0
    %v4456 = vpop.f32.mrf.mxu0
    %v4457 = vadd.f32 %v4368, %v4456
    %v4458 = vpop.f32.mrf.mxu0
    %4459 = vmatprep.mubr.bf16.mxu0 %v3617
    %4460 = vmatmul.mubr.bf16.gmra.mxu0 %v3616
    %v4461 = vpop.f32.mrf.mxu0
    %v4462 = vadd.f32 %v4373, %v4461
    %v4463 = vpop.f32.mrf.mxu0
    %v4464 = vpop.f32.mrf.mxu0
    %v4465 = vadd.f32 %v4376, %v4464
    %v4466 = vpop.f32.mrf.mxu0
    %4467 = vmatprep.mubr.bf16.mxu0 %v3626
    %4468 = vmatmul.mubr.bf16.gmra.mxu0 %v3625
    %v4469 = vpop.f32.mrf.mxu0
    %v4470 = vadd.f32 %v4381, %v4469
    %v4471 = vpop.f32.mrf.mxu0
    %v4472 = vpop.f32.mrf.mxu0
    %v4473 = vadd.f32 %v4384, %v4472
    %v4474 = vpop.f32.mrf.mxu0
    %4475 = vmatprep.mubr.bf16.mxu0 %v3635
    %4476 = vmatmul.mubr.bf16.gmra.mxu0 %v3634
    %v4477 = vpop.f32.mrf.mxu0
    %v4478 = vadd.f32 %v4389, %v4477
    %v4479 = vpop.f32.mrf.mxu0
    %v4480 = vpop.f32.mrf.mxu0
    %v4481 = vadd.f32 %v4392, %v4480
    %v4482 = vpop.f32.mrf.mxu0
    %4483 = vmatprep.mubr.bf16.mxu0 %v3644
    %4484 = vmatmul.mubr.bf16.gmra.mxu0 %v3643
    %v4485 = vpop.f32.mrf.mxu0
    %v4486 = vadd.f32 %v4397, %v4485
    %v4487 = vpop.f32.mrf.mxu0
    %v4488 = vpop.f32.mrf.mxu0
    %v4489 = vadd.f32 %v4400, %v4488
    %v4490 = vpop.f32.mrf.mxu0
    %4491 = vmatprep.mubr.bf16.mxu0 %v3653
    %4492 = vmatmul.mubr.bf16.gmra.mxu0 %v3652
    %v4493 = vpop.f32.mrf.mxu0
    %v4494 = vadd.f32 %v4405, %v4493
    %v4495 = vpop.f32.mrf.mxu0
    %v4496 = vpop.f32.mrf.mxu0
    %v4497 = vadd.f32 %v4408, %v4496
    %v4498 = vpop.f32.mrf.mxu0
    %4499 = vdwg.mxu0
    %4500 = vmatprep.subr.bf16.mxu0 0
    %4501 = vmatpush1.bf16.msra.mxu0 %v4144
    %4502 = vmatprep.subr.bf16.mxu0 0
    %4503 = vmatpush1.bf16.msra.mxu0 %v4143
    %4504 = vmatprep.subr.bf16.mxu0 0
    %4505 = vmatpush1.bf16.msra.mxu0 %v4142
    %4506 = vmatprep.subr.bf16.mxu0 0
    %4507 = vmatpush1.bf16.msra.mxu0 %v4141
    %4508 = vmatprep.subr.bf16.mxu0 0
    %4509 = vmatpush1.bf16.msra.mxu0 %v4140
    %4510 = vmatprep.subr.bf16.mxu0 0
    %4511 = vmatpush1.bf16.msra.mxu0 %v4139
    %4512 = vmatprep.subr.bf16.mxu0 0
    %4513 = vmatpush1.bf16.msra.mxu0 %v4138
    %4514 = vmatprep.subr.bf16.mxu0 0
    %4515 = vmatpush1.bf16.msra.mxu0 %v4137
    %4516 = vmatprep.subr.bf16.mxu0 0
    %4517 = vmatpush2.bf16.msra.mxu0 %v4152
    %4518 = vmatprep.subr.bf16.mxu0 0
    %4519 = vmatpush2.bf16.msra.mxu0 %v4151
    %4520 = vmatprep.subr.bf16.mxu0 0
    %4521 = vmatpush2.bf16.msra.mxu0 %v4150
    %4522 = vmatprep.subr.bf16.mxu0 0
    %4523 = vmatpush2.bf16.msra.mxu0 %v4149
    %4524 = vmatprep.subr.bf16.mxu0 0
    %4525 = vmatpush2.bf16.msra.mxu0 %v4148
    %4526 = vmatprep.subr.bf16.mxu0 0
    %4527 = vmatpush2.bf16.msra.mxu0 %v4147
    %4528 = vmatprep.subr.bf16.mxu0 0
    %4529 = vmatpush2.bf16.msra.mxu0 %v4146
    %4530 = vmatprep.subr.bf16.mxu0 0
    %4531 = vmatpush2.bf16.msra.mxu0 %v4145
    %4532 = vmatprep.mubr.bf16.mxu0 %v3601
    %4533 = vmatmul.mubr.bf16.gmra.mxu0 %v3600
    %v4534 = vpop.f32.mrf.mxu0
    %v4535 = vadd.f32 %v4446, %v4534
    %v4536 = vpop.f32.mrf.mxu0
    %v4537 = vpop.f32.mrf.mxu0
    %v4538 = vadd.f32 %v4449, %v4537
    %v4539 = vpop.f32.mrf.mxu0
    %4540 = vmatprep.mubr.bf16.mxu0 %v3610
    %4541 = vmatmul.mubr.bf16.gmra.mxu0 %v3609
    %v4542 = vpop.f32.mrf.mxu0
    %v4543 = vadd.f32 %v4454, %v4542
    %v4544 = vpop.f32.mrf.mxu0
    %v4545 = vpop.f32.mrf.mxu0
    %v4546 = vadd.f32 %v4457, %v4545
    %v4547 = vpop.f32.mrf.mxu0
    %4548 = vmatprep.mubr.bf16.mxu0 %v3619
    %4549 = vmatmul.mubr.bf16.gmra.mxu0 %v3618
    %v4550 = vpop.f32.mrf.mxu0
    %v4551 = vadd.f32 %v4462, %v4550
    %v4552 = vpop.f32.mrf.mxu0
    %v4553 = vpop.f32.mrf.mxu0
    %v4554 = vadd.f32 %v4465, %v4553
    %v4555 = vpop.f32.mrf.mxu0
    %4556 = vmatprep.mubr.bf16.mxu0 %v3628
    %4557 = vmatmul.mubr.bf16.gmra.mxu0 %v3627
    %v4558 = vpop.f32.mrf.mxu0
    %v4559 = vadd.f32 %v4470, %v4558
    %v4560 = vpop.f32.mrf.mxu0
    %v4561 = vpop.f32.mrf.mxu0
    %v4562 = vadd.f32 %v4473, %v4561
    %v4563 = vpop.f32.mrf.mxu0
    %4564 = vmatprep.mubr.bf16.mxu0 %v3637
    %4565 = vmatmul.mubr.bf16.gmra.mxu0 %v3636
    %v4566 = vpop.f32.mrf.mxu0
    %v4567 = vadd.f32 %v4478, %v4566
    %v4568 = vpop.f32.mrf.mxu0
    %v4569 = vpop.f32.mrf.mxu0
    %v4570 = vadd.f32 %v4481, %v4569
    %v4571 = vpop.f32.mrf.mxu0
    %4572 = vmatprep.mubr.bf16.mxu0 %v3646
    %4573 = vmatmul.mubr.bf16.gmra.mxu0 %v3645
    %v4574 = vpop.f32.mrf.mxu0
    %v4575 = vadd.f32 %v4486, %v4574
    %v4576 = vpop.f32.mrf.mxu0
    %v4577 = vpop.f32.mrf.mxu0
    %v4578 = vadd.f32 %v4489, %v4577
    %v4579 = vpop.f32.mrf.mxu0
    %4580 = vmatprep.mubr.bf16.mxu0 %v3655
    %4581 = vmatmul.mubr.bf16.gmra.mxu0 %v3654
    %v4582 = vpop.f32.mrf.mxu0
    %v4583 = vadd.f32 %v4494, %v4582
    %v4584 = vpop.f32.mrf.mxu0
    %v4585 = vpop.f32.mrf.mxu0
    %v4586 = vadd.f32 %v4497, %v4585
    %v4587 = vpop.f32.mrf.mxu0
    %4588 = vdwg.mxu0
    %4589 = vmatprep.subr.bf16.mxu0 0
    %4590 = vmatpush1.bf16.msra.mxu0 %v4160
    %4591 = vmatprep.subr.bf16.mxu0 0
    %4592 = vmatpush1.bf16.msra.mxu0 %v4159
    %4593 = vmatprep.subr.bf16.mxu0 0
    %4594 = vmatpush1.bf16.msra.mxu0 %v4158
    %4595 = vmatprep.subr.bf16.mxu0 0
    %4596 = vmatpush1.bf16.msra.mxu0 %v4157
    %4597 = vmatprep.subr.bf16.mxu0 0
    %4598 = vmatpush1.bf16.msra.mxu0 %v4156
    %4599 = vmatprep.subr.bf16.mxu0 0
    %4600 = vmatpush1.bf16.msra.mxu0 %v4155
    %4601 = vmatprep.subr.bf16.mxu0 0
    %4602 = vmatpush1.bf16.msra.mxu0 %v4154
    %4603 = vmatprep.subr.bf16.mxu0 0
    %4604 = vmatpush1.bf16.msra.mxu0 %v4153
    %4605 = vmatprep.subr.bf16.mxu0 0
    %4606 = vmatpush2.bf16.msra.mxu0 0
    %4607 = vmatprep.subr.bf16.mxu0 0
    %4608 = vmatpush2.bf16.msra.mxu0 0
    %4609 = vmatprep.subr.bf16.mxu0 0
    %4610 = vmatpush2.bf16.msra.mxu0 0
    %4611 = vmatprep.subr.bf16.mxu0 0
    %4612 = vmatpush2.bf16.msra.mxu0 0
    %4613 = vmatprep.subr.bf16.mxu0 0
    %4614 = vmatpush2.bf16.msra.mxu0 0
    %4615 = vmatprep.subr.bf16.mxu0 0
    %4616 = vmatpush2.bf16.msra.mxu0 0
    %4617 = vmatprep.subr.bf16.mxu0 0
    %4618 = vmatpush2.bf16.msra.mxu0 0
    %4619 = vmatprep.subr.bf16.mxu0 0
    %4620 = vmatpush2.bf16.msra.mxu0 0
    %4621 = vmatprep.mubr.bf16.mxu0 0
    %4622 = vmatmul.mubr.bf16.gmra.mxu0 %v3602
    %v4623 = vpop.f32.mrf.mxu0
    %v4624 = vadd.f32 %v4535, %v4623
    %v4625 = vpop.f32.mrf.mxu0
    %v4626 = vpop.f32.mrf.mxu0
    %v4627 = vadd.f32 %v4538, %v4626
    %v4628 = vpop.f32.mrf.mxu0
    %4629 = vmatprep.mubr.bf16.mxu0 0
    %4630 = vmatmul.mubr.bf16.gmra.mxu0 %v3611
    %v4631 = vpop.f32.mrf.mxu0
    %v4632 = vadd.f32 %v4543, %v4631
    %v4633 = vpop.f32.mrf.mxu0
    %v4634 = vpop.f32.mrf.mxu0
    %v4635 = vadd.f32 %v4546, %v4634
    %v4636 = vpop.f32.mrf.mxu0
    %4637 = vmatprep.mubr.bf16.mxu0 0
    %4638 = vmatmul.mubr.bf16.gmra.mxu0 %v3620
    %v4639 = vpop.f32.mrf.mxu0
    %v4640 = vadd.f32 %v4551, %v4639
    %v4641 = vpop.f32.mrf.mxu0
    %v4642 = vpop.f32.mrf.mxu0
    %v4643 = vadd.f32 %v4554, %v4642
    %v4644 = vpop.f32.mrf.mxu0
    %4645 = vmatprep.mubr.bf16.mxu0 0
    %4646 = vmatmul.mubr.bf16.gmra.mxu0 %v3629
    %v4647 = vpop.f32.mrf.mxu0
    %v4648 = vadd.f32 %v4559, %v4647
    %v4649 = vpop.f32.mrf.mxu0
    %v4650 = vpop.f32.mrf.mxu0
    %v4651 = vadd.f32 %v4562, %v4650
    %v4652 = vpop.f32.mrf.mxu0
    %4653 = vmatprep.mubr.bf16.mxu0 0
    %4654 = vmatmul.mubr.bf16.gmra.mxu0 %v3638
    %v4655 = vpop.f32.mrf.mxu0
    %v4656 = vadd.f32 %v4567, %v4655
    %v4657 = vpop.f32.mrf.mxu0
    %v4658 = vpop.f32.mrf.mxu0
    %v4659 = vadd.f32 %v4570, %v4658
    %v4660 = vpop.f32.mrf.mxu0
    %4661 = vmatprep.mubr.bf16.mxu0 0
    %4662 = vmatmul.mubr.bf16.gmra.mxu0 %v3647
    %v4663 = vpop.f32.mrf.mxu0
    %v4664 = vadd.f32 %v4575, %v4663
    %v4665 = vpop.f32.mrf.mxu0
    %v4666 = vpop.f32.mrf.mxu0
    %v4667 = vadd.f32 %v4578, %v4666
    %v4668 = vpop.f32.mrf.mxu0
    %4669 = vmatprep.mubr.bf16.mxu0 0
    %4670 = vmatmul.mubr.bf16.gmra.mxu0 %v3656
    %v4671 = vpop.f32.mrf.mxu0
    %v4672 = vadd.f32 %v4583, %v4671
    %v4673 = vpop.f32.mrf.mxu0
    %v4674 = vpop.f32.mrf.mxu0
    %v4675 = vadd.f32 %v4586, %v4674
    %v4676 = vpop.f32.mrf.mxu0
    %4677 = vdwg.mxu0
    %v4678 = vld [vmem:[%s6] sm:$0x1]
    %v4679 = vlaneseq
    %v4680 = vshrl.u32 %v4679, 7
    %v4681 = vsub.s32 0, %v4680
    %v4682 = vrot.slane %v4678, %v4681
    %v4683 = vmul.f32 %v4624, %v4682
    %v4684 = vmul.f32 %v4627, %v4682
    %v4685 = vmul.f32 %v4632, %v4682
    %v4686 = vmul.f32 %v4635, %v4682
    %v4687 = vmul.f32 %v4640, %v4682
    %v4688 = vmul.f32 %v4643, %v4682
    %v4689 = vmul.f32 %v4648, %v4682
    %v4690 = vmul.f32 %v4651, %v4682
    %v4691 = vmul.f32 %v4656, %v4682
    %v4692 = vmul.f32 %v4659, %v4682
    %v4693 = vmul.f32 %v4664, %v4682
    %v4694 = vmul.f32 %v4667, %v4682
    %v4695 = vmul.f32 %v4672, %v4682
    %v4696 = vmul.f32 %v4675, %v4682
    %v4697 = vld [vmem:[%s6 + $0x1] sm:$0x1]
    %v4698 = vlaneseq
    %v4699 = vshrl.u32 %v4698, 7
    %v4700 = vsub.s32 0, %v4699
    %v4701 = vrot.slane %v4697, %v4700
    %v4702 = vadd.f32 %v4683, %v4701
    %v4703 = vadd.f32 %v4684, %v4701
    %v4704 = vadd.f32 %v4685, %v4701
    %v4705 = vadd.f32 %v4686, %v4701
    %v4706 = vadd.f32 %v4687, %v4701
    %v4707 = vadd.f32 %v4688, %v4701
    %v4708 = vadd.f32 %v4689, %v4701
    %v4709 = vadd.f32 %v4690, %v4701
    %v4710 = vadd.f32 %v4691, %v4701
    %v4711 = vadd.f32 %v4692, %v4701
    %v4712 = vadd.f32 %v4693, %v4701
    %v4713 = vadd.f32 %v4694, %v4701
    %v4714 = vadd.f32 %v4695, %v4701
    %v4715 = vadd.f32 %v4696, %v4701
    %v4716 = vmax.f32 %v4702, 0.0
    %v4717 = vmax.f32 %v4703, 0.0
    %v4718 = vmax.f32 %v4704, 0.0
    %v4719 = vmax.f32 %v4705, 0.0
    %v4720 = vmax.f32 %v4706, 0.0
    %v4721 = vmax.f32 %v4707, 0.0
    %v4722 = vmax.f32 %v4708, 0.0
    %v4723 = vmax.f32 %v4709, 0.0
    %v4724 = vmax.f32 %v4710, 0.0
    %v4725 = vmax.f32 %v4711, 0.0
    %v4726 = vmax.f32 %v4712, 0.0
    %v4727 = vmax.f32 %v4713, 0.0
    %v4728 = vmax.f32 %v4714, 0.0
    %v4729 = vmax.f32 %v4715, 0.0
    %v4730 = vadd.f32 %v4716, %v4717
    %v4731 = vadd.f32 %v4730, %v4718
    %v4732 = vadd.f32 %v4731, %v4719
    %v4733 = vadd.f32 %v4732, %v4720
    %v4734 = vadd.f32 %v4733, %v4721
    %v4735 = vadd.f32 %v4734, %v4722
    %v4736 = vrot.slane %v4735, 4
    %v4737 = vadd.f32 %v4735, %v4736
    %v4738 = vrot.slane %v4737, 2
    %v4739 = vadd.f32 %v4737, %v4738
    %v4740 = vrot.slane %v4739, 1
    %v4741 = vadd.f32 %v4739, %v4740
    %v4742 = vadd.f32 %v4723, %v4724
    %v4743 = vadd.f32 %v4742, %v4725
    %v4744 = vadd.f32 %v4743, %v4726
    %v4745 = vadd.f32 %v4744, %v4727
    %v4746 = vadd.f32 %v4745, %v4728
    %v4747 = vadd.f32 %v4746, %v4729
    %v4748 = vrot.slane %v4747, 4
    %v4749 = vadd.f32 %v4747, %v4748
    %v4750 = vrot.slane %v4749, 2
    %v4751 = vadd.f32 %v4749, %v4750
    %v4752 = vrot.slane %v4751, 1
    %v4753 = vadd.f32 %v4751, %v4752
    %v4754 = vrcp.pop 56.0
    %v4755 = vmul.f32 %v4741, %v4754
    %v4756 = vmul.f32 %v4753, %v4754
    %v4757 = vpack.c.bf16 %v4755, %v4755
    %v4758 = vpack.c.bf16 %v4756, %v4756
    %v4759 = vld [vmem:[%s7] sm:$0xff]
    %v4760 = vld [vmem:[%s7 + $0x8] sm:$0xff]
    %v4761 = vld [vmem:[%s7 + $0x10] sm:$0xff]
    %v4762 = vld [vmem:[%s7 + $0x18] sm:$0xff]
    %v4763 = vld [vmem:[%s7 + $0x20] sm:$0xff]
    %v4764 = vld [vmem:[%s7 + $0x28] sm:$0xff]
    %v4765 = vld [vmem:[%s7 + $0x30] sm:$0xff]
    %v4766 = vld [vmem:[%s7 + $0x38] sm:$0xff]
    %v4767 = vld [vmem:[%s7 + $0x40] sm:$0xff]
    %v4768 = vld [vmem:[%s7 + $0x48] sm:$0xff]
    %v4769 = vld [vmem:[%s7 + $0x50] sm:$0xff]
    %v4770 = vld [vmem:[%s7 + $0x58] sm:$0xff]
    %v4771 = vld [vmem:[%s7 + $0x60] sm:$0xff]
    %v4772 = vld [vmem:[%s7 + $0x68] sm:$0xff]
    %v4773 = vld [vmem:[%s7 + $0x70] sm:$0xff]
    %v4774 = vld [vmem:[%s7 + $0x78] sm:$0xff]
    %v4775 = vld [vmem:[%s8] sm:$0x3]
    %v4777 = vlaneseq
    %v4778 = vshrl.u32 %v4777, 7
    %v4779 = vsub.s32 0, %v4778
    %v4780 = vrot.slane %v4775, %v4779
    %v4781 = vlaneseq
    %v4782 = vshrl.u32 %v4781, 7
    %v4783 = vsub.s32 1, %v4782
    %v4784 = vrot.slane %v4775, %v4783
    %v4789 = vunpack.c.l.b16 %v4757
    %v4790 = vunpack.c.l.b16 %v4758
    %vm4791 = vcmask 1041409
    %v4792 = vsel %vm4791, %v4790, %v4789
    %v4793 = vpack.c.b16 %v4792, %v4792
    %v4811 = vunpack.c.l.b16 %v4759
    %v4812 = vunpack.c.h.b16 %v4759
    %v4813 = vunpack.c.l.b16 %v4760
    %v4814 = vunpack.c.h.b16 %v4760
    %v4815 = vunpack.c.l.b16 %v4761
    %v4816 = vunpack.c.h.b16 %v4761
    %v4817 = vunpack.c.l.b16 %v4762
    %v4818 = vunpack.c.h.b16 %v4762
    %v4819 = vunpack.c.l.b16 %v4763
    %v4820 = vunpack.c.h.b16 %v4763
    %v4821 = vunpack.c.l.b16 %v4764
    %v4822 = vunpack.c.h.b16 %v4764
    %v4823 = vunpack.c.l.b16 %v4765
    %v4824 = vunpack.c.h.b16 %v4765
    %v4825 = vunpack.c.l.b16 %v4766
    %v4826 = vunpack.c.h.b16 %v4766
    %v4827 = vunpack.c.l.b16 %v4767
    %v4828 = vunpack.c.h.b16 %v4767
    %v4829 = vunpack.c.l.b16 %v4768
    %v4830 = vunpack.c.h.b16 %v4768
    %v4831 = vunpack.c.l.b16 %v4769
    %v4832 = vunpack.c.h.b16 %v4769
    %v4833 = vunpack.c.l.b16 %v4770
    %v4834 = vunpack.c.h.b16 %v4770
    %v4835 = vunpack.c.l.b16 %v4771
    %v4836 = vunpack.c.h.b16 %v4771
    %v4837 = vunpack.c.l.b16 %v4772
    %v4838 = vunpack.c.h.b16 %v4772
    %v4839 = vunpack.c.l.b16 %v4773
    %v4840 = vunpack.c.h.b16 %v4773
    %v4841 = vunpack.c.l.b16 %v4774
    %v4842 = vunpack.c.h.b16 %v4774
    %v4843 = vpack.c.b16 %v4813, %v4811
    %v4844 = vpack.c.b16 %v4814, %v4812
    %v4845 = vpack.c.b16 %v4817, %v4815
    %v4846 = vpack.c.b16 %v4818, %v4816
    %v4847 = vpack.c.b16 %v4821, %v4819
    %v4848 = vpack.c.b16 %v4822, %v4820
    %v4849 = vpack.c.b16 %v4825, %v4823
    %v4850 = vpack.c.b16 %v4826, %v4824
    %v4851 = vpack.c.b16 %v4829, %v4827
    %v4852 = vpack.c.b16 %v4830, %v4828
    %v4853 = vpack.c.b16 %v4833, %v4831
    %v4854 = vpack.c.b16 %v4834, %v4832
    %v4855 = vpack.c.b16 %v4837, %v4835
    %v4856 = vpack.c.b16 %v4838, %v4836
    %v4857 = vpack.c.b16 %v4841, %v4839
    %v4858 = vpack.c.b16 %v4842, %v4840
    %4875 = vmatprep.subr.bf16.mxu0 %v4858
    %4876 = vmatpush1.bf16.msra.mxu0 %v4857
    %4877 = vmatprep.subr.bf16.mxu0 %v4856
    %4878 = vmatpush1.bf16.msra.mxu0 %v4855
    %4879 = vmatprep.subr.bf16.mxu0 %v4854
    %4880 = vmatpush1.bf16.msra.mxu0 %v4853
    %4881 = vmatprep.subr.bf16.mxu0 %v4852
    %4882 = vmatpush1.bf16.msra.mxu0 %v4851
    %4883 = vmatprep.subr.bf16.mxu0 %v4850
    %4884 = vmatpush1.bf16.msra.mxu0 %v4849
    %4885 = vmatprep.subr.bf16.mxu0 %v4848
    %4886 = vmatpush1.bf16.msra.mxu0 %v4847
    %4887 = vmatprep.subr.bf16.mxu0 %v4846
    %4888 = vmatpush1.bf16.msra.mxu0 %v4845
    %4889 = vmatprep.subr.bf16.mxu0 %v4844
    %4890 = vmatpush1.bf16.msra.mxu0 %v4843
    %4891 = vmatprep.subr.bf16.mxu0 0
    %4892 = vmatpush2.bf16.msra.mxu0 0
    %4893 = vmatprep.subr.bf16.mxu0 0
    %4894 = vmatpush2.bf16.msra.mxu0 0
    %4895 = vmatprep.subr.bf16.mxu0 0
    %4896 = vmatpush2.bf16.msra.mxu0 0
    %4897 = vmatprep.subr.bf16.mxu0 0
    %4898 = vmatpush2.bf16.msra.mxu0 0
    %4899 = vmatprep.subr.bf16.mxu0 0
    %4900 = vmatpush2.bf16.msra.mxu0 0
    %4901 = vmatprep.subr.bf16.mxu0 0
    %4902 = vmatpush2.bf16.msra.mxu0 0
    %4903 = vmatprep.subr.bf16.mxu0 0
    %4904 = vmatpush2.bf16.msra.mxu0 0
    %4905 = vmatprep.subr.bf16.mxu0 0
    %4906 = vmatpush2.bf16.msra.mxu0 0
    %4907 = vmatprep.mubr.bf16.mxu0 0
    %4908 = vmatmul.mubr.bf16.gmra.mxu0 %v4793
    %v4909 = vpop.f32.mrf.mxu0
    %v4910 = vadd.f32 %v4780, %v4909
    %v4911 = vpop.f32.mrf.mxu0
    %v4912 = vadd.f32 %v4784, %v4911
    %v4913 = vpop.f32.mrf.mxu0
    %v4914 = vpop.f32.mrf.mxu0
    %4915 = vdwg.mxu0
    %v4916 = vmax.f32 %v4910, 0.0
    %v4917 = vmax.f32 %v4912, 0.0
    %v4918 = vpack.c.bf16 %v4916, %v4916
    %v4919 = vpack.c.bf16 %v4917, %v4917
    %v4920 = vld [vmem:[%s9] sm:$0xf]
    %v4921 = vld [vmem:[%s9 + $0x4] sm:$0xf]
    %v4922 = vld [vmem:[%s9 + $0x8] sm:$0xf]
    %v4923 = vld [vmem:[%s9 + $0xc] sm:$0xf]
    %v4924 = vld [vmem:[%s9 + $0x10] sm:$0xf]
    %v4925 = vld [vmem:[%s9 + $0x14] sm:$0xf]
    %v4926 = vld [vmem:[%s9 + $0x18] sm:$0xf]
    %v4927 = vld [vmem:[%s9 + $0x1c] sm:$0xf]
    %v4928 = vld [vmem:[%s9 + $0x20] sm:$0xf]
    %v4929 = vld [vmem:[%s9 + $0x24] sm:$0xf]
    %v4930 = vld [vmem:[%s9 + $0x28] sm:$0xf]
    %v4931 = vld [vmem:[%s9 + $0x2c] sm:$0xf]
    %v4932 = vld [vmem:[%s9 + $0x30] sm:$0xf]
    %v4933 = vld [vmem:[%s9 + $0x34] sm:$0xf]
    %v4934 = vld [vmem:[%s9 + $0x38] sm:$0xf]
    %v4935 = vld [vmem:[%s9 + $0x3c] sm:$0xf]
    %v4936 = vld [vmem:[%s9 + $0x40] sm:$0xf]
    %v4937 = vld [vmem:[%s9 + $0x44] sm:$0xf]
    %v4938 = vld [vmem:[%s9 + $0x48] sm:$0xf]
    %v4939 = vld [vmem:[%s9 + $0x4c] sm:$0xf]
    %v4940 = vld [vmem:[%s9 + $0x50] sm:$0xf]
    %v4941 = vld [vmem:[%s9 + $0x54] sm:$0xf]
    %v4942 = vld [vmem:[%s9 + $0x58] sm:$0xf]
    %v4943 = vld [vmem:[%s9 + $0x5c] sm:$0xf]
    %v4944 = vld [vmem:[%s9 + $0x60] sm:$0xf]
    %v4945 = vld [vmem:[%s9 + $0x64] sm:$0xf]
    %v4946 = vld [vmem:[%s9 + $0x68] sm:$0xf]
    %v4947 = vld [vmem:[%s9 + $0x6c] sm:$0xf]
    %v4948 = vld [vmem:[%s9 + $0x70] sm:$0xf]
    %v4949 = vld [vmem:[%s9 + $0x74] sm:$0xf]
    %v4950 = vld [vmem:[%s9 + $0x78] sm:$0xf]
    %v4951 = vld [vmem:[%s9 + $0x7c] sm:$0xf]
    %v4952 = vld [vmem:[%s10] sm:$0x1]
    %v4954 = vlaneseq
    %v4955 = vshrl.u32 %v4954, 7
    %v4956 = vsub.s32 0, %v4955
    %v4957 = vrot.slane %v4952, %v4956
    %v4991 = vunpack.c.l.b16 %v4920
    %v4992 = vunpack.c.l.b16 %v4921
    %v4993 = vunpack.c.l.b16 %v4922
    %v4994 = vunpack.c.l.b16 %v4923
    %v4995 = vunpack.c.l.b16 %v4924
    %v4996 = vunpack.c.l.b16 %v4925
    %v4997 = vunpack.c.l.b16 %v4926
    %v4998 = vunpack.c.l.b16 %v4927
    %v4999 = vunpack.c.l.b16 %v4928
    %v5000 = vunpack.c.l.b16 %v4929
    %v5001 = vunpack.c.l.b16 %v4930
    %v5002 = vunpack.c.l.b16 %v4931
    %v5003 = vunpack.c.l.b16 %v4932
    %v5004 = vunpack.c.l.b16 %v4933
    %v5005 = vunpack.c.l.b16 %v4934
    %v5006 = vunpack.c.l.b16 %v4935
    %v5007 = vunpack.c.l.b16 %v4936
    %v5008 = vunpack.c.l.b16 %v4937
    %v5009 = vunpack.c.l.b16 %v4938
    %v5010 = vunpack.c.l.b16 %v4939
    %v5011 = vunpack.c.l.b16 %v4940
    %v5012 = vunpack.c.l.b16 %v4941
    %v5013 = vunpack.c.l.b16 %v4942
    %v5014 = vunpack.c.l.b16 %v4943
    %v5015 = vunpack.c.l.b16 %v4944
    %v5016 = vunpack.c.l.b16 %v4945
    %v5017 = vunpack.c.l.b16 %v4946
    %v5018 = vunpack.c.l.b16 %v4947
    %v5019 = vunpack.c.l.b16 %v4948
    %v5020 = vunpack.c.l.b16 %v4949
    %v5021 = vunpack.c.l.b16 %v4950
    %v5022 = vunpack.c.l.b16 %v4951
    %v5023 = vpack.c.b16 %v4992, %v4991
    %v5024 = vpack.c.b16 %v4994, %v4993
    %v5025 = vpack.c.b16 %v4996, %v4995
    %v5026 = vpack.c.b16 %v4998, %v4997
    %v5027 = vpack.c.b16 %v5000, %v4999
    %v5028 = vpack.c.b16 %v5002, %v5001
    %v5029 = vpack.c.b16 %v5004, %v5003
    %v5030 = vpack.c.b16 %v5006, %v5005
    %v5031 = vpack.c.b16 %v5008, %v5007
    %v5032 = vpack.c.b16 %v5010, %v5009
    %v5033 = vpack.c.b16 %v5012, %v5011
    %v5034 = vpack.c.b16 %v5014, %v5013
    %v5035 = vpack.c.b16 %v5016, %v5015
    %v5036 = vpack.c.b16 %v5018, %v5017
    %v5037 = vpack.c.b16 %v5020, %v5019
    %v5038 = vpack.c.b16 %v5022, %v5021
    %5055 = vmatprep.subr.bf16.mxu0 0
    %5056 = vmatpush1.bf16.msra.mxu0 %v5030
    %5057 = vmatprep.subr.bf16.mxu0 0
    %5058 = vmatpush1.bf16.msra.mxu0 %v5029
    %5059 = vmatprep.subr.bf16.mxu0 0
    %5060 = vmatpush1.bf16.msra.mxu0 %v5028
    %5061 = vmatprep.subr.bf16.mxu0 0
    %5062 = vmatpush1.bf16.msra.mxu0 %v5027
    %5063 = vmatprep.subr.bf16.mxu0 0
    %5064 = vmatpush1.bf16.msra.mxu0 %v5026
    %5065 = vmatprep.subr.bf16.mxu0 0
    %5066 = vmatpush1.bf16.msra.mxu0 %v5025
    %5067 = vmatprep.subr.bf16.mxu0 0
    %5068 = vmatpush1.bf16.msra.mxu0 %v5024
    %5069 = vmatprep.subr.bf16.mxu0 0
    %5070 = vmatpush1.bf16.msra.mxu0 %v5023
    %5071 = vmatprep.subr.bf16.mxu0 0
    %5072 = vmatpush2.bf16.msra.mxu0 %v5038
    %5073 = vmatprep.subr.bf16.mxu0 0
    %5074 = vmatpush2.bf16.msra.mxu0 %v5037
    %5075 = vmatprep.subr.bf16.mxu0 0
    %5076 = vmatpush2.bf16.msra.mxu0 %v5036
    %5077 = vmatprep.subr.bf16.mxu0 0
    %5078 = vmatpush2.bf16.msra.mxu0 %v5035
    %5079 = vmatprep.subr.bf16.mxu0 0
    %5080 = vmatpush2.bf16.msra.mxu0 %v5034
    %5081 = vmatprep.subr.bf16.mxu0 0
    %5082 = vmatpush2.bf16.msra.mxu0 %v5033
    %5083 = vmatprep.subr.bf16.mxu0 0
    %5084 = vmatpush2.bf16.msra.mxu0 %v5032
    %5085 = vmatprep.subr.bf16.mxu0 0
    %5086 = vmatpush2.bf16.msra.mxu0 %v5031
    %5087 = vmatprep.mubr.bf16.mxu0 %v4919
    %5088 = vmatmul.mubr.bf16.gmra.mxu0 %v4918
    %v5089 = vpop.f32.mrf.mxu0
    %v5090 = vadd.f32 %v4957, %v5089
    %v5091 = vpop.f32.mrf.mxu0
    %v5092 = vpop.f32.mrf.mxu0
    %v5093 = vpop.f32.mrf.mxu0
    %5094 = vdwg.mxu0
    %5095 = vst [vmem:[%s11] sm:$0x3] %v5090
    // Predicated region
    $region54: #{connect4_forward.1} parent=1 // pred_check
      _
    $region55: #{connect4_forward.1} parent=1 // pred_check_branch
      %5097 = sbr.rel (0) target = $region57
    $region56: #{connect4_forward.1} parent=1 // pred_region
      _
    $region57: #{connect4_forward.1} parent=1 // pred_fallthru
      _
    // Predicated region
    $region58: #{connect4_forward.1} parent=1 // pred_check
      _
    $region59: #{connect4_forward.1} parent=1 // pred_check_branch
      %5099 = sbr.rel (0) target = $region61
    $region60: #{connect4_forward.1} parent=1 // pred_region
      _
    $region61: #{connect4_forward.1} parent=1 // pred_fallthru
      _
    %5100 = vsyncpa [#allocation5], 1
    %5101 = vsyncpa [#allocation7], 1

</llo_original>
